<compile_context>
chip_gen: v6e
topology: v6e:2x2x1
jax: 0.10.0
libtpu: 0.0.40
codegen_flags: <defaults>
</compile_context>

<pallas_src>
import functools

import jax
import jax.numpy as jnp
from jax import lax
from jax.experimental import pallas as pl
from jax.experimental.pallas import tpu as pltpu


_I32_MIN = -(2 ** 31)


def _round_up(x, m):
    return ((x + m - 1) // m) * m


def _vmem_budget_bytes():
    """Per-call VMEM limit derived from the chip (64 MiB on v7x, 128 MiB v5e/v6e)."""
    try:
        phys = int(pltpu.get_tpu_info().vmem_capacity_bytes)
    except Exception:
        phys = 64 << 20                       # conservative fallback (v7x-sized)
    # <= ~48 MiB on v7x, up to 96 MiB on v5e/v6e.
    return min(phys * 3 // 4, 96 << 20)


def _auto_tile(batch, d, m_pad, k, budget):
    """Batch tile: multiple of 128 (it becomes the lane axis of kernel 2)."""
    # grid-invariant: double-buffered bf16 dictionary block in K1
    fixed = 2 * (d * m_pad * 2)
    # K1 per-row bytes: x/xn blocks (f32, double-buffered), packed+idx outputs,
    # ~3 live (row, M_pad) temporaries (sims f32, key i32, col i32)
    k1 = 4 * (4 * d + 4 * 128) + 4 * 3 * m_pad
    # K2 per-row bytes: AtA/bss/out blocks, bf16 atoms block (x2), interp block,
    # f32 temporaries (atoms upcast + product, matvec temp, ISTA vectors)
    k2 = (4 * (2 * k * k + 4 * (k + 1) + 4 * d)
          + 2 * 2 * k * d
          + 4 * (2 * k * d + k * k + 8 * k))
    per_row = max(k1, k2)
    tb = (budget * 4 // 5 - fixed) // max(per_row, 1)
    tb = max(128, min(1024, (tb // 128) * 128))
    tb = min(tb, _round_up(batch, 128))
    if batch >= 4 * 128:
        # at least 4 grid steps: feeds both v7x TensorCores and keeps the
        # software pipeline full.
        tb = min(tb, _round_up(-(-batch // 4), 128))
    return max(128, tb)


# --------------------------------------------------------------------------
# Kernel 1: normalize batch rows, bf16 MXU similarity matmul, fused top-K.
# --------------------------------------------------------------------------
def _similarity_topk_kernel(K, m_real, ibits, x_ref, dict_t_ref,
                            xn_ref, packed_ref, idx_ref):
    x = x_ref[...]                                           # (tb, D) f32
    ssq = jnp.sum(x * x, axis=1, keepdims=True)
    xn = x * lax.rsqrt(jnp.maximum(ssq, 1e-24))              # F.normalize(dim=1), eps=1e-12
    xn_ref[...] = xn
    ss = jnp.sum(xn * xn, axis=1, keepdims=True)             # self-similarity (1.0 or 0.0)

    # similarities on the MXU: bf16 inputs, f32 accumulation
    sims = jnp.dot(xn.astype(jnp.bfloat16), dict_t_ref[...],
                   preferred_element_type=jnp.float32)       # (tb, M_pad)

    tb, m_pad = sims.shape
    col = lax.broadcasted_iota(jnp.int32, (tb, m_pad), 1)

    # Fused top-K: ONE cross-lane max per selection over a monotone int32 key.
    #   high bits : order-preserving transform of the f32 similarity bits
    #               (low `ibits` bits dropped -> ~2^-(23-ibits) truncation)
    #   low bits  : (m_pad - 1 - col) so ties resolve to the smallest index.
    lo_mask = (1 << ibits) - 1
    bits = pltpu.bitcast(sims, jnp.int32)
    key = jnp.where(bits < 0, _I32_MIN - bits, bits)         # monotone in similarity
    key = (key & ~lo_mask) | ((m_pad - 1) - col)
    if m_real < m_pad:
        key = jnp.where(col < m_real, key, _I32_MIN)         # mask padded atoms

    P = packed_ref.shape[1]
    IDXP = idx_ref.shape[1]
    pcol = lax.broadcasted_iota(jnp.int32, (tb, P), 1)
    icol = lax.broadcasted_iota(jnp.int32, (tb, IDXP), 1)
    packed = jnp.zeros((tb, P), jnp.float32)
    idx_out = jnp.zeros((tb, IDXP), jnp.int32)
    for k in range(K):
        best = jnp.max(key, axis=1, keepdims=True)           # (tb, 1) single XLU reduce
        idx = (m_pad - 1) - (best & lo_mask)                  # selected atom index
        vk = best & ~lo_mask                                  # decode similarity value
        vbits = jnp.where(vk < 0, _I32_MIN - vk, vk)
        val = pltpu.bitcast(vbits, jnp.float32)
        packed = jnp.where(pcol == k, val, packed)
        idx_out = jnp.where(icol == k, idx, idx_out)
        key = jnp.where(col == idx, _I32_MIN, key)            # drop selected atom
    packed = jnp.where(pcol == K, ss, packed)                 # lane K: self-similarity
    packed_ref[...] = packed
    idx_ref[...] = idx_out


def _similarity_topk_call(x, dict_t, m_real, K, ibits, P1, IDXP, tb, vmem_limit):
    B, D = x.shape
    M_pad = dict_t.shape[1]
    kernel = functools.partial(_similarity_topk_kernel, K, m_real, ibits)
    return pl.pallas_call(
        kernel,
        out_shape=(jax.ShapeDtypeStruct((B, D), jnp.float32),
                   jax.ShapeDtypeStruct((B, P1), jnp.float32),
                   jax.ShapeDtypeStruct((B, IDXP), jnp.int32)),
        grid=(B // tb,),
        in_specs=[pl.BlockSpec((tb, D), lambda i: (i, 0)),
                  pl.BlockSpec((D, M_pad), lambda i: (0, 0))],
        out_specs=(pl.BlockSpec((tb, D), lambda i: (i, 0)),
                   pl.BlockSpec((tb, P1), lambda i: (i, 0)),
                   pl.BlockSpec((tb, IDXP), lambda i: (i, 0))),
        compiler_params=pltpu.CompilerParams(
            dimension_semantics=("parallel",),
            vmem_limit_bytes=vmem_limit),
    )(x, dict_t)


# --------------------------------------------------------------------------
# Kernel 2: fused step size + approximate_nnk (ISTA) + threshold + coding
#           error + L1 normalization + interpolation. Batch lives on the
#           LANE axis so every ISTA iteration is fully vreg-dense.
# --------------------------------------------------------------------------
def _nnk_kernel(num_iter, x_tol, optim_lr, ata_ref, bss_ref, atoms_ref,
                interp_ref, out_ref):
    AtA = ata_ref[...]                                       # (K, K, tb) f32
    bss = bss_ref[...]                                       # (K+1, tb) f32
    K = AtA.shape[0]
    b = bss[:K, :]                                           # (K, tb)
    ss = bss[K:K + 1, :]                                     # (1, tb)

    def matvec(xv):                                          # (K, tb) -> (K, tb)
        return jnp.sum(AtA * xv[None, :, :], axis=1)

    if optim_lr is None:
        # TODO(synk): torch.linalg.eigvalsh has no Pallas lowering; the step size
        # uses the Gershgorin row-sum upper bound on lambda_max instead, which
        # guarantees eta <= 1/lambda_max so the clamped ISTA cannot diverge.
        lam = jnp.max(jnp.sum(jnp.abs(AtA), axis=1), axis=0, keepdims=True)  # (1, tb)
        eta = jnp.broadcast_to(1.0 / jnp.maximum(lam, 1e-12), b.shape)
    else:
        eta = jnp.full_like(b, optim_lr)
    # eta broadcast is hoisted out of the ISTA loop (JAX does not CSE broadcasts).

    def body(_, xv):
        xv = xv + eta * (b - matvec(xv))
        # torch.clamp(min=0, max=b): max then min (entries with b < 0 become b)
        return jnp.minimum(jnp.maximum(xv, 0.0), b)

    x = lax.fori_loop(0, num_iter, body, b)                  # x_init = b
    x = jnp.where(x < x_tol, 0.0, x)

    err = -2.0 * jnp.sum(x * (b - 0.5 * matvec(x)), axis=0, keepdims=True)  # (1, tb)
    err = (ss + err) / ss          # NaN for an all-zero input row, same as the reference

    l1 = jnp.sum(jnp.abs(x), axis=0, keepdims=True)
    x = x / jnp.maximum(l1, 1e-12)                           # F.normalize(p=1, dim=1)

    # packed output: rows [0, K) = x_opt, row K = error   (lane-dense over batch)
    out_ref[...] = jnp.concatenate([x, err], axis=0)

    # interpolated = bmm(x_opt.unsqueeze(1), dictionary_atoms[indices]).squeeze(1)
    atoms = atoms_ref[...].astype(jnp.float32)               # (tb, K, D) bf16 -> f32
    xt = jnp.transpose(x)                                    # (tb, K)
    interp_ref[...] = jnp.sum(xt[:, :, None] * atoms, axis=1)


def _nnk_call(AtA_T, bss_T, atoms, num_iter, x_tol, optim_lr, tb, vmem_limit):
    K = AtA_T.shape[0]
    B = AtA_T.shape[2]
    D = atoms.shape[-1]
    kernel = functools.partial(_nnk_kernel, num_iter, float(x_tol),
                               None if optim_lr is None else float(optim_lr))
    return pl.pallas_call(
        kernel,
        out_shape=(jax.ShapeDtypeStruct((B, D), jnp.float32),
                   jax.ShapeDtypeStruct((K + 1, B), jnp.float32)),
        grid=(B // tb,),
        in_specs=[pl.BlockSpec((K, K, tb), lambda i: (0, 0, i)),
                  pl.BlockSpec((K + 1, tb), lambda i: (0, i)),
                  pl.BlockSpec((tb, K, D), lambda i: (i, 0, 0))],
        out_specs=(pl.BlockSpec((tb, D), lambda i: (i, 0)),
                   pl.BlockSpec((K + 1, tb), lambda i: (0, i))),
        compiler_params=pltpu.CompilerParams(
            dimension_semantics=("parallel",),
            vmem_limit_bytes=vmem_limit),
    )(AtA_T, bss_T, atoms)


# --------------------------------------------------------------------------
# Forward pass of NNK_Means (n_classes=None; stateful cache/buffer/dict updates
# are training-time side effects that do not change the returned tensors).
# Returns (batch_data_norm, interpolated, label_interpolated, x_opt, indices, error)
# --------------------------------------------------------------------------
def nnk_means_forward(batch_data, dictionary_atoms, *, n_nonzero_coefs=8,
                      optim_itr=100, optim_lr=None, optim_tol=1e-6,
                      batch_tile=None):
    batch_data = jnp.asarray(batch_data, jnp.float32)
    dictionary_atoms = jnp.asarray(dictionary_atoms, jnp.float32)
    B, D = batch_data.shape
    M = dictionary_atoms.shape[0]
    K = int(n_nonzero_coefs)
    assert K <= M, "n_nonzero_coefs must be <= n_components"

    # dictionary_atoms_norm = F.normalize(dictionary_atoms, dim=1)
    dnorm = dictionary_atoms / jnp.maximum(
        jnp.linalg.norm(dictionary_atoms, axis=1, keepdims=True), 1e-12)

    # lane-align the dictionary axis (256 to fill the 2x256x256 MXUs on v6e/v7x).
    # TODO(synk): for very large dictionaries (D*M_pad bf16 block >~16 MiB) the
    # dictionary should be streamed over a second grid axis with a running top-K.
    M_pad = 128 if M <= 128 else _round_up(M, 256)
    ibits = max(1, (M_pad - 1).bit_length())
    assert ibits <= 16
    dict_t = jnp.zeros((D, M_pad), jnp.bfloat16).at[:, :M].set(
        dnorm.T.astype(jnp.bfloat16))

    # batch tile (multiple of 128: it becomes the lane axis of kernel 2) + padding.
    vmem_limit = _vmem_budget_bytes()
    if batch_tile is not None:
        assert batch_tile % 128 == 0, "batch_tile must be a multiple of 128"
        tb = int(batch_tile)
    else:
        tb = _auto_tile(B, D, M_pad, K, vmem_limit)
    B_pad = _round_up(max(B, tb), tb)
    x_in = batch_data if B_pad == B else jnp.concatenate(
        [batch_data, jnp.ones((B_pad - B, D), jnp.float32)], axis=0)

    # (1) normalize + bf16 MXU similarities + fused in-kernel top-K (Pallas)
    P1 = _round_up(K + 1, 128)
    IDXP = _round_up(K, 128)
    xn_pad, packed1, idx_out = _similarity_topk_call(
        x_in, dict_t, M, K, ibits, P1, IDXP, tb, vmem_limit)
    sub_idx = idx_out[:, :K]                                  # (B_pad, K) int32, exact

    # (2) XLA glue: global Gram of normalized atoms, per-sample AtA / atom gathers,
    #     transposed into the batch-on-lanes layout used by kernel 2.
    G = jnp.dot(dnorm, dnorm.T)                               # (M, M) f32, default precision
    AtA = G[sub_idx[:, :, None], sub_idx[:, None, :]]         # (B_pad, K, K)
    AtA_T = jnp.transpose(AtA, (1, 2, 0))                     # (K, K, B_pad)
    bss_T = jnp.transpose(packed1[:, :K + 1])                 # (K+1, B_pad): b rows + self-sim
    atoms = dictionary_atoms[sub_idx].astype(jnp.bfloat16)    # (B_pad, K, D) bf16

    # (3) fused eta / ISTA / error / L1-normalize / interpolation (Pallas)
    interp_pad, xerr_T = _nnk_call(AtA_T, bss_T, atoms,
                                   optim_itr, optim_tol, optim_lr, tb, vmem_limit)

    xn = xn_pad[:B]
    interpolated = interp_pad[:B]
    x_opt = jnp.transpose(xerr_T[:K, :B])                     # (B, K)
    error = xerr_T[K, :B]                                     # (B,)
    label_interpolated = None   # n_classes is None
    # TODO(synk): sparse cache / error-based buffer / dictionary updates are stateful
    # training-time mutations that do not affect the forward outputs; omitted here.
    return xn, interpolated, label_interpolated, x_opt, sub_idx[:B], error


if __name__ == "__main__":
    key = jax.random.PRNGKey(0)
    k_data, k_dict = jax.random.split(key)

    B, D = 8, 32               # batch, feature dim
    M, K = 64, 8               # n_components, n_nonzero_coefs

    batch_data = jax.random.normal(k_data, (B, D), dtype=jnp.float32)
    dictionary_atoms = jax.random.normal(k_dict, (M, D), dtype=jnp.float32)

    out = nnk_means_forward(
        batch_data, dictionary_atoms,
        n_nonzero_coefs=K, optim_itr=100, optim_lr=None, optim_tol=1e-6)

    xn, interpolated, label_interp, x_opt, indices, error = out
    jax.block_until_ready((xn, interpolated, x_opt, indices, error))

    assert xn.shape == (B, D)
    assert interpolated.shape == (B, D)
    assert x_opt.shape == (B, K)
    assert indices.shape == (B, K)
    assert error.shape == (B,)
    assert bool(jnp.all(jnp.isfinite(x_opt)))
    assert bool(jnp.all(jnp.isfinite(interpolated)))
    assert bool(jnp.all(jnp.isfinite(error)))
    assert bool(jnp.all((indices >= 0) & (indices < M)))
    print("KERNEL_OK")
</pallas_src>

<mosaic_0001>
module attributes {stable_mosaic.version = 11 : i64} {
  func.func @_similarity_topk_kernel(%arg0: i32, %arg1: memref<128x32xf32, #tpu.memory_space<vmem>>, %arg2: memref<32x128xbf16, #tpu.memory_space<vmem>>, %arg3: memref<128x32xf32, #tpu.memory_space<vmem>>, %arg4: memref<128x128xf32, #tpu.memory_space<vmem>>, %arg5: memref<128x128xi32, #tpu.memory_space<vmem>>) attributes {dimension_semantics = [#tpu.dimension_semantics<parallel>], iteration_bounds = array<i64: 1>, scalar_prefetch = 0 : i64, scratch_operands = 0 : i64, tpu.core_type = #tpu.core_type<tc>, window_params = [{transform_indices = @transform_0, window_bounds = array<i64: 128, 32>}, {pipeline_mode = #tpu.pipeline_mode<synchronous>, transform_indices = @transform_1, window_bounds = array<i64: 32, 128>}, {transform_indices = @transform_2, window_bounds = array<i64: 128, 32>}, {transform_indices = @transform_3, window_bounds = array<i64: 128, 128>}, {transform_indices = @transform_4, window_bounds = array<i64: 128, 128>}]} {
    %c0 = arith.constant 0 : index
    %c0_0 = arith.constant 0 : index
    %0 = vector.load %arg1[%c0, %c0_0] : memref<128x32xf32, #tpu.memory_space<vmem>>, vector<128x32xf32>
    %1 = arith.mulf %0, %0 : vector<128x32xf32>
    %cst = arith.constant dense<0.000000e+00> : vector<128xf32>
    %2 = vector.multi_reduction <add>, %1, %cst [1] : vector<128x32xf32> to vector<128xf32>
    %3 = vector.shape_cast %2 : vector<128xf32> to vector<128x1xf32>
    %cst_1 = arith.constant 1.000000e-24 : f32
    %4 = vector.broadcast %cst_1 : f32 to vector<128x1xf32>
    %5 = arith.maximumf %3, %4 : vector<128x1xf32>
    %6 = math.rsqrt %5 : vector<128x1xf32>
    %7 = vector.broadcast %6 : vector<128x1xf32> to vector<128x32xf32>
    %8 = arith.mulf %0, %7 : vector<128x32xf32>
    %c0_2 = arith.constant 0 : index
    %c0_3 = arith.constant 0 : index
    %9 = vector.load %arg3[%c0_2, %c0_3] : memref<128x32xf32, #tpu.memory_space<vmem>>, vector<128x32xf32>
    tpu.vector_store %arg3[%c0_2, %c0_3], %8 {strides = array<i32>} : memref<128x32xf32, #tpu.memory_space<vmem>>, vector<128x32xf32>,
    %10 = arith.mulf %8, %8 : vector<128x32xf32>
    %cst_4 = arith.constant dense<0.000000e+00> : vector<128xf32>
    %11 = vector.multi_reduction <add>, %10, %cst_4 [1] : vector<128x32xf32> to vector<128xf32>
    %12 = vector.shape_cast %11 : vector<128xf32> to vector<128x1xf32>
    %13 = arith.truncf %8 : vector<128x32xf32> to vector<128x32xbf16>
    %c0_5 = arith.constant 0 : index
    %c0_6 = arith.constant 0 : index
    %14 = vector.load %arg2[%c0_5, %c0_6] : memref<32x128xbf16, #tpu.memory_space<vmem>>, vector<32x128xbf16>
    %cst_7 = arith.constant dense<0.000000e+00> : vector<128x128xf32>
    %15 = tpu.matmul %13, %14, %cst_7 {dimension_numbers = #tpu.dot_dimension_numbers<[1], [0], [0], [1], [0, 0, 1, 1], [], []>} : vector<128x32xbf16>, vector<32x128xbf16>, vector<128x128xf32> -> vector<128x128xf32>
    %16 = tpu.iota {dimensions = array<i32: 1>} : vector<128x128xi32>
    %17 = tpu.bitcast %15 : vector<128x128xf32> -> vector<128x128xi32>
    %c0_i32 = arith.constant 0 : i32
    %18 = vector.broadcast %c0_i32 : i32 to vector<128x128xi32>
    %19 = arith.cmpi slt, %17, %18 : vector<128x128xi32>
    %c-2147483648_i32 = arith.constant -2147483648 : i32
    %20 = vector.broadcast %c-2147483648_i32 : i32 to vector<128x128xi32>
    %21 = arith.subi %20, %17 : vector<128x128xi32>
    %22 = arith.select %19, %21, %17 : vector<128x128xi1>, vector<128x128xi32>
    %c-128_i32 = arith.constant -128 : i32
    %23 = vector.broadcast %c-128_i32 : i32 to vector<128x128xi32>
    %24 = arith.andi %22, %23 : vector<128x128xi32>
    %c127_i32 = arith.constant 127 : i32
    %25 = vector.broadcast %c127_i32 : i32 to vector<128x128xi32>
    %26 = arith.subi %25, %16 : vector<128x128xi32>
    %27 = arith.ori %24, %26 : vector<128x128xi32>
    %c64_i32 = arith.constant 64 : i32
    %28 = vector.broadcast %c64_i32 : i32 to vector<128x128xi32>
    %29 = arith.cmpi slt, %16, %28 : vector<128x128xi32>
    %c-2147483648_i32_8 = arith.constant -2147483648 : i32
    %30 = vector.broadcast %c-2147483648_i32_8 : i32 to vector<128x128xi32>
    %31 = arith.select %29, %27, %30 : vector<128x128xi1>, vector<128x128xi32>
    %32 = tpu.iota {dimensions = array<i32: 1>} : vector<128x128xi32>
    %33 = tpu.iota {dimensions = array<i32: 1>} : vector<128x128xi32>
    %cst_9 = arith.constant 0.000000e+00 : f32
    %34 = vector.broadcast %cst_9 : f32 to vector<128x128xf32>
    %c0_i32_10 = arith.constant 0 : i32
    %35 = vector.broadcast %c0_i32_10 : i32 to vector<128x128xi32>
    %cst_11 = arith.constant dense<-2147483648> : vector<128xi32>
    %36 = vector.multi_reduction <maxsi>, %31, %cst_11 [1] : vector<128x128xi32> to vector<128xi32>
    %37 = vector.shape_cast %36 : vector<128xi32> to vector<128x1xi32>
    %c127_i32_12 = arith.constant 127 : i32
    %38 = vector.broadcast %c127_i32_12 : i32 to vector<128x1xi32>
    %39 = arith.andi %37, %38 : vector<128x1xi32>
    %c127_i32_13 = arith.constant 127 : i32
    %40 = vector.broadcast %c127_i32_13 : i32 to vector<128x1xi32>
    %41 = arith.subi %40, %39 : vector<128x1xi32>
    %c-128_i32_14 = arith.constant -128 : i32
    %42 = vector.broadcast %c-128_i32_14 : i32 to vector<128x1xi32>
    %43 = arith.andi %37, %42 : vector<128x1xi32>
    %c0_i32_15 = arith.constant 0 : i32
    %44 = vector.broadcast %c0_i32_15 : i32 to vector<128x1xi32>
    %45 = arith.cmpi slt, %43, %44 : vector<128x1xi32>
    %c-2147483648_i32_16 = arith.constant -2147483648 : i32
    %46 = vector.broadcast %c-2147483648_i32_16 : i32 to vector<128x1xi32>
    %47 = arith.subi %46, %43 : vector<128x1xi32>
    %48 = arith.select %45, %47, %43 : vector<128x1xi1>, vector<128x1xi32>
    %49 = tpu.bitcast %48 : vector<128x1xi32> -> vector<128x1xf32>
    %c0_i32_17 = arith.constant 0 : i32
    %50 = vector.broadcast %c0_i32_17 : i32 to vector<128x128xi32>
    %51 = arith.cmpi eq, %32, %50 : vector<128x128xi32>
    %52 = vector.shape_cast %49 : vector<128x1xf32> to vector<128x1xf32>
    %53 = vector.broadcast %52 : vector<128x1xf32> to vector<128x128xf32>
    %54 = arith.select %51, %53, %34 : vector<128x128xi1>, vector<128x128xf32>
    %c0_i32_18 = arith.constant 0 : i32
    %55 = vector.broadcast %c0_i32_18 : i32 to vector<128x128xi32>
    %56 = arith.cmpi eq, %33, %55 : vector<128x128xi32>
    %57 = vector.shape_cast %41 : vector<128x1xi32> to vector<128x1xi32>
    %58 = vector.broadcast %57 : vector<128x1xi32> to vector<128x128xi32>
    %59 = arith.select %56, %58, %35 : vector<128x128xi1>, vector<128x128xi32>
    %60 = vector.broadcast %41 : vector<128x1xi32> to vector<128x128xi32>
    %61 = arith.cmpi eq, %16, %60 : vector<128x128xi32>
    %c-2147483648_i32_19 = arith.constant -2147483648 : i32
    %62 = vector.broadcast %c-2147483648_i32_19 : i32 to vector<128x128xi32>
    %63 = arith.select %61, %62, %31 : vector<128x128xi1>, vector<128x128xi32>
    %cst_20 = arith.constant dense<-2147483648> : vector<128xi32>
    %64 = vector.multi_reduction <maxsi>, %63, %cst_20 [1] : vector<128x128xi32> to vector<128xi32>
    %65 = vector.shape_cast %64 : vector<128xi32> to vector<128x1xi32>
    %c127_i32_21 = arith.constant 127 : i32
    %66 = vector.broadcast %c127_i32_21 : i32 to vector<128x1xi32>
    %67 = arith.andi %65, %66 : vector<128x1xi32>
    %c127_i32_22 = arith.constant 127 : i32
    %68 = vector.broadcast %c127_i32_22 : i32 to vector<128x1xi32>
    %69 = arith.subi %68, %67 : vector<128x1xi32>
    %c-128_i32_23 = arith.constant -128 : i32
    %70 = vector.broadcast %c-128_i32_23 : i32 to vector<128x1xi32>
    %71 = arith.andi %65, %70 : vector<128x1xi32>
    %c0_i32_24 = arith.constant 0 : i32
    %72 = vector.broadcast %c0_i32_24 : i32 to vector<128x1xi32>
    %73 = arith.cmpi slt, %71, %72 : vector<128x1xi32>
    %c-2147483648_i32_25 = arith.constant -2147483648 : i32
    %74 = vector.broadcast %c-2147483648_i32_25 : i32 to vector<128x1xi32>
    %75 = arith.subi %74, %71 : vector<128x1xi32>
    %76 = arith.select %73, %75, %71 : vector<128x1xi1>, vector<128x1xi32>
    %77 = tpu.bitcast %76 : vector<128x1xi32> -> vector<128x1xf32>
    %c1_i32 = arith.constant 1 : i32
    %78 = vector.broadcast %c1_i32 : i32 to vector<128x128xi32>
    %79 = arith.cmpi eq, %32, %78 : vector<128x128xi32>
    %80 = vector.shape_cast %77 : vector<128x1xf32> to vector<128x1xf32>
    %81 = vector.broadcast %80 : vector<128x1xf32> to vector<128x128xf32>
    %82 = arith.select %79, %81, %54 : vector<128x128xi1>, vector<128x128xf32>
    %c1_i32_26 = arith.constant 1 : i32
    %83 = vector.broadcast %c1_i32_26 : i32 to vector<128x128xi32>
    %84 = arith.cmpi eq, %33, %83 : vector<128x128xi32>
    %85 = vector.shape_cast %69 : vector<128x1xi32> to vector<128x1xi32>
    %86 = vector.broadcast %85 : vector<128x1xi32> to vector<128x128xi32>
    %87 = arith.select %84, %86, %59 : vector<128x128xi1>, vector<128x128xi32>
    %88 = vector.broadcast %69 : vector<128x1xi32> to vector<128x128xi32>
    %89 = arith.cmpi eq, %16, %88 : vector<128x128xi32>
    %c-2147483648_i32_27 = arith.constant -2147483648 : i32
    %90 = vector.broadcast %c-2147483648_i32_27 : i32 to vector<128x128xi32>
    %91 = arith.select %89, %90, %63 : vector<128x128xi1>, vector<128x128xi32>
    %cst_28 = arith.constant dense<-2147483648> : vector<128xi32>
    %92 = vector.multi_reduction <maxsi>, %91, %cst_28 [1] : vector<128x128xi32> to vector<128xi32>
    %93 = vector.shape_cast %92 : vector<128xi32> to vector<128x1xi32>
    %c127_i32_29 = arith.constant 127 : i32
    %94 = vector.broadcast %c127_i32_29 : i32 to vector<128x1xi32>
    %95 = arith.andi %93, %94 : vector<128x1xi32>
    %c127_i32_30 = arith.constant 127 : i32
    %96 = vector.broadcast %c127_i32_30 : i32 to vector<128x1xi32>
    %97 = arith.subi %96, %95 : vector<128x1xi32>
    %c-128_i32_31 = arith.constant -128 : i32
    %98 = vector.broadcast %c-128_i32_31 : i32 to vector<128x1xi32>
    %99 = arith.andi %93, %98 : vector<128x1xi32>
    %c0_i32_32 = arith.constant 0 : i32
    %100 = vector.broadcast %c0_i32_32 : i32 to vector<128x1xi32>
    %101 = arith.cmpi slt, %99, %100 : vector<128x1xi32>
    %c-2147483648_i32_33 = arith.constant -2147483648 : i32
    %102 = vector.broadcast %c-2147483648_i32_33 : i32 to vector<128x1xi32>
    %103 = arith.subi %102, %99 : vector<128x1xi32>
    %104 = arith.select %101, %103, %99 : vector<128x1xi1>, vector<128x1xi32>
    %105 = tpu.bitcast %104 : vector<128x1xi32> -> vector<128x1xf32>
    %c2_i32 = arith.constant 2 : i32
    %106 = vector.broadcast %c2_i32 : i32 to vector<128x128xi32>
    %107 = arith.cmpi eq, %32, %106 : vector<128x128xi32>
    %108 = vector.shape_cast %105 : vector<128x1xf32> to vector<128x1xf32>
    %109 = vector.broadcast %108 : vector<128x1xf32> to vector<128x128xf32>
    %110 = arith.select %107, %109, %82 : vector<128x128xi1>, vector<128x128xf32>
    %c2_i32_34 = arith.constant 2 : i32
    %111 = vector.broadcast %c2_i32_34 : i32 to vector<128x128xi32>
    %112 = arith.cmpi eq, %33, %111 : vector<128x128xi32>
    %113 = vector.shape_cast %97 : vector<128x1xi32> to vector<128x1xi32>
    %114 = vector.broadcast %113 : vector<128x1xi32> to vector<128x128xi32>
    %115 = arith.select %112, %114, %87 : vector<128x128xi1>, vector<128x128xi32>
    %116 = vector.broadcast %97 : vector<128x1xi32> to vector<128x128xi32>
    %117 = arith.cmpi eq, %16, %116 : vector<128x128xi32>
    %c-2147483648_i32_35 = arith.constant -2147483648 : i32
    %118 = vector.broadcast %c-2147483648_i32_35 : i32 to vector<128x128xi32>
    %119 = arith.select %117, %118, %91 : vector<128x128xi1>, vector<128x128xi32>
    %cst_36 = arith.constant dense<-2147483648> : vector<128xi32>
    %120 = vector.multi_reduction <maxsi>, %119, %cst_36 [1] : vector<128x128xi32> to vector<128xi32>
    %121 = vector.shape_cast %120 : vector<128xi32> to vector<128x1xi32>
    %c127_i32_37 = arith.constant 127 : i32
    %122 = vector.broadcast %c127_i32_37 : i32 to vector<128x1xi32>
    %123 = arith.andi %121, %122 : vector<128x1xi32>
    %c127_i32_38 = arith.constant 127 : i32
    %124 = vector.broadcast %c127_i32_38 : i32 to vector<128x1xi32>
    %125 = arith.subi %124, %123 : vector<128x1xi32>
    %c-128_i32_39 = arith.constant -128 : i32
    %126 = vector.broadcast %c-128_i32_39 : i32 to vector<128x1xi32>
    %127 = arith.andi %121, %126 : vector<128x1xi32>
    %c0_i32_40 = arith.constant 0 : i32
    %128 = vector.broadcast %c0_i32_40 : i32 to vector<128x1xi32>
    %129 = arith.cmpi slt, %127, %128 : vector<128x1xi32>
    %c-2147483648_i32_41 = arith.constant -2147483648 : i32
    %130 = vector.broadcast %c-2147483648_i32_41 : i32 to vector<128x1xi32>
    %131 = arith.subi %130, %127 : vector<128x1xi32>
    %132 = arith.select %129, %131, %127 : vector<128x1xi1>, vector<128x1xi32>
    %133 = tpu.bitcast %132 : vector<128x1xi32> -> vector<128x1xf32>
    %c3_i32 = arith.constant 3 : i32
    %134 = vector.broadcast %c3_i32 : i32 to vector<128x128xi32>
    %135 = arith.cmpi eq, %32, %134 : vector<128x128xi32>
    %136 = vector.shape_cast %133 : vector<128x1xf32> to vector<128x1xf32>
    %137 = vector.broadcast %136 : vector<128x1xf32> to vector<128x128xf32>
    %138 = arith.select %135, %137, %110 : vector<128x128xi1>, vector<128x128xf32>
    %c3_i32_42 = arith.constant 3 : i32
    %139 = vector.broadcast %c3_i32_42 : i32 to vector<128x128xi32>
    %140 = arith.cmpi eq, %33, %139 : vector<128x128xi32>
    %141 = vector.shape_cast %125 : vector<128x1xi32> to vector<128x1xi32>
    %142 = vector.broadcast %141 : vector<128x1xi32> to vector<128x128xi32>
    %143 = arith.select %140, %142, %115 : vector<128x128xi1>, vector<128x128xi32>
    %144 = vector.broadcast %125 : vector<128x1xi32> to vector<128x128xi32>
    %145 = arith.cmpi eq, %16, %144 : vector<128x128xi32>
    %c-2147483648_i32_43 = arith.constant -2147483648 : i32
    %146 = vector.broadcast %c-2147483648_i32_43 : i32 to vector<128x128xi32>
    %147 = arith.select %145, %146, %119 : vector<128x128xi1>, vector<128x128xi32>
    %cst_44 = arith.constant dense<-2147483648> : vector<128xi32>
    %148 = vector.multi_reduction <maxsi>, %147, %cst_44 [1] : vector<128x128xi32> to vector<128xi32>
    %149 = vector.shape_cast %148 : vector<128xi32> to vector<128x1xi32>
    %c127_i32_45 = arith.constant 127 : i32
    %150 = vector.broadcast %c127_i32_45 : i32 to vector<128x1xi32>
    %151 = arith.andi %149, %150 : vector<128x1xi32>
    %c127_i32_46 = arith.constant 127 : i32
    %152 = vector.broadcast %c127_i32_46 : i32 to vector<128x1xi32>
    %153 = arith.subi %152, %151 : vector<128x1xi32>
    %c-128_i32_47 = arith.constant -128 : i32
    %154 = vector.broadcast %c-128_i32_47 : i32 to vector<128x1xi32>
    %155 = arith.andi %149, %154 : vector<128x1xi32>
    %c0_i32_48 = arith.constant 0 : i32
    %156 = vector.broadcast %c0_i32_48 : i32 to vector<128x1xi32>
    %157 = arith.cmpi slt, %155, %156 : vector<128x1xi32>
    %c-2147483648_i32_49 = arith.constant -2147483648 : i32
    %158 = vector.broadcast %c-2147483648_i32_49 : i32 to vector<128x1xi32>
    %159 = arith.subi %158, %155 : vector<128x1xi32>
    %160 = arith.select %157, %159, %155 : vector<128x1xi1>, vector<128x1xi32>
    %161 = tpu.bitcast %160 : vector<128x1xi32> -> vector<128x1xf32>
    %c4_i32 = arith.constant 4 : i32
    %162 = vector.broadcast %c4_i32 : i32 to vector<128x128xi32>
    %163 = arith.cmpi eq, %32, %162 : vector<128x128xi32>
    %164 = vector.shape_cast %161 : vector<128x1xf32> to vector<128x1xf32>
    %165 = vector.broadcast %164 : vector<128x1xf32> to vector<128x128xf32>
    %166 = arith.select %163, %165, %138 : vector<128x128xi1>, vector<128x128xf32>
    %c4_i32_50 = arith.constant 4 : i32
    %167 = vector.broadcast %c4_i32_50 : i32 to vector<128x128xi32>
    %168 = arith.cmpi eq, %33, %167 : vector<128x128xi32>
    %169 = vector.shape_cast %153 : vector<128x1xi32> to vector<128x1xi32>
    %170 = vector.broadcast %169 : vector<128x1xi32> to vector<128x128xi32>
    %171 = arith.select %168, %170, %143 : vector<128x128xi1>, vector<128x128xi32>
    %172 = vector.broadcast %153 : vector<128x1xi32> to vector<128x128xi32>
    %173 = arith.cmpi eq, %16, %172 : vector<128x128xi32>
    %c-2147483648_i32_51 = arith.constant -2147483648 : i32
    %174 = vector.broadcast %c-2147483648_i32_51 : i32 to vector<128x128xi32>
    %175 = arith.select %173, %174, %147 : vector<128x128xi1>, vector<128x128xi32>
    %cst_52 = arith.constant dense<-2147483648> : vector<128xi32>
    %176 = vector.multi_reduction <maxsi>, %175, %cst_52 [1] : vector<128x128xi32> to vector<128xi32>
    %177 = vector.shape_cast %176 : vector<128xi32> to vector<128x1xi32>
    %c127_i32_53 = arith.constant 127 : i32
    %178 = vector.broadcast %c127_i32_53 : i32 to vector<128x1xi32>
    %179 = arith.andi %177, %178 : vector<128x1xi32>
    %c127_i32_54 = arith.constant 127 : i32
    %180 = vector.broadcast %c127_i32_54 : i32 to vector<128x1xi32>
    %181 = arith.subi %180, %179 : vector<128x1xi32>
    %c-128_i32_55 = arith.constant -128 : i32
    %182 = vector.broadcast %c-128_i32_55 : i32 to vector<128x1xi32>
    %183 = arith.andi %177, %182 : vector<128x1xi32>
    %c0_i32_56 = arith.constant 0 : i32
    %184 = vector.broadcast %c0_i32_56 : i32 to vector<128x1xi32>
    %185 = arith.cmpi slt, %183, %184 : vector<128x1xi32>
    %c-2147483648_i32_57 = arith.constant -2147483648 : i32
    %186 = vector.broadcast %c-2147483648_i32_57 : i32 to vector<128x1xi32>
    %187 = arith.subi %186, %183 : vector<128x1xi32>
    %188 = arith.select %185, %187, %183 : vector<128x1xi1>, vector<128x1xi32>
    %189 = tpu.bitcast %188 : vector<128x1xi32> -> vector<128x1xf32>
    %c5_i32 = arith.constant 5 : i32
    %190 = vector.broadcast %c5_i32 : i32 to vector<128x128xi32>
    %191 = arith.cmpi eq, %32, %190 : vector<128x128xi32>
    %192 = vector.shape_cast %189 : vector<128x1xf32> to vector<128x1xf32>
    %193 = vector.broadcast %192 : vector<128x1xf32> to vector<128x128xf32>
    %194 = arith.select %191, %193, %166 : vector<128x128xi1>, vector<128x128xf32>
    %c5_i32_58 = arith.constant 5 : i32
    %195 = vector.broadcast %c5_i32_58 : i32 to vector<128x128xi32>
    %196 = arith.cmpi eq, %33, %195 : vector<128x128xi32>
    %197 = vector.shape_cast %181 : vector<128x1xi32> to vector<128x1xi32>
    %198 = vector.broadcast %197 : vector<128x1xi32> to vector<128x128xi32>
    %199 = arith.select %196, %198, %171 : vector<128x128xi1>, vector<128x128xi32>
    %200 = vector.broadcast %181 : vector<128x1xi32> to vector<128x128xi32>
    %201 = arith.cmpi eq, %16, %200 : vector<128x128xi32>
    %c-2147483648_i32_59 = arith.constant -2147483648 : i32
    %202 = vector.broadcast %c-2147483648_i32_59 : i32 to vector<128x128xi32>
    %203 = arith.select %201, %202, %175 : vector<128x128xi1>, vector<128x128xi32>
    %cst_60 = arith.constant dense<-2147483648> : vector<128xi32>
    %204 = vector.multi_reduction <maxsi>, %203, %cst_60 [1] : vector<128x128xi32> to vector<128xi32>
    %205 = vector.shape_cast %204 : vector<128xi32> to vector<128x1xi32>
    %c127_i32_61 = arith.constant 127 : i32
    %206 = vector.broadcast %c127_i32_61 : i32 to vector<128x1xi32>
    %207 = arith.andi %205, %206 : vector<128x1xi32>
    %c127_i32_62 = arith.constant 127 : i32
    %208 = vector.broadcast %c127_i32_62 : i32 to vector<128x1xi32>
    %209 = arith.subi %208, %207 : vector<128x1xi32>
    %c-128_i32_63 = arith.constant -128 : i32
    %210 = vector.broadcast %c-128_i32_63 : i32 to vector<128x1xi32>
    %211 = arith.andi %205, %210 : vector<128x1xi32>
    %c0_i32_64 = arith.constant 0 : i32
    %212 = vector.broadcast %c0_i32_64 : i32 to vector<128x1xi32>
    %213 = arith.cmpi slt, %211, %212 : vector<128x1xi32>
    %c-2147483648_i32_65 = arith.constant -2147483648 : i32
    %214 = vector.broadcast %c-2147483648_i32_65 : i32 to vector<128x1xi32>
    %215 = arith.subi %214, %211 : vector<128x1xi32>
    %216 = arith.select %213, %215, %211 : vector<128x1xi1>, vector<128x1xi32>
    %217 = tpu.bitcast %216 : vector<128x1xi32> -> vector<128x1xf32>
    %c6_i32 = arith.constant 6 : i32
    %218 = vector.broadcast %c6_i32 : i32 to vector<128x128xi32>
    %219 = arith.cmpi eq, %32, %218 : vector<128x128xi32>
    %220 = vector.shape_cast %217 : vector<128x1xf32> to vector<128x1xf32>
    %221 = vector.broadcast %220 : vector<128x1xf32> to vector<128x128xf32>
    %222 = arith.select %219, %221, %194 : vector<128x128xi1>, vector<128x128xf32>
    %c6_i32_66 = arith.constant 6 : i32
    %223 = vector.broadcast %c6_i32_66 : i32 to vector<128x128xi32>
    %224 = arith.cmpi eq, %33, %223 : vector<128x128xi32>
    %225 = vector.shape_cast %209 : vector<128x1xi32> to vector<128x1xi32>
    %226 = vector.broadcast %225 : vector<128x1xi32> to vector<128x128xi32>
    %227 = arith.select %224, %226, %199 : vector<128x128xi1>, vector<128x128xi32>
    %228 = vector.broadcast %209 : vector<128x1xi32> to vector<128x128xi32>
    %229 = arith.cmpi eq, %16, %228 : vector<128x128xi32>
    %c-2147483648_i32_67 = arith.constant -2147483648 : i32
    %230 = vector.broadcast %c-2147483648_i32_67 : i32 to vector<128x128xi32>
    %231 = arith.select %229, %230, %203 : vector<128x128xi1>, vector<128x128xi32>
    %cst_68 = arith.constant dense<-2147483648> : vector<128xi32>
    %232 = vector.multi_reduction <maxsi>, %231, %cst_68 [1] : vector<128x128xi32> to vector<128xi32>
    %233 = vector.shape_cast %232 : vector<128xi32> to vector<128x1xi32>
    %c127_i32_69 = arith.constant 127 : i32
    %234 = vector.broadcast %c127_i32_69 : i32 to vector<128x1xi32>
    %235 = arith.andi %233, %234 : vector<128x1xi32>
    %c127_i32_70 = arith.constant 127 : i32
    %236 = vector.broadcast %c127_i32_70 : i32 to vector<128x1xi32>
    %237 = arith.subi %236, %235 : vector<128x1xi32>
    %c-128_i32_71 = arith.constant -128 : i32
    %238 = vector.broadcast %c-128_i32_71 : i32 to vector<128x1xi32>
    %239 = arith.andi %233, %238 : vector<128x1xi32>
    %c0_i32_72 = arith.constant 0 : i32
    %240 = vector.broadcast %c0_i32_72 : i32 to vector<128x1xi32>
    %241 = arith.cmpi slt, %239, %240 : vector<128x1xi32>
    %c-2147483648_i32_73 = arith.constant -2147483648 : i32
    %242 = vector.broadcast %c-2147483648_i32_73 : i32 to vector<128x1xi32>
    %243 = arith.subi %242, %239 : vector<128x1xi32>
    %244 = arith.select %241, %243, %239 : vector<128x1xi1>, vector<128x1xi32>
    %245 = tpu.bitcast %244 : vector<128x1xi32> -> vector<128x1xf32>
    %c7_i32 = arith.constant 7 : i32
    %246 = vector.broadcast %c7_i32 : i32 to vector<128x128xi32>
    %247 = arith.cmpi eq, %32, %246 : vector<128x128xi32>
    %248 = vector.shape_cast %245 : vector<128x1xf32> to vector<128x1xf32>
    %249 = vector.broadcast %248 : vector<128x1xf32> to vector<128x128xf32>
    %250 = arith.select %247, %249, %222 : vector<128x128xi1>, vector<128x128xf32>
    %c7_i32_74 = arith.constant 7 : i32
    %251 = vector.broadcast %c7_i32_74 : i32 to vector<128x128xi32>
    %252 = arith.cmpi eq, %33, %251 : vector<128x128xi32>
    %253 = vector.shape_cast %237 : vector<128x1xi32> to vector<128x1xi32>
    %254 = vector.broadcast %253 : vector<128x1xi32> to vector<128x128xi32>
    %255 = arith.select %252, %254, %227 : vector<128x128xi1>, vector<128x128xi32>
    %c8_i32 = arith.constant 8 : i32
    %256 = vector.broadcast %c8_i32 : i32 to vector<128x128xi32>
    %257 = arith.cmpi eq, %32, %256 : vector<128x128xi32>
    %258 = vector.shape_cast %12 : vector<128x1xf32> to vector<128x1xf32>
    %259 = vector.broadcast %258 : vector<128x1xf32> to vector<128x128xf32>
    %260 = arith.select %257, %259, %250 : vector<128x128xi1>, vector<128x128xf32>
    %c0_75 = arith.constant 0 : index
    %c0_76 = arith.constant 0 : index
    %261 = vector.load %arg4[%c0_75, %c0_76] : memref<128x128xf32, #tpu.memory_space<vmem>>, vector<128x128xf32>
    tpu.vector_store %arg4[%c0_75, %c0_76], %260 {strides = array<i32>} : memref<128x128xf32, #tpu.memory_space<vmem>>, vector<128x128xf32>,
    %c0_77 = arith.constant 0 : index
    %c0_78 = arith.constant 0 : index
    %262 = vector.load %arg5[%c0_77, %c0_78] : memref<128x128xi32, #tpu.memory_space<vmem>>, vector<128x128xi32>
    tpu.vector_store %arg5[%c0_77, %c0_78], %255 {strides = array<i32>} : memref<128x128xi32, #tpu.memory_space<vmem>>, vector<128x128xi32>,
    return
  }
  func.func @transform_0(%arg0: i32) -> (i32, i32) {
    %c0_i32 = arith.constant 0 : i32
    %c0_i32_0 = arith.constant 0 : i32
    return %arg0, %c0_i32 : i32, i32
  }
  func.func @transform_1(%arg0: i32) -> (i32, i32) {
    %c0_i32 = arith.constant 0 : i32
    %c0_i32_0 = arith.constant 0 : i32
    %c0_i32_1 = arith.constant 0 : i32
    return %c0_i32, %c0_i32_0 : i32, i32
  }
  func.func @transform_2(%arg0: i32) -> (i32, i32) {
    %c0_i32 = arith.constant 0 : i32
    %c0_i32_0 = arith.constant 0 : i32
    return %arg0, %c0_i32 : i32, i32
  }
  func.func @transform_3(%arg0: i32) -> (i32, i32) {
    %c0_i32 = arith.constant 0 : i32
    %c0_i32_0 = arith.constant 0 : i32
    return %arg0, %c0_i32 : i32, i32
  }
  func.func @transform_4(%arg0: i32) -> (i32, i32) {
    %c0_i32 = arith.constant 0 : i32
    %c0_i32_0 = arith.constant 0 : i32
    return %arg0, %c0_i32 : i32, i32
  }
}

</mosaic_0001>

<llo_original>
// kernel: tpu_custom_call.1
$region0: #{tpu_custom_call.1}
  #allocation0 [shape = 'u32[]', space=smem, size = 0x4, offset = 0x4, fixed_abs, tag = 'smem constant byte address 0x4 - core index']
  #allocation1 [shape = 'u32[144,128]{1,0:T(1,128)}', space=vmem, size = 0x12000, scoped, tag = 'internal scratch']
  %s0 = inlined_call_operand.vmem [shape: f32[128,32], index: 0, kind: input, shape index: {}]
  %s1 = inlined_call_operand.vmem [shape: bf16[32,128], index: 1, kind: input, shape index: {}]
  %s2 = inlined_call_operand.vmem [shape: f32[128,32], index: 2, kind: output, shape index: {0}]
  %s3 = inlined_call_operand.hbm [shape: f32[128,128], index: 3, kind: output, shape index: {1}]
  %s4 = inlined_call_operand.hbm [shape: s32[128,128], index: 4, kind: output, shape index: {2}]
  %5 = xla_tuple %s2, %s3, %s4
  %s6 = sld [smem:[#allocation0]]
  $region34: #{tpu_custom_call.1} parent=0
    _
  %s8 = ssub.s32 1, %s6
  %s9 = scalar_select 0, %s8, %s6
  $region1: #{tpu_custom_call.1} parent=0
    #allocation2 [shape = 'u8[65536]{0}', space=vmem, size = 0x10000, scoped, tag = 'output window, operand 1, single buffered']
    #allocation3 [shape = 's32[1]{0}', space=sflag, size = 0x4, scoped, tag = 'scoped memory for tpu_custom_call.1']
    #allocation4 [shape = 'u8[65536]{0}', space=vmem, size = 0x10000, scoped, tag = 'output window, operand 2, single buffered']
    #allocation5 [shape = 's32[1]{0}', space=sflag, size = 0x4, scoped, tag = 'scoped memory for tpu_custom_call.1']
    %10 = vsyncpa [#allocation3], 0
    %11 = vsyncpa [#allocation5], 0
    // Predicated region
    $region2: #{tpu_custom_call.1} parent=1 // pred_check
      _
    $region3: #{tpu_custom_call.1} parent=1 // pred_check_branch
      %13 = sbr.rel (0) target = $region5
    $region4: #{tpu_custom_call.1} parent=1 // pred_region
      _
    $region5: #{tpu_custom_call.1} parent=1 // pred_fallthru
      _
    // Predicated region
    $region6: #{tpu_custom_call.1} parent=1 // pred_check
      _
    $region7: #{tpu_custom_call.1} parent=1 // pred_check_branch
      %15 = sbr.rel (0) target = $region9
    $region8: #{tpu_custom_call.1} parent=1 // pred_region
      _
    $region9: #{tpu_custom_call.1} parent=1 // pred_fallthru
      _
    %v17 = vld [vmem:[%s0] sm:$0xff]
    %v18 = vld [vmem:[%s0 + $0x8] sm:$0xff]
    %v19 = vld [vmem:[%s0 + $0x10] sm:$0xff]
    %v20 = vld [vmem:[%s0 + $0x18] sm:$0xff]
    %v21 = vld [vmem:[%s0 + $0x20] sm:$0xff]
    %v22 = vld [vmem:[%s0 + $0x28] sm:$0xff]
    %v23 = vld [vmem:[%s0 + $0x30] sm:$0xff]
    %v24 = vld [vmem:[%s0 + $0x38] sm:$0xff]
    %v25 = vld [vmem:[%s0 + $0x40] sm:$0xff]
    %v26 = vld [vmem:[%s0 + $0x48] sm:$0xff]
    %v27 = vld [vmem:[%s0 + $0x50] sm:$0xff]
    %v28 = vld [vmem:[%s0 + $0x58] sm:$0xff]
    %v29 = vld [vmem:[%s0 + $0x60] sm:$0xff]
    %v30 = vld [vmem:[%s0 + $0x68] sm:$0xff]
    %v31 = vld [vmem:[%s0 + $0x70] sm:$0xff]
    %v32 = vld [vmem:[%s0 + $0x78] sm:$0xff]
    %v33 = vmul.f32 %v17, %v17
    %v34 = vmul.f32 %v18, %v18
    %v35 = vmul.f32 %v19, %v19
    %v36 = vmul.f32 %v20, %v20
    %v37 = vmul.f32 %v21, %v21
    %v38 = vmul.f32 %v22, %v22
    %v39 = vmul.f32 %v23, %v23
    %v40 = vmul.f32 %v24, %v24
    %v41 = vmul.f32 %v25, %v25
    %v42 = vmul.f32 %v26, %v26
    %v43 = vmul.f32 %v27, %v27
    %v44 = vmul.f32 %v28, %v28
    %v45 = vmul.f32 %v29, %v29
    %v46 = vmul.f32 %v30, %v30
    %v47 = vmul.f32 %v31, %v31
    %v48 = vmul.f32 %v32, %v32
    %vm49 = vcmask 261120
    %v50 = vsel %vm49, %v33, 0.0
    %51 = vadd.xlane.f32.xlu0 %v50
    %v52 = vpop.xlane.xlu0 %51
    %v53 = vsel %vm49, %v34, 0.0
    %54 = vadd.xlane.f32.xlu0 %v53
    %v55 = vpop.xlane.xlu0 %54
    %v56 = vsel %vm49, %v35, 0.0
    %57 = vadd.xlane.f32.xlu0 %v56
    %v58 = vpop.xlane.xlu0 %57
    %v59 = vsel %vm49, %v36, 0.0
    %60 = vadd.xlane.f32.xlu0 %v59
    %v61 = vpop.xlane.xlu0 %60
    %v62 = vsel %vm49, %v37, 0.0
    %63 = vadd.xlane.f32.xlu0 %v62
    %v64 = vpop.xlane.xlu0 %63
    %v65 = vsel %vm49, %v38, 0.0
    %66 = vadd.xlane.f32.xlu0 %v65
    %v67 = vpop.xlane.xlu0 %66
    %v68 = vsel %vm49, %v39, 0.0
    %69 = vadd.xlane.f32.xlu0 %v68
    %v70 = vpop.xlane.xlu0 %69
    %v71 = vsel %vm49, %v40, 0.0
    %72 = vadd.xlane.f32.xlu0 %v71
    %v73 = vpop.xlane.xlu0 %72
    %v74 = vsel %vm49, %v41, 0.0
    %75 = vadd.xlane.f32.xlu0 %v74
    %v76 = vpop.xlane.xlu0 %75
    %v77 = vsel %vm49, %v42, 0.0
    %78 = vadd.xlane.f32.xlu0 %v77
    %v79 = vpop.xlane.xlu0 %78
    %v80 = vsel %vm49, %v43, 0.0
    %81 = vadd.xlane.f32.xlu0 %v80
    %v82 = vpop.xlane.xlu0 %81
    %v83 = vsel %vm49, %v44, 0.0
    %84 = vadd.xlane.f32.xlu0 %v83
    %v85 = vpop.xlane.xlu0 %84
    %v86 = vsel %vm49, %v45, 0.0
    %87 = vadd.xlane.f32.xlu0 %v86
    %v88 = vpop.xlane.xlu0 %87
    %v89 = vsel %vm49, %v46, 0.0
    %90 = vadd.xlane.f32.xlu0 %v89
    %v91 = vpop.xlane.xlu0 %90
    %v92 = vsel %vm49, %v47, 0.0
    %93 = vadd.xlane.f32.xlu0 %v92
    %v94 = vpop.xlane.xlu0 %93
    %v95 = vsel %vm49, %v48, 0.0
    %96 = vadd.xlane.f32.xlu0 %v95
    %v97 = vpop.xlane.xlu0 %96
    %v98 = vmax.f32 %v52, 1e-24
    %v99 = vmax.f32 %v55, 1e-24
    %v100 = vmax.f32 %v58, 1e-24
    %v101 = vmax.f32 %v61, 1e-24
    %v102 = vmax.f32 %v64, 1e-24
    %v103 = vmax.f32 %v67, 1e-24
    %v104 = vmax.f32 %v70, 1e-24
    %v105 = vmax.f32 %v73, 1e-24
    %v106 = vmax.f32 %v76, 1e-24
    %v107 = vmax.f32 %v79, 1e-24
    %v108 = vmax.f32 %v82, 1e-24
    %v109 = vmax.f32 %v85, 1e-24
    %v110 = vmax.f32 %v88, 1e-24
    %v111 = vmax.f32 %v91, 1e-24
    %v112 = vmax.f32 %v94, 1e-24
    %v113 = vmax.f32 %v97, 1e-24
    %v114 = vrsqrt.pop %v98
    %v115 = vrsqrt.pop %v99
    %v116 = vrsqrt.pop %v100
    %v117 = vrsqrt.pop %v101
    %v118 = vrsqrt.pop %v102
    %v119 = vrsqrt.pop %v103
    %v120 = vrsqrt.pop %v104
    %v121 = vrsqrt.pop %v105
    %v122 = vrsqrt.pop %v106
    %v123 = vrsqrt.pop %v107
    %v124 = vrsqrt.pop %v108
    %v125 = vrsqrt.pop %v109
    %v126 = vrsqrt.pop %v110
    %v127 = vrsqrt.pop %v111
    %v128 = vrsqrt.pop %v112
    %v129 = vrsqrt.pop %v113
    %v130 = vmul.f32 %v17, %v114
    %v131 = vmul.f32 %v18, %v115
    %v132 = vmul.f32 %v19, %v116
    %v133 = vmul.f32 %v20, %v117
    %v134 = vmul.f32 %v21, %v118
    %v135 = vmul.f32 %v22, %v119
    %v136 = vmul.f32 %v23, %v120
    %v137 = vmul.f32 %v24, %v121
    %v138 = vmul.f32 %v25, %v122
    %v139 = vmul.f32 %v26, %v123
    %v140 = vmul.f32 %v27, %v124
    %v141 = vmul.f32 %v28, %v125
    %v142 = vmul.f32 %v29, %v126
    %v143 = vmul.f32 %v30, %v127
    %v144 = vmul.f32 %v31, %v128
    %v145 = vmul.f32 %v32, %v129
    %146 = vst.msk [vmem:[%s2] sm:$0xff] %vm49, %v130
    %147 = vst.msk [vmem:[%s2 + $0x8] sm:$0xff] %vm49, %v131
    %148 = vst.msk [vmem:[%s2 + $0x10] sm:$0xff] %vm49, %v132
    %149 = vst.msk [vmem:[%s2 + $0x18] sm:$0xff] %vm49, %v133
    %150 = vst.msk [vmem:[%s2 + $0x20] sm:$0xff] %vm49, %v134
    %151 = vst.msk [vmem:[%s2 + $0x28] sm:$0xff] %vm49, %v135
    %152 = vst.msk [vmem:[%s2 + $0x30] sm:$0xff] %vm49, %v136
    %153 = vst.msk [vmem:[%s2 + $0x38] sm:$0xff] %vm49, %v137
    %154 = vst.msk [vmem:[%s2 + $0x40] sm:$0xff] %vm49, %v138
    %155 = vst.msk [vmem:[%s2 + $0x48] sm:$0xff] %vm49, %v139
    %156 = vst.msk [vmem:[%s2 + $0x50] sm:$0xff] %vm49, %v140
    %157 = vst.msk [vmem:[%s2 + $0x58] sm:$0xff] %vm49, %v141
    %158 = vst.msk [vmem:[%s2 + $0x60] sm:$0xff] %vm49, %v142
    %159 = vst.msk [vmem:[%s2 + $0x68] sm:$0xff] %vm49, %v143
    %160 = vst.msk [vmem:[%s2 + $0x70] sm:$0xff] %vm49, %v144
    %161 = vst.msk [vmem:[%s2 + $0x78] sm:$0xff] %vm49, %v145
    %v162 = vmul.f32 %v130, %v130
    %v163 = vmul.f32 %v131, %v131
    %v164 = vmul.f32 %v132, %v132
    %v165 = vmul.f32 %v133, %v133
    %v166 = vmul.f32 %v134, %v134
    %v167 = vmul.f32 %v135, %v135
    %v168 = vmul.f32 %v136, %v136
    %v169 = vmul.f32 %v137, %v137
    %v170 = vmul.f32 %v138, %v138
    %v171 = vmul.f32 %v139, %v139
    %v172 = vmul.f32 %v140, %v140
    %v173 = vmul.f32 %v141, %v141
    %v174 = vmul.f32 %v142, %v142
    %v175 = vmul.f32 %v143, %v143
    %v176 = vmul.f32 %v144, %v144
    %v177 = vmul.f32 %v145, %v145
    %v178 = vsel %vm49, %v162, 0.0
    %179 = vadd.xlane.f32.xlu0 %v178
    %v180 = vpop.xlane.xlu0 %179
    %v181 = vsel %vm49, %v163, 0.0
    %182 = vadd.xlane.f32.xlu0 %v181
    %v183 = vpop.xlane.xlu0 %182
    %v184 = vsel %vm49, %v164, 0.0
    %185 = vadd.xlane.f32.xlu0 %v184
    %v186 = vpop.xlane.xlu0 %185
    %v187 = vsel %vm49, %v165, 0.0
    %188 = vadd.xlane.f32.xlu0 %v187
    %v189 = vpop.xlane.xlu0 %188
    %v190 = vsel %vm49, %v166, 0.0
    %191 = vadd.xlane.f32.xlu0 %v190
    %v192 = vpop.xlane.xlu0 %191
    %v193 = vsel %vm49, %v167, 0.0
    %194 = vadd.xlane.f32.xlu0 %v193
    %v195 = vpop.xlane.xlu0 %194
    %v196 = vsel %vm49, %v168, 0.0
    %197 = vadd.xlane.f32.xlu0 %v196
    %v198 = vpop.xlane.xlu0 %197
    %v199 = vsel %vm49, %v169, 0.0
    %200 = vadd.xlane.f32.xlu0 %v199
    %v201 = vpop.xlane.xlu0 %200
    %v202 = vsel %vm49, %v170, 0.0
    %203 = vadd.xlane.f32.xlu0 %v202
    %v204 = vpop.xlane.xlu0 %203
    %v205 = vsel %vm49, %v171, 0.0
    %206 = vadd.xlane.f32.xlu0 %v205
    %v207 = vpop.xlane.xlu0 %206
    %v208 = vsel %vm49, %v172, 0.0
    %209 = vadd.xlane.f32.xlu0 %v208
    %v210 = vpop.xlane.xlu0 %209
    %v211 = vsel %vm49, %v173, 0.0
    %212 = vadd.xlane.f32.xlu0 %v211
    %v213 = vpop.xlane.xlu0 %212
    %v214 = vsel %vm49, %v174, 0.0
    %215 = vadd.xlane.f32.xlu0 %v214
    %v216 = vpop.xlane.xlu0 %215
    %v217 = vsel %vm49, %v175, 0.0
    %218 = vadd.xlane.f32.xlu0 %v217
    %v219 = vpop.xlane.xlu0 %218
    %v220 = vsel %vm49, %v176, 0.0
    %221 = vadd.xlane.f32.xlu0 %v220
    %v222 = vpop.xlane.xlu0 %221
    %v223 = vsel %vm49, %v177, 0.0
    %224 = vadd.xlane.f32.xlu0 %v223
    %v225 = vpop.xlane.xlu0 %224
    %v226 = vpack.c.bf16 %v131, %v130
    %v227 = vpack.c.bf16 %v133, %v132
    %v228 = vpack.c.bf16 %v135, %v134
    %v229 = vpack.c.bf16 %v137, %v136
    %v230 = vpack.c.bf16 %v139, %v138
    %v231 = vpack.c.bf16 %v141, %v140
    %v232 = vpack.c.bf16 %v143, %v142
    %v233 = vpack.c.bf16 %v145, %v144
    %v234 = vld [vmem:[%s1] sm:$0xf]
    %v235 = vld [vmem:[%s1 + $0x4] sm:$0xf]
    %v236 = vld [vmem:[%s1 + $0x8] sm:$0xf]
    %v237 = vld [vmem:[%s1 + $0xc] sm:$0xf]
    %v242 = vunpack.c.l.b16 %v234
    %v243 = vunpack.c.l.b16 %v235
    %v244 = vunpack.c.l.b16 %v236
    %v245 = vunpack.c.l.b16 %v237
    %v246 = vpack.c.b16 %v243, %v242
    %v247 = vpack.c.b16 %v245, %v244
    %v251 = vsel %vm49, %v226, 0
    %v254 = vsel %vm49, %v227, 0
    %v257 = vsel %vm49, %v228, 0
    %v260 = vsel %vm49, %v229, 0
    %v263 = vsel %vm49, %v230, 0
    %v266 = vsel %vm49, %v231, 0
    %v269 = vsel %vm49, %v232, 0
    %v272 = vsel %vm49, %v233, 0
    %274 = vmatprep.subr.bf16.mxu0 0
    %275 = vmatpush1.bf16.msra.mxu0 0
    %276 = vmatprep.subr.bf16.mxu0 0
    %277 = vmatpush1.bf16.msra.mxu0 0
    %278 = vmatprep.subr.bf16.mxu0 0
    %279 = vmatpush1.bf16.msra.mxu0 0
    %280 = vmatprep.subr.bf16.mxu0 0
    %281 = vmatpush1.bf16.msra.mxu0 0
    %282 = vmatprep.subr.bf16.mxu0 0
    %283 = vmatpush1.bf16.msra.mxu0 0
    %284 = vmatprep.subr.bf16.mxu0 0
    %285 = vmatpush1.bf16.msra.mxu0 0
    %286 = vmatprep.subr.bf16.mxu0 0
    %287 = vmatpush1.bf16.msra.mxu0 %v247
    %288 = vmatprep.subr.bf16.mxu0 0
    %289 = vmatpush1.bf16.msra.mxu0 %v246
    %290 = vmatprep.subr.bf16.mxu0 0
    %291 = vmatpush2.bf16.msra.mxu0 0
    %292 = vmatprep.subr.bf16.mxu0 0
    %293 = vmatpush2.bf16.msra.mxu0 0
    %294 = vmatprep.subr.bf16.mxu0 0
    %295 = vmatpush2.bf16.msra.mxu0 0
    %296 = vmatprep.subr.bf16.mxu0 0
    %297 = vmatpush2.bf16.msra.mxu0 0
    %298 = vmatprep.subr.bf16.mxu0 0
    %299 = vmatpush2.bf16.msra.mxu0 0
    %300 = vmatprep.subr.bf16.mxu0 0
    %301 = vmatpush2.bf16.msra.mxu0 0
    %302 = vmatprep.subr.bf16.mxu0 0
    %303 = vmatpush2.bf16.msra.mxu0 0
    %304 = vmatprep.subr.bf16.mxu0 0
    %305 = vmatpush2.bf16.msra.mxu0 0
    %306 = vmatprep.mubr.bf16.mxu0 0
    %307 = vmatmul.mubr.bf16.gmra.mxu0 %v251
    %v308 = vpop.f32.mrf.mxu0
    %v309 = vadd.f32 0.0, %v308
    %v310 = vpop.f32.mrf.mxu0
    %v311 = vpop.f32.mrf.mxu0
    %v312 = vadd.f32 0.0, %v311
    %v313 = vpop.f32.mrf.mxu0
    %314 = vmatprep.mubr.bf16.mxu0 0
    %315 = vmatmul.mubr.bf16.gmra.mxu0 %v254
    %v316 = vpop.f32.mrf.mxu0
    %v317 = vadd.f32 0.0, %v316
    %v318 = vpop.f32.mrf.mxu0
    %v319 = vpop.f32.mrf.mxu0
    %v320 = vadd.f32 0.0, %v319
    %v321 = vpop.f32.mrf.mxu0
    %322 = vmatprep.mubr.bf16.mxu0 0
    %323 = vmatmul.mubr.bf16.gmra.mxu0 %v257
    %v324 = vpop.f32.mrf.mxu0
    %v325 = vadd.f32 0.0, %v324
    %v326 = vpop.f32.mrf.mxu0
    %v327 = vpop.f32.mrf.mxu0
    %v328 = vadd.f32 0.0, %v327
    %v329 = vpop.f32.mrf.mxu0
    %330 = vmatprep.mubr.bf16.mxu0 0
    %331 = vmatmul.mubr.bf16.gmra.mxu0 %v260
    %v332 = vpop.f32.mrf.mxu0
    %v333 = vadd.f32 0.0, %v332
    %v334 = vpop.f32.mrf.mxu0
    %v335 = vpop.f32.mrf.mxu0
    %v336 = vadd.f32 0.0, %v335
    %v337 = vpop.f32.mrf.mxu0
    %338 = vmatprep.mubr.bf16.mxu0 0
    %339 = vmatmul.mubr.bf16.gmra.mxu0 %v263
    %v340 = vpop.f32.mrf.mxu0
    %v341 = vadd.f32 0.0, %v340
    %v342 = vpop.f32.mrf.mxu0
    %v343 = vpop.f32.mrf.mxu0
    %v344 = vadd.f32 0.0, %v343
    %v345 = vpop.f32.mrf.mxu0
    %346 = vmatprep.mubr.bf16.mxu0 0
    %347 = vmatmul.mubr.bf16.gmra.mxu0 %v266
    %v348 = vpop.f32.mrf.mxu0
    %v349 = vadd.f32 0.0, %v348
    %v350 = vpop.f32.mrf.mxu0
    %v351 = vpop.f32.mrf.mxu0
    %v352 = vadd.f32 0.0, %v351
    %v353 = vpop.f32.mrf.mxu0
    %354 = vmatprep.mubr.bf16.mxu0 0
    %355 = vmatmul.mubr.bf16.gmra.mxu0 %v269
    %v356 = vpop.f32.mrf.mxu0
    %v357 = vadd.f32 0.0, %v356
    %v358 = vpop.f32.mrf.mxu0
    %v359 = vpop.f32.mrf.mxu0
    %v360 = vadd.f32 0.0, %v359
    %v361 = vpop.f32.mrf.mxu0
    %362 = vmatprep.mubr.bf16.mxu0 0
    %363 = vmatmul.mubr.bf16.gmra.mxu0 %v272
    %v364 = vpop.f32.mrf.mxu0
    %v365 = vadd.f32 0.0, %v364
    %v366 = vpop.f32.mrf.mxu0
    %v367 = vpop.f32.mrf.mxu0
    %v368 = vadd.f32 0.0, %v367
    %v369 = vpop.f32.mrf.mxu0
    %370 = vdwg.mxu0
    %v371 = vlaneseq
    %v372 = vand.u32 %v371, 127
    %vm389 = vcmp.lt.s32.totalorder %v309, 0
    %vm390 = vcmp.lt.s32.totalorder %v312, 0
    %vm391 = vcmp.lt.s32.totalorder %v317, 0
    %vm392 = vcmp.lt.s32.totalorder %v320, 0
    %vm393 = vcmp.lt.s32.totalorder %v325, 0
    %vm394 = vcmp.lt.s32.totalorder %v328, 0
    %vm395 = vcmp.lt.s32.totalorder %v333, 0
    %vm396 = vcmp.lt.s32.totalorder %v336, 0
    %vm397 = vcmp.lt.s32.totalorder %v341, 0
    %vm398 = vcmp.lt.s32.totalorder %v344, 0
    %vm399 = vcmp.lt.s32.totalorder %v349, 0
    %vm400 = vcmp.lt.s32.totalorder %v352, 0
    %vm401 = vcmp.lt.s32.totalorder %v357, 0
    %vm402 = vcmp.lt.s32.totalorder %v360, 0
    %vm403 = vcmp.lt.s32.totalorder %v365, 0
    %vm404 = vcmp.lt.s32.totalorder %v368, 0
    %v405 = vsub.s32 2147483648, %v309
    %v406 = vsub.s32 2147483648, %v312
    %v407 = vsub.s32 2147483648, %v317
    %v408 = vsub.s32 2147483648, %v320
    %v409 = vsub.s32 2147483648, %v325
    %v410 = vsub.s32 2147483648, %v328
    %v411 = vsub.s32 2147483648, %v333
    %v412 = vsub.s32 2147483648, %v336
    %v413 = vsub.s32 2147483648, %v341
    %v414 = vsub.s32 2147483648, %v344
    %v415 = vsub.s32 2147483648, %v349
    %v416 = vsub.s32 2147483648, %v352
    %v417 = vsub.s32 2147483648, %v357
    %v418 = vsub.s32 2147483648, %v360
    %v419 = vsub.s32 2147483648, %v365
    %v420 = vsub.s32 2147483648, %v368
    %v421 = vsel %vm389, %v405, %v309
    %v422 = vsel %vm390, %v406, %v312
    %v423 = vsel %vm391, %v407, %v317
    %v424 = vsel %vm392, %v408, %v320
    %v425 = vsel %vm393, %v409, %v325
    %v426 = vsel %vm394, %v410, %v328
    %v427 = vsel %vm395, %v411, %v333
    %v428 = vsel %vm396, %v412, %v336
    %v429 = vsel %vm397, %v413, %v341
    %v430 = vsel %vm398, %v414, %v344
    %v431 = vsel %vm399, %v415, %v349
    %v432 = vsel %vm400, %v416, %v352
    %v433 = vsel %vm401, %v417, %v357
    %v434 = vsel %vm402, %v418, %v360
    %v435 = vsel %vm403, %v419, %v365
    %v436 = vsel %vm404, %v420, %v368
    %v437 = vand.u32 %v421, 4294967168
    %v438 = vand.u32 %v422, 4294967168
    %v439 = vand.u32 %v423, 4294967168
    %v440 = vand.u32 %v424, 4294967168
    %v441 = vand.u32 %v425, 4294967168
    %v442 = vand.u32 %v426, 4294967168
    %v443 = vand.u32 %v427, 4294967168
    %v444 = vand.u32 %v428, 4294967168
    %v445 = vand.u32 %v429, 4294967168
    %v446 = vand.u32 %v430, 4294967168
    %v447 = vand.u32 %v431, 4294967168
    %v448 = vand.u32 %v432, 4294967168
    %v449 = vand.u32 %v433, 4294967168
    %v450 = vand.u32 %v434, 4294967168
    %v451 = vand.u32 %v435, 4294967168
    %v452 = vand.u32 %v436, 4294967168
    %v453 = vsub.s32 127, %v372
    %v454 = vor.u32 %v437, %v453
    %v455 = vor.u32 %v438, %v453
    %v456 = vor.u32 %v439, %v453
    %v457 = vor.u32 %v440, %v453
    %v458 = vor.u32 %v441, %v453
    %v459 = vor.u32 %v442, %v453
    %v460 = vor.u32 %v443, %v453
    %v461 = vor.u32 %v444, %v453
    %v462 = vor.u32 %v445, %v453
    %v463 = vor.u32 %v446, %v453
    %v464 = vor.u32 %v447, %v453
    %v465 = vor.u32 %v448, %v453
    %v466 = vor.u32 %v449, %v453
    %v467 = vor.u32 %v450, %v453
    %v468 = vor.u32 %v451, %v453
    %v469 = vor.u32 %v452, %v453
    %vm470 = vcmp.lt.s32.totalorder %v372, 64
    %v471 = vsel %vm470, %v454, 2147483648
    %v472 = vsel %vm470, %v455, 2147483648
    %v473 = vsel %vm470, %v456, 2147483648
    %v474 = vsel %vm470, %v457, 2147483648
    %v475 = vsel %vm470, %v458, 2147483648
    %v476 = vsel %vm470, %v459, 2147483648
    %v477 = vsel %vm470, %v460, 2147483648
    %v478 = vsel %vm470, %v461, 2147483648
    %v479 = vsel %vm470, %v462, 2147483648
    %v480 = vsel %vm470, %v463, 2147483648
    %v481 = vsel %vm470, %v464, 2147483648
    %v482 = vsel %vm470, %v465, 2147483648
    %v483 = vsel %vm470, %v466, 2147483648
    %v484 = vsel %vm470, %v467, 2147483648
    %v485 = vsel %vm470, %v468, 2147483648
    %v486 = vsel %vm470, %v469, 2147483648
    %v487 = vand.u32 %v471, 65535
    %v488 = vshra.s32 %v471, 16
    %v489 = vcvt.s32.f32 %v487
    %v490 = vcvt.s32.f32 %v488
    %491 = vmax.xlane.f32.xlu0 %v490
    %v492 = vpop.xlane.xlu0 %491
    %vm493 = vcmp.eq.f32.partialorder %v490, %v492
    %v494 = vsel %vm493, %v489, -inf
    %495 = vmax.xlane.f32.xlu0 %v494
    %v496 = vpop.xlane.xlu0 %495
    %v497 = vcvt.f32.s32 %v496
    %v498 = vcvt.f32.s32 %v492
    %v499 = vshll.u32 %v498, 16
    %v500 = vadd.s32 %v499, %v497
    %v501 = vand.u32 %v472, 65535
    %v502 = vshra.s32 %v472, 16
    %v503 = vcvt.s32.f32 %v501
    %v504 = vcvt.s32.f32 %v502
    %505 = vmax.xlane.f32.xlu0 %v504
    %v506 = vpop.xlane.xlu0 %505
    %vm507 = vcmp.eq.f32.partialorder %v504, %v506
    %v508 = vsel %vm507, %v503, -inf
    %509 = vmax.xlane.f32.xlu0 %v508
    %v510 = vpop.xlane.xlu0 %509
    %v511 = vcvt.f32.s32 %v510
    %v512 = vcvt.f32.s32 %v506
    %v513 = vshll.u32 %v512, 16
    %v514 = vadd.s32 %v513, %v511
    %v515 = vand.u32 %v473, 65535
    %v516 = vshra.s32 %v473, 16
    %v517 = vcvt.s32.f32 %v515
    %v518 = vcvt.s32.f32 %v516
    %519 = vmax.xlane.f32.xlu0 %v518
    %v520 = vpop.xlane.xlu0 %519
    %vm521 = vcmp.eq.f32.partialorder %v518, %v520
    %v522 = vsel %vm521, %v517, -inf
    %523 = vmax.xlane.f32.xlu0 %v522
    %v524 = vpop.xlane.xlu0 %523
    %v525 = vcvt.f32.s32 %v524
    %v526 = vcvt.f32.s32 %v520
    %v527 = vshll.u32 %v526, 16
    %v528 = vadd.s32 %v527, %v525
    %v529 = vand.u32 %v474, 65535
    %v530 = vshra.s32 %v474, 16
    %v531 = vcvt.s32.f32 %v529
    %v532 = vcvt.s32.f32 %v530
    %533 = vmax.xlane.f32.xlu0 %v532
    %v534 = vpop.xlane.xlu0 %533
    %vm535 = vcmp.eq.f32.partialorder %v532, %v534
    %v536 = vsel %vm535, %v531, -inf
    %537 = vmax.xlane.f32.xlu0 %v536
    %v538 = vpop.xlane.xlu0 %537
    %v539 = vcvt.f32.s32 %v538
    %v540 = vcvt.f32.s32 %v534
    %v541 = vshll.u32 %v540, 16
    %v542 = vadd.s32 %v541, %v539
    %v543 = vand.u32 %v475, 65535
    %v544 = vshra.s32 %v475, 16
    %v545 = vcvt.s32.f32 %v543
    %v546 = vcvt.s32.f32 %v544
    %547 = vmax.xlane.f32.xlu0 %v546
    %v548 = vpop.xlane.xlu0 %547
    %vm549 = vcmp.eq.f32.partialorder %v546, %v548
    %v550 = vsel %vm549, %v545, -inf
    %551 = vmax.xlane.f32.xlu0 %v550
    %v552 = vpop.xlane.xlu0 %551
    %v553 = vcvt.f32.s32 %v552
    %v554 = vcvt.f32.s32 %v548
    %v555 = vshll.u32 %v554, 16
    %v556 = vadd.s32 %v555, %v553
    %v557 = vand.u32 %v476, 65535
    %v558 = vshra.s32 %v476, 16
    %v559 = vcvt.s32.f32 %v557
    %v560 = vcvt.s32.f32 %v558
    %561 = vmax.xlane.f32.xlu0 %v560
    %v562 = vpop.xlane.xlu0 %561
    %vm563 = vcmp.eq.f32.partialorder %v560, %v562
    %v564 = vsel %vm563, %v559, -inf
    %565 = vmax.xlane.f32.xlu0 %v564
    %v566 = vpop.xlane.xlu0 %565
    %v567 = vcvt.f32.s32 %v566
    %v568 = vcvt.f32.s32 %v562
    %v569 = vshll.u32 %v568, 16
    %v570 = vadd.s32 %v569, %v567
    %v571 = vand.u32 %v477, 65535
    %v572 = vshra.s32 %v477, 16
    %v573 = vcvt.s32.f32 %v571
    %v574 = vcvt.s32.f32 %v572
    %575 = vmax.xlane.f32.xlu0 %v574
    %v576 = vpop.xlane.xlu0 %575
    %vm577 = vcmp.eq.f32.partialorder %v574, %v576
    %v578 = vsel %vm577, %v573, -inf
    %579 = vmax.xlane.f32.xlu0 %v578
    %v580 = vpop.xlane.xlu0 %579
    %v581 = vcvt.f32.s32 %v580
    %v582 = vcvt.f32.s32 %v576
    %v583 = vshll.u32 %v582, 16
    %v584 = vadd.s32 %v583, %v581
    %v585 = vand.u32 %v478, 65535
    %v586 = vshra.s32 %v478, 16
    %v587 = vcvt.s32.f32 %v585
    %v588 = vcvt.s32.f32 %v586
    %589 = vmax.xlane.f32.xlu0 %v588
    %v590 = vpop.xlane.xlu0 %589
    %vm591 = vcmp.eq.f32.partialorder %v588, %v590
    %v592 = vsel %vm591, %v587, -inf
    %593 = vmax.xlane.f32.xlu0 %v592
    %v594 = vpop.xlane.xlu0 %593
    %v595 = vcvt.f32.s32 %v594
    %v596 = vcvt.f32.s32 %v590
    %v597 = vshll.u32 %v596, 16
    %v598 = vadd.s32 %v597, %v595
    %v599 = vand.u32 %v479, 65535
    %v600 = vshra.s32 %v479, 16
    %v601 = vcvt.s32.f32 %v599
    %v602 = vcvt.s32.f32 %v600
    %603 = vmax.xlane.f32.xlu0 %v602
    %v604 = vpop.xlane.xlu0 %603
    %vm605 = vcmp.eq.f32.partialorder %v602, %v604
    %v606 = vsel %vm605, %v601, -inf
    %607 = vmax.xlane.f32.xlu0 %v606
    %v608 = vpop.xlane.xlu0 %607
    %v609 = vcvt.f32.s32 %v608
    %v610 = vcvt.f32.s32 %v604
    %v611 = vshll.u32 %v610, 16
    %v612 = vadd.s32 %v611, %v609
    %v613 = vand.u32 %v480, 65535
    %v614 = vshra.s32 %v480, 16
    %v615 = vcvt.s32.f32 %v613
    %v616 = vcvt.s32.f32 %v614
    %617 = vmax.xlane.f32.xlu0 %v616
    %v618 = vpop.xlane.xlu0 %617
    %vm619 = vcmp.eq.f32.partialorder %v616, %v618
    %v620 = vsel %vm619, %v615, -inf
    %621 = vmax.xlane.f32.xlu0 %v620
    %v622 = vpop.xlane.xlu0 %621
    %v623 = vcvt.f32.s32 %v622
    %v624 = vcvt.f32.s32 %v618
    %v625 = vshll.u32 %v624, 16
    %v626 = vadd.s32 %v625, %v623
    %v627 = vand.u32 %v481, 65535
    %v628 = vshra.s32 %v481, 16
    %v629 = vcvt.s32.f32 %v627
    %v630 = vcvt.s32.f32 %v628
    %631 = vmax.xlane.f32.xlu0 %v630
    %v632 = vpop.xlane.xlu0 %631
    %vm633 = vcmp.eq.f32.partialorder %v630, %v632
    %v634 = vsel %vm633, %v629, -inf
    %635 = vmax.xlane.f32.xlu0 %v634
    %v636 = vpop.xlane.xlu0 %635
    %v637 = vcvt.f32.s32 %v636
    %v638 = vcvt.f32.s32 %v632
    %v639 = vshll.u32 %v638, 16
    %v640 = vadd.s32 %v639, %v637
    %v641 = vand.u32 %v482, 65535
    %v642 = vshra.s32 %v482, 16
    %v643 = vcvt.s32.f32 %v641
    %v644 = vcvt.s32.f32 %v642
    %645 = vmax.xlane.f32.xlu0 %v644
    %v646 = vpop.xlane.xlu0 %645
    %vm647 = vcmp.eq.f32.partialorder %v644, %v646
    %v648 = vsel %vm647, %v643, -inf
    %649 = vmax.xlane.f32.xlu0 %v648
    %v650 = vpop.xlane.xlu0 %649
    %v651 = vcvt.f32.s32 %v650
    %v652 = vcvt.f32.s32 %v646
    %v653 = vshll.u32 %v652, 16
    %v654 = vadd.s32 %v653, %v651
    %v655 = vand.u32 %v483, 65535
    %v656 = vshra.s32 %v483, 16
    %v657 = vcvt.s32.f32 %v655
    %v658 = vcvt.s32.f32 %v656
    %659 = vmax.xlane.f32.xlu0 %v658
    %v660 = vpop.xlane.xlu0 %659
    %vm661 = vcmp.eq.f32.partialorder %v658, %v660
    %v662 = vsel %vm661, %v657, -inf
    %663 = vmax.xlane.f32.xlu0 %v662
    %v664 = vpop.xlane.xlu0 %663
    %v665 = vcvt.f32.s32 %v664
    %v666 = vcvt.f32.s32 %v660
    %v667 = vshll.u32 %v666, 16
    %v668 = vadd.s32 %v667, %v665
    %v669 = vand.u32 %v484, 65535
    %v670 = vshra.s32 %v484, 16
    %v671 = vcvt.s32.f32 %v669
    %v672 = vcvt.s32.f32 %v670
    %673 = vmax.xlane.f32.xlu0 %v672
    %v674 = vpop.xlane.xlu0 %673
    %vm675 = vcmp.eq.f32.partialorder %v672, %v674
    %v676 = vsel %vm675, %v671, -inf
    %677 = vmax.xlane.f32.xlu0 %v676
    %v678 = vpop.xlane.xlu0 %677
    %v679 = vcvt.f32.s32 %v678
    %v680 = vcvt.f32.s32 %v674
    %v681 = vshll.u32 %v680, 16
    %v682 = vadd.s32 %v681, %v679
    %v683 = vand.u32 %v485, 65535
    %v684 = vshra.s32 %v485, 16
    %v685 = vcvt.s32.f32 %v683
    %v686 = vcvt.s32.f32 %v684
    %687 = vmax.xlane.f32.xlu0 %v686
    %v688 = vpop.xlane.xlu0 %687
    %vm689 = vcmp.eq.f32.partialorder %v686, %v688
    %v690 = vsel %vm689, %v685, -inf
    %691 = vmax.xlane.f32.xlu0 %v690
    %v692 = vpop.xlane.xlu0 %691
    %v693 = vcvt.f32.s32 %v692
    %v694 = vcvt.f32.s32 %v688
    %v695 = vshll.u32 %v694, 16
    %v696 = vadd.s32 %v695, %v693
    %v697 = vand.u32 %v486, 65535
    %v698 = vshra.s32 %v486, 16
    %v699 = vcvt.s32.f32 %v697
    %v700 = vcvt.s32.f32 %v698
    %701 = vmax.xlane.f32.xlu0 %v700
    %v702 = vpop.xlane.xlu0 %701
    %vm703 = vcmp.eq.f32.partialorder %v700, %v702
    %v704 = vsel %vm703, %v699, -inf
    %705 = vmax.xlane.f32.xlu0 %v704
    %v706 = vpop.xlane.xlu0 %705
    %v707 = vcvt.f32.s32 %v706
    %v708 = vcvt.f32.s32 %v702
    %v709 = vshll.u32 %v708, 16
    %v710 = vadd.s32 %v709, %v707
    %v711 = vand.u32 %v500, 127
    %v712 = vand.u32 %v514, 127
    %v713 = vand.u32 %v528, 127
    %v714 = vand.u32 %v542, 127
    %v715 = vand.u32 %v556, 127
    %v716 = vand.u32 %v570, 127
    %v717 = vand.u32 %v584, 127
    %v718 = vand.u32 %v598, 127
    %v719 = vand.u32 %v612, 127
    %v720 = vand.u32 %v626, 127
    %v721 = vand.u32 %v640, 127
    %v722 = vand.u32 %v654, 127
    %v723 = vand.u32 %v668, 127
    %v724 = vand.u32 %v682, 127
    %v725 = vand.u32 %v696, 127
    %v726 = vand.u32 %v710, 127
    %v727 = vsub.s32 127, %v711
    %v728 = vsub.s32 127, %v712
    %v729 = vsub.s32 127, %v713
    %v730 = vsub.s32 127, %v714
    %v731 = vsub.s32 127, %v715
    %v732 = vsub.s32 127, %v716
    %v733 = vsub.s32 127, %v717
    %v734 = vsub.s32 127, %v718
    %v735 = vsub.s32 127, %v719
    %v736 = vsub.s32 127, %v720
    %v737 = vsub.s32 127, %v721
    %v738 = vsub.s32 127, %v722
    %v739 = vsub.s32 127, %v723
    %v740 = vsub.s32 127, %v724
    %v741 = vsub.s32 127, %v725
    %v742 = vsub.s32 127, %v726
    %v743 = vand.u32 %v500, 4294967168
    %v744 = vand.u32 %v514, 4294967168
    %v745 = vand.u32 %v528, 4294967168
    %v746 = vand.u32 %v542, 4294967168
    %v747 = vand.u32 %v556, 4294967168
    %v748 = vand.u32 %v570, 4294967168
    %v749 = vand.u32 %v584, 4294967168
    %v750 = vand.u32 %v598, 4294967168
    %v751 = vand.u32 %v612, 4294967168
    %v752 = vand.u32 %v626, 4294967168
    %v753 = vand.u32 %v640, 4294967168
    %v754 = vand.u32 %v654, 4294967168
    %v755 = vand.u32 %v668, 4294967168
    %v756 = vand.u32 %v682, 4294967168
    %v757 = vand.u32 %v696, 4294967168
    %v758 = vand.u32 %v710, 4294967168
    %vm759 = vcmp.lt.s32.totalorder %v743, 0
    %vm760 = vcmp.lt.s32.totalorder %v744, 0
    %vm761 = vcmp.lt.s32.totalorder %v745, 0
    %vm762 = vcmp.lt.s32.totalorder %v746, 0
    %vm763 = vcmp.lt.s32.totalorder %v747, 0
    %vm764 = vcmp.lt.s32.totalorder %v748, 0
    %vm765 = vcmp.lt.s32.totalorder %v749, 0
    %vm766 = vcmp.lt.s32.totalorder %v750, 0
    %vm767 = vcmp.lt.s32.totalorder %v751, 0
    %vm768 = vcmp.lt.s32.totalorder %v752, 0
    %vm769 = vcmp.lt.s32.totalorder %v753, 0
    %vm770 = vcmp.lt.s32.totalorder %v754, 0
    %vm771 = vcmp.lt.s32.totalorder %v755, 0
    %vm772 = vcmp.lt.s32.totalorder %v756, 0
    %vm773 = vcmp.lt.s32.totalorder %v757, 0
    %vm774 = vcmp.lt.s32.totalorder %v758, 0
    %v775 = vsub.s32 2147483648, %v743
    %v776 = vsub.s32 2147483648, %v744
    %v777 = vsub.s32 2147483648, %v745
    %v778 = vsub.s32 2147483648, %v746
    %v779 = vsub.s32 2147483648, %v747
    %v780 = vsub.s32 2147483648, %v748
    %v781 = vsub.s32 2147483648, %v749
    %v782 = vsub.s32 2147483648, %v750
    %v783 = vsub.s32 2147483648, %v751
    %v784 = vsub.s32 2147483648, %v752
    %v785 = vsub.s32 2147483648, %v753
    %v786 = vsub.s32 2147483648, %v754
    %v787 = vsub.s32 2147483648, %v755
    %v788 = vsub.s32 2147483648, %v756
    %v789 = vsub.s32 2147483648, %v757
    %v790 = vsub.s32 2147483648, %v758
    %v791 = vsel %vm759, %v775, %v743
    %v792 = vsel %vm760, %v776, %v744
    %v793 = vsel %vm761, %v777, %v745
    %v794 = vsel %vm762, %v778, %v746
    %v795 = vsel %vm763, %v779, %v747
    %v796 = vsel %vm764, %v780, %v748
    %v797 = vsel %vm765, %v781, %v749
    %v798 = vsel %vm766, %v782, %v750
    %v799 = vsel %vm767, %v783, %v751
    %v800 = vsel %vm768, %v784, %v752
    %v801 = vsel %vm769, %v785, %v753
    %v802 = vsel %vm770, %v786, %v754
    %v803 = vsel %vm771, %v787, %v755
    %v804 = vsel %vm772, %v788, %v756
    %v805 = vsel %vm773, %v789, %v757
    %v806 = vsel %vm774, %v790, %v758
    %vm823 = vcmp.eq.s32.totalorder %v372, 0
    %v824 = vsel %vm823, %v791, 0.0
    %v825 = vsel %vm823, %v792, 0.0
    %v826 = vsel %vm823, %v793, 0.0
    %v827 = vsel %vm823, %v794, 0.0
    %v828 = vsel %vm823, %v795, 0.0
    %v829 = vsel %vm823, %v796, 0.0
    %v830 = vsel %vm823, %v797, 0.0
    %v831 = vsel %vm823, %v798, 0.0
    %v832 = vsel %vm823, %v799, 0.0
    %v833 = vsel %vm823, %v800, 0.0
    %v834 = vsel %vm823, %v801, 0.0
    %v835 = vsel %vm823, %v802, 0.0
    %v836 = vsel %vm823, %v803, 0.0
    %v837 = vsel %vm823, %v804, 0.0
    %v838 = vsel %vm823, %v805, 0.0
    %v839 = vsel %vm823, %v806, 0.0
    %v840 = vsel %vm823, %v727, 0
    %v841 = vsel %vm823, %v728, 0
    %v842 = vsel %vm823, %v729, 0
    %v843 = vsel %vm823, %v730, 0
    %v844 = vsel %vm823, %v731, 0
    %v845 = vsel %vm823, %v732, 0
    %v846 = vsel %vm823, %v733, 0
    %v847 = vsel %vm823, %v734, 0
    %v848 = vsel %vm823, %v735, 0
    %v849 = vsel %vm823, %v736, 0
    %v850 = vsel %vm823, %v737, 0
    %v851 = vsel %vm823, %v738, 0
    %v852 = vsel %vm823, %v739, 0
    %v853 = vsel %vm823, %v740, 0
    %v854 = vsel %vm823, %v741, 0
    %v855 = vsel %vm823, %v742, 0
    %vm856 = vcmp.eq.s32.totalorder %v372, %v727
    %vm857 = vcmp.eq.s32.totalorder %v372, %v728
    %vm858 = vcmp.eq.s32.totalorder %v372, %v729
    %vm859 = vcmp.eq.s32.totalorder %v372, %v730
    %vm860 = vcmp.eq.s32.totalorder %v372, %v731
    %vm861 = vcmp.eq.s32.totalorder %v372, %v732
    %vm862 = vcmp.eq.s32.totalorder %v372, %v733
    %vm863 = vcmp.eq.s32.totalorder %v372, %v734
    %vm864 = vcmp.eq.s32.totalorder %v372, %v735
    %vm865 = vcmp.eq.s32.totalorder %v372, %v736
    %vm866 = vcmp.eq.s32.totalorder %v372, %v737
    %vm867 = vcmp.eq.s32.totalorder %v372, %v738
    %vm868 = vcmp.eq.s32.totalorder %v372, %v739
    %vm869 = vcmp.eq.s32.totalorder %v372, %v740
    %vm870 = vcmp.eq.s32.totalorder %v372, %v741
    %vm871 = vcmp.eq.s32.totalorder %v372, %v742
    %v872 = vsel %vm856, 2147483648, %v471
    %v873 = vsel %vm857, 2147483648, %v472
    %v874 = vsel %vm858, 2147483648, %v473
    %v875 = vsel %vm859, 2147483648, %v474
    %v876 = vsel %vm860, 2147483648, %v475
    %v877 = vsel %vm861, 2147483648, %v476
    %v878 = vsel %vm862, 2147483648, %v477
    %v879 = vsel %vm863, 2147483648, %v478
    %v880 = vsel %vm864, 2147483648, %v479
    %v881 = vsel %vm865, 2147483648, %v480
    %v882 = vsel %vm866, 2147483648, %v481
    %v883 = vsel %vm867, 2147483648, %v482
    %v884 = vsel %vm868, 2147483648, %v483
    %v885 = vsel %vm869, 2147483648, %v484
    %v886 = vsel %vm870, 2147483648, %v485
    %v887 = vsel %vm871, 2147483648, %v486
    %v888 = vand.u32 %v872, 65535
    %v889 = vshra.s32 %v872, 16
    %v890 = vcvt.s32.f32 %v888
    %v891 = vcvt.s32.f32 %v889
    %892 = vmax.xlane.f32.xlu0 %v891
    %v893 = vpop.xlane.xlu0 %892
    %vm894 = vcmp.eq.f32.partialorder %v891, %v893
    %v895 = vsel %vm894, %v890, -inf
    %896 = vmax.xlane.f32.xlu0 %v895
    %v897 = vpop.xlane.xlu0 %896
    %v898 = vcvt.f32.s32 %v897
    %v899 = vcvt.f32.s32 %v893
    %v900 = vshll.u32 %v899, 16
    %v901 = vadd.s32 %v900, %v898
    %v902 = vand.u32 %v873, 65535
    %v903 = vshra.s32 %v873, 16
    %v904 = vcvt.s32.f32 %v902
    %v905 = vcvt.s32.f32 %v903
    %906 = vmax.xlane.f32.xlu0 %v905
    %v907 = vpop.xlane.xlu0 %906
    %vm908 = vcmp.eq.f32.partialorder %v905, %v907
    %v909 = vsel %vm908, %v904, -inf
    %910 = vmax.xlane.f32.xlu0 %v909
    %v911 = vpop.xlane.xlu0 %910
    %v912 = vcvt.f32.s32 %v911
    %v913 = vcvt.f32.s32 %v907
    %v914 = vshll.u32 %v913, 16
    %v915 = vadd.s32 %v914, %v912
    %v916 = vand.u32 %v874, 65535
    %v917 = vshra.s32 %v874, 16
    %v918 = vcvt.s32.f32 %v916
    %v919 = vcvt.s32.f32 %v917
    %920 = vmax.xlane.f32.xlu0 %v919
    %v921 = vpop.xlane.xlu0 %920
    %vm922 = vcmp.eq.f32.partialorder %v919, %v921
    %v923 = vsel %vm922, %v918, -inf
    %924 = vmax.xlane.f32.xlu0 %v923
    %v925 = vpop.xlane.xlu0 %924
    %v926 = vcvt.f32.s32 %v925
    %v927 = vcvt.f32.s32 %v921
    %v928 = vshll.u32 %v927, 16
    %v929 = vadd.s32 %v928, %v926
    %v930 = vand.u32 %v875, 65535
    %v931 = vshra.s32 %v875, 16
    %v932 = vcvt.s32.f32 %v930
    %v933 = vcvt.s32.f32 %v931
    %934 = vmax.xlane.f32.xlu0 %v933
    %v935 = vpop.xlane.xlu0 %934
    %vm936 = vcmp.eq.f32.partialorder %v933, %v935
    %v937 = vsel %vm936, %v932, -inf
    %938 = vmax.xlane.f32.xlu0 %v937
    %v939 = vpop.xlane.xlu0 %938
    %v940 = vcvt.f32.s32 %v939
    %v941 = vcvt.f32.s32 %v935
    %v942 = vshll.u32 %v941, 16
    %v943 = vadd.s32 %v942, %v940
    %v944 = vand.u32 %v876, 65535
    %v945 = vshra.s32 %v876, 16
    %v946 = vcvt.s32.f32 %v944
    %v947 = vcvt.s32.f32 %v945
    %948 = vmax.xlane.f32.xlu0 %v947
    %v949 = vpop.xlane.xlu0 %948
    %vm950 = vcmp.eq.f32.partialorder %v947, %v949
    %v951 = vsel %vm950, %v946, -inf
    %952 = vmax.xlane.f32.xlu0 %v951
    %v953 = vpop.xlane.xlu0 %952
    %v954 = vcvt.f32.s32 %v953
    %v955 = vcvt.f32.s32 %v949
    %v956 = vshll.u32 %v955, 16
    %v957 = vadd.s32 %v956, %v954
    %v958 = vand.u32 %v877, 65535
    %v959 = vshra.s32 %v877, 16
    %v960 = vcvt.s32.f32 %v958
    %v961 = vcvt.s32.f32 %v959
    %962 = vmax.xlane.f32.xlu0 %v961
    %v963 = vpop.xlane.xlu0 %962
    %vm964 = vcmp.eq.f32.partialorder %v961, %v963
    %v965 = vsel %vm964, %v960, -inf
    %966 = vmax.xlane.f32.xlu0 %v965
    %v967 = vpop.xlane.xlu0 %966
    %v968 = vcvt.f32.s32 %v967
    %v969 = vcvt.f32.s32 %v963
    %v970 = vshll.u32 %v969, 16
    %v971 = vadd.s32 %v970, %v968
    %v972 = vand.u32 %v878, 65535
    %v973 = vshra.s32 %v878, 16
    %v974 = vcvt.s32.f32 %v972
    %v975 = vcvt.s32.f32 %v973
    %976 = vmax.xlane.f32.xlu0 %v975
    %v977 = vpop.xlane.xlu0 %976
    %vm978 = vcmp.eq.f32.partialorder %v975, %v977
    %v979 = vsel %vm978, %v974, -inf
    %980 = vmax.xlane.f32.xlu0 %v979
    %v981 = vpop.xlane.xlu0 %980
    %v982 = vcvt.f32.s32 %v981
    %v983 = vcvt.f32.s32 %v977
    %v984 = vshll.u32 %v983, 16
    %v985 = vadd.s32 %v984, %v982
    %v986 = vand.u32 %v879, 65535
    %v987 = vshra.s32 %v879, 16
    %v988 = vcvt.s32.f32 %v986
    %v989 = vcvt.s32.f32 %v987
    %990 = vmax.xlane.f32.xlu0 %v989
    %v991 = vpop.xlane.xlu0 %990
    %vm992 = vcmp.eq.f32.partialorder %v989, %v991
    %v993 = vsel %vm992, %v988, -inf
    %994 = vmax.xlane.f32.xlu0 %v993
    %v995 = vpop.xlane.xlu0 %994
    %v996 = vcvt.f32.s32 %v995
    %v997 = vcvt.f32.s32 %v991
    %v998 = vshll.u32 %v997, 16
    %v999 = vadd.s32 %v998, %v996
    %v1000 = vand.u32 %v880, 65535
    %v1001 = vshra.s32 %v880, 16
    %v1002 = vcvt.s32.f32 %v1000
    %v1003 = vcvt.s32.f32 %v1001
    %1004 = vmax.xlane.f32.xlu0 %v1003
    %v1005 = vpop.xlane.xlu0 %1004
    %vm1006 = vcmp.eq.f32.partialorder %v1003, %v1005
    %v1007 = vsel %vm1006, %v1002, -inf
    %1008 = vmax.xlane.f32.xlu0 %v1007
    %v1009 = vpop.xlane.xlu0 %1008
    %v1010 = vcvt.f32.s32 %v1009
    %v1011 = vcvt.f32.s32 %v1005
    %v1012 = vshll.u32 %v1011, 16
    %v1013 = vadd.s32 %v1012, %v1010
    %v1014 = vand.u32 %v881, 65535
    %v1015 = vshra.s32 %v881, 16
    %v1016 = vcvt.s32.f32 %v1014
    %v1017 = vcvt.s32.f32 %v1015
    %1018 = vmax.xlane.f32.xlu0 %v1017
    %v1019 = vpop.xlane.xlu0 %1018
    %vm1020 = vcmp.eq.f32.partialorder %v1017, %v1019
    %v1021 = vsel %vm1020, %v1016, -inf
    %1022 = vmax.xlane.f32.xlu0 %v1021
    %v1023 = vpop.xlane.xlu0 %1022
    %v1024 = vcvt.f32.s32 %v1023
    %v1025 = vcvt.f32.s32 %v1019
    %v1026 = vshll.u32 %v1025, 16
    %v1027 = vadd.s32 %v1026, %v1024
    %v1028 = vand.u32 %v882, 65535
    %v1029 = vshra.s32 %v882, 16
    %v1030 = vcvt.s32.f32 %v1028
    %v1031 = vcvt.s32.f32 %v1029
    %1032 = vmax.xlane.f32.xlu0 %v1031
    %v1033 = vpop.xlane.xlu0 %1032
    %vm1034 = vcmp.eq.f32.partialorder %v1031, %v1033
    %v1035 = vsel %vm1034, %v1030, -inf
    %1036 = vmax.xlane.f32.xlu0 %v1035
    %v1037 = vpop.xlane.xlu0 %1036
    %v1038 = vcvt.f32.s32 %v1037
    %v1039 = vcvt.f32.s32 %v1033
    %v1040 = vshll.u32 %v1039, 16
    %v1041 = vadd.s32 %v1040, %v1038
    %v1042 = vand.u32 %v883, 65535
    %v1043 = vshra.s32 %v883, 16
    %v1044 = vcvt.s32.f32 %v1042
    %v1045 = vcvt.s32.f32 %v1043
    %1046 = vmax.xlane.f32.xlu0 %v1045
    %v1047 = vpop.xlane.xlu0 %1046
    %vm1048 = vcmp.eq.f32.partialorder %v1045, %v1047
    %v1049 = vsel %vm1048, %v1044, -inf
    %1050 = vmax.xlane.f32.xlu0 %v1049
    %v1051 = vpop.xlane.xlu0 %1050
    %v1052 = vcvt.f32.s32 %v1051
    %v1053 = vcvt.f32.s32 %v1047
    %v1054 = vshll.u32 %v1053, 16
    %v1055 = vadd.s32 %v1054, %v1052
    %v1056 = vand.u32 %v884, 65535
    %v1057 = vshra.s32 %v884, 16
    %v1058 = vcvt.s32.f32 %v1056
    %v1059 = vcvt.s32.f32 %v1057
    %1060 = vmax.xlane.f32.xlu0 %v1059
    %v1061 = vpop.xlane.xlu0 %1060
    %vm1062 = vcmp.eq.f32.partialorder %v1059, %v1061
    %v1063 = vsel %vm1062, %v1058, -inf
    %1064 = vmax.xlane.f32.xlu0 %v1063
    %v1065 = vpop.xlane.xlu0 %1064
    %v1066 = vcvt.f32.s32 %v1065
    %v1067 = vcvt.f32.s32 %v1061
    %v1068 = vshll.u32 %v1067, 16
    %v1069 = vadd.s32 %v1068, %v1066
    %v1070 = vand.u32 %v885, 65535
    %v1071 = vshra.s32 %v885, 16
    %v1072 = vcvt.s32.f32 %v1070
    %v1073 = vcvt.s32.f32 %v1071
    %1074 = vmax.xlane.f32.xlu0 %v1073
    %v1075 = vpop.xlane.xlu0 %1074
    %vm1076 = vcmp.eq.f32.partialorder %v1073, %v1075
    %v1077 = vsel %vm1076, %v1072, -inf
    %1078 = vmax.xlane.f32.xlu0 %v1077
    %v1079 = vpop.xlane.xlu0 %1078
    %v1080 = vcvt.f32.s32 %v1079
    %v1081 = vcvt.f32.s32 %v1075
    %v1082 = vshll.u32 %v1081, 16
    %v1083 = vadd.s32 %v1082, %v1080
    %v1084 = vand.u32 %v886, 65535
    %v1085 = vshra.s32 %v886, 16
    %v1086 = vcvt.s32.f32 %v1084
    %v1087 = vcvt.s32.f32 %v1085
    %1088 = vmax.xlane.f32.xlu0 %v1087
    %v1089 = vpop.xlane.xlu0 %1088
    %vm1090 = vcmp.eq.f32.partialorder %v1087, %v1089
    %v1091 = vsel %vm1090, %v1086, -inf
    %1092 = vmax.xlane.f32.xlu0 %v1091
    %v1093 = vpop.xlane.xlu0 %1092
    %v1094 = vcvt.f32.s32 %v1093
    %v1095 = vcvt.f32.s32 %v1089
    %v1096 = vshll.u32 %v1095, 16
    %v1097 = vadd.s32 %v1096, %v1094
    %v1098 = vand.u32 %v887, 65535
    %v1099 = vshra.s32 %v887, 16
    %v1100 = vcvt.s32.f32 %v1098
    %v1101 = vcvt.s32.f32 %v1099
    %1102 = vmax.xlane.f32.xlu0 %v1101
    %v1103 = vpop.xlane.xlu0 %1102
    %vm1104 = vcmp.eq.f32.partialorder %v1101, %v1103
    %v1105 = vsel %vm1104, %v1100, -inf
    %1106 = vmax.xlane.f32.xlu0 %v1105
    %v1107 = vpop.xlane.xlu0 %1106
    %v1108 = vcvt.f32.s32 %v1107
    %v1109 = vcvt.f32.s32 %v1103
    %v1110 = vshll.u32 %v1109, 16
    %v1111 = vadd.s32 %v1110, %v1108
    %v1112 = vand.u32 %v901, 127
    %v1113 = vand.u32 %v915, 127
    %v1114 = vand.u32 %v929, 127
    %v1115 = vand.u32 %v943, 127
    %v1116 = vand.u32 %v957, 127
    %v1117 = vand.u32 %v971, 127
    %v1118 = vand.u32 %v985, 127
    %v1119 = vand.u32 %v999, 127
    %v1120 = vand.u32 %v1013, 127
    %v1121 = vand.u32 %v1027, 127
    %v1122 = vand.u32 %v1041, 127
    %v1123 = vand.u32 %v1055, 127
    %v1124 = vand.u32 %v1069, 127
    %v1125 = vand.u32 %v1083, 127
    %v1126 = vand.u32 %v1097, 127
    %v1127 = vand.u32 %v1111, 127
    %v1128 = vsub.s32 127, %v1112
    %v1129 = vsub.s32 127, %v1113
    %v1130 = vsub.s32 127, %v1114
    %v1131 = vsub.s32 127, %v1115
    %v1132 = vsub.s32 127, %v1116
    %v1133 = vsub.s32 127, %v1117
    %v1134 = vsub.s32 127, %v1118
    %v1135 = vsub.s32 127, %v1119
    %v1136 = vsub.s32 127, %v1120
    %v1137 = vsub.s32 127, %v1121
    %v1138 = vsub.s32 127, %v1122
    %v1139 = vsub.s32 127, %v1123
    %v1140 = vsub.s32 127, %v1124
    %v1141 = vsub.s32 127, %v1125
    %v1142 = vsub.s32 127, %v1126
    %v1143 = vsub.s32 127, %v1127
    %v1144 = vand.u32 %v901, 4294967168
    %v1145 = vand.u32 %v915, 4294967168
    %v1146 = vand.u32 %v929, 4294967168
    %v1147 = vand.u32 %v943, 4294967168
    %v1148 = vand.u32 %v957, 4294967168
    %v1149 = vand.u32 %v971, 4294967168
    %v1150 = vand.u32 %v985, 4294967168
    %v1151 = vand.u32 %v999, 4294967168
    %v1152 = vand.u32 %v1013, 4294967168
    %v1153 = vand.u32 %v1027, 4294967168
    %v1154 = vand.u32 %v1041, 4294967168
    %v1155 = vand.u32 %v1055, 4294967168
    %v1156 = vand.u32 %v1069, 4294967168
    %v1157 = vand.u32 %v1083, 4294967168
    %v1158 = vand.u32 %v1097, 4294967168
    %v1159 = vand.u32 %v1111, 4294967168
    %vm1160 = vcmp.lt.s32.totalorder %v1144, 0
    %vm1161 = vcmp.lt.s32.totalorder %v1145, 0
    %vm1162 = vcmp.lt.s32.totalorder %v1146, 0
    %vm1163 = vcmp.lt.s32.totalorder %v1147, 0
    %vm1164 = vcmp.lt.s32.totalorder %v1148, 0
    %vm1165 = vcmp.lt.s32.totalorder %v1149, 0
    %vm1166 = vcmp.lt.s32.totalorder %v1150, 0
    %vm1167 = vcmp.lt.s32.totalorder %v1151, 0
    %vm1168 = vcmp.lt.s32.totalorder %v1152, 0
    %vm1169 = vcmp.lt.s32.totalorder %v1153, 0
    %vm1170 = vcmp.lt.s32.totalorder %v1154, 0
    %vm1171 = vcmp.lt.s32.totalorder %v1155, 0
    %vm1172 = vcmp.lt.s32.totalorder %v1156, 0
    %vm1173 = vcmp.lt.s32.totalorder %v1157, 0
    %vm1174 = vcmp.lt.s32.totalorder %v1158, 0
    %vm1175 = vcmp.lt.s32.totalorder %v1159, 0
    %v1176 = vsub.s32 2147483648, %v1144
    %v1177 = vsub.s32 2147483648, %v1145
    %v1178 = vsub.s32 2147483648, %v1146
    %v1179 = vsub.s32 2147483648, %v1147
    %v1180 = vsub.s32 2147483648, %v1148
    %v1181 = vsub.s32 2147483648, %v1149
    %v1182 = vsub.s32 2147483648, %v1150
    %v1183 = vsub.s32 2147483648, %v1151
    %v1184 = vsub.s32 2147483648, %v1152
    %v1185 = vsub.s32 2147483648, %v1153
    %v1186 = vsub.s32 2147483648, %v1154
    %v1187 = vsub.s32 2147483648, %v1155
    %v1188 = vsub.s32 2147483648, %v1156
    %v1189 = vsub.s32 2147483648, %v1157
    %v1190 = vsub.s32 2147483648, %v1158
    %v1191 = vsub.s32 2147483648, %v1159
    %v1192 = vsel %vm1160, %v1176, %v1144
    %v1193 = vsel %vm1161, %v1177, %v1145
    %v1194 = vsel %vm1162, %v1178, %v1146
    %v1195 = vsel %vm1163, %v1179, %v1147
    %v1196 = vsel %vm1164, %v1180, %v1148
    %v1197 = vsel %vm1165, %v1181, %v1149
    %v1198 = vsel %vm1166, %v1182, %v1150
    %v1199 = vsel %vm1167, %v1183, %v1151
    %v1200 = vsel %vm1168, %v1184, %v1152
    %v1201 = vsel %vm1169, %v1185, %v1153
    %v1202 = vsel %vm1170, %v1186, %v1154
    %v1203 = vsel %vm1171, %v1187, %v1155
    %v1204 = vsel %vm1172, %v1188, %v1156
    %v1205 = vsel %vm1173, %v1189, %v1157
    %v1206 = vsel %vm1174, %v1190, %v1158
    %v1207 = vsel %vm1175, %v1191, %v1159
    %vm1224 = vcmp.eq.s32.totalorder %v372, 1
    %v1225 = vsel %vm1224, %v1192, %v824
    %v1226 = vsel %vm1224, %v1193, %v825
    %v1227 = vsel %vm1224, %v1194, %v826
    %v1228 = vsel %vm1224, %v1195, %v827
    %v1229 = vsel %vm1224, %v1196, %v828
    %v1230 = vsel %vm1224, %v1197, %v829
    %v1231 = vsel %vm1224, %v1198, %v830
    %v1232 = vsel %vm1224, %v1199, %v831
    %v1233 = vsel %vm1224, %v1200, %v832
    %v1234 = vsel %vm1224, %v1201, %v833
    %v1235 = vsel %vm1224, %v1202, %v834
    %v1236 = vsel %vm1224, %v1203, %v835
    %v1237 = vsel %vm1224, %v1204, %v836
    %v1238 = vsel %vm1224, %v1205, %v837
    %v1239 = vsel %vm1224, %v1206, %v838
    %v1240 = vsel %vm1224, %v1207, %v839
    %v1241 = vsel %vm1224, %v1128, %v840
    %v1242 = vsel %vm1224, %v1129, %v841
    %v1243 = vsel %vm1224, %v1130, %v842
    %v1244 = vsel %vm1224, %v1131, %v843
    %v1245 = vsel %vm1224, %v1132, %v844
    %v1246 = vsel %vm1224, %v1133, %v845
    %v1247 = vsel %vm1224, %v1134, %v846
    %v1248 = vsel %vm1224, %v1135, %v847
    %v1249 = vsel %vm1224, %v1136, %v848
    %v1250 = vsel %vm1224, %v1137, %v849
    %v1251 = vsel %vm1224, %v1138, %v850
    %v1252 = vsel %vm1224, %v1139, %v851
    %v1253 = vsel %vm1224, %v1140, %v852
    %v1254 = vsel %vm1224, %v1141, %v853
    %v1255 = vsel %vm1224, %v1142, %v854
    %v1256 = vsel %vm1224, %v1143, %v855
    %vm1257 = vcmp.eq.s32.totalorder %v372, %v1128
    %vm1258 = vcmp.eq.s32.totalorder %v372, %v1129
    %vm1259 = vcmp.eq.s32.totalorder %v372, %v1130
    %vm1260 = vcmp.eq.s32.totalorder %v372, %v1131
    %vm1261 = vcmp.eq.s32.totalorder %v372, %v1132
    %vm1262 = vcmp.eq.s32.totalorder %v372, %v1133
    %vm1263 = vcmp.eq.s32.totalorder %v372, %v1134
    %vm1264 = vcmp.eq.s32.totalorder %v372, %v1135
    %vm1265 = vcmp.eq.s32.totalorder %v372, %v1136
    %vm1266 = vcmp.eq.s32.totalorder %v372, %v1137
    %vm1267 = vcmp.eq.s32.totalorder %v372, %v1138
    %vm1268 = vcmp.eq.s32.totalorder %v372, %v1139
    %vm1269 = vcmp.eq.s32.totalorder %v372, %v1140
    %vm1270 = vcmp.eq.s32.totalorder %v372, %v1141
    %vm1271 = vcmp.eq.s32.totalorder %v372, %v1142
    %vm1272 = vcmp.eq.s32.totalorder %v372, %v1143
    %v1273 = vsel %vm1257, 2147483648, %v872
    %v1274 = vsel %vm1258, 2147483648, %v873
    %v1275 = vsel %vm1259, 2147483648, %v874
    %v1276 = vsel %vm1260, 2147483648, %v875
    %v1277 = vsel %vm1261, 2147483648, %v876
    %v1278 = vsel %vm1262, 2147483648, %v877
    %v1279 = vsel %vm1263, 2147483648, %v878
    %v1280 = vsel %vm1264, 2147483648, %v879
    %v1281 = vsel %vm1265, 2147483648, %v880
    %v1282 = vsel %vm1266, 2147483648, %v881
    %v1283 = vsel %vm1267, 2147483648, %v882
    %v1284 = vsel %vm1268, 2147483648, %v883
    %v1285 = vsel %vm1269, 2147483648, %v884
    %v1286 = vsel %vm1270, 2147483648, %v885
    %v1287 = vsel %vm1271, 2147483648, %v886
    %v1288 = vsel %vm1272, 2147483648, %v887
    %v1289 = vand.u32 %v1273, 65535
    %v1290 = vshra.s32 %v1273, 16
    %v1291 = vcvt.s32.f32 %v1289
    %v1292 = vcvt.s32.f32 %v1290
    %1293 = vmax.xlane.f32.xlu0 %v1292
    %v1294 = vpop.xlane.xlu0 %1293
    %vm1295 = vcmp.eq.f32.partialorder %v1292, %v1294
    %v1296 = vsel %vm1295, %v1291, -inf
    %1297 = vmax.xlane.f32.xlu0 %v1296
    %v1298 = vpop.xlane.xlu0 %1297
    %v1299 = vcvt.f32.s32 %v1298
    %v1300 = vcvt.f32.s32 %v1294
    %v1301 = vshll.u32 %v1300, 16
    %v1302 = vadd.s32 %v1301, %v1299
    %v1303 = vand.u32 %v1274, 65535
    %v1304 = vshra.s32 %v1274, 16
    %v1305 = vcvt.s32.f32 %v1303
    %v1306 = vcvt.s32.f32 %v1304
    %1307 = vmax.xlane.f32.xlu0 %v1306
    %v1308 = vpop.xlane.xlu0 %1307
    %vm1309 = vcmp.eq.f32.partialorder %v1306, %v1308
    %v1310 = vsel %vm1309, %v1305, -inf
    %1311 = vmax.xlane.f32.xlu0 %v1310
    %v1312 = vpop.xlane.xlu0 %1311
    %v1313 = vcvt.f32.s32 %v1312
    %v1314 = vcvt.f32.s32 %v1308
    %v1315 = vshll.u32 %v1314, 16
    %v1316 = vadd.s32 %v1315, %v1313
    %v1317 = vand.u32 %v1275, 65535
    %v1318 = vshra.s32 %v1275, 16
    %v1319 = vcvt.s32.f32 %v1317
    %v1320 = vcvt.s32.f32 %v1318
    %1321 = vmax.xlane.f32.xlu0 %v1320
    %v1322 = vpop.xlane.xlu0 %1321
    %vm1323 = vcmp.eq.f32.partialorder %v1320, %v1322
    %v1324 = vsel %vm1323, %v1319, -inf
    %1325 = vmax.xlane.f32.xlu0 %v1324
    %v1326 = vpop.xlane.xlu0 %1325
    %v1327 = vcvt.f32.s32 %v1326
    %v1328 = vcvt.f32.s32 %v1322
    %v1329 = vshll.u32 %v1328, 16
    %v1330 = vadd.s32 %v1329, %v1327
    %v1331 = vand.u32 %v1276, 65535
    %v1332 = vshra.s32 %v1276, 16
    %v1333 = vcvt.s32.f32 %v1331
    %v1334 = vcvt.s32.f32 %v1332
    %1335 = vmax.xlane.f32.xlu0 %v1334
    %v1336 = vpop.xlane.xlu0 %1335
    %vm1337 = vcmp.eq.f32.partialorder %v1334, %v1336
    %v1338 = vsel %vm1337, %v1333, -inf
    %1339 = vmax.xlane.f32.xlu0 %v1338
    %v1340 = vpop.xlane.xlu0 %1339
    %v1341 = vcvt.f32.s32 %v1340
    %v1342 = vcvt.f32.s32 %v1336
    %v1343 = vshll.u32 %v1342, 16
    %v1344 = vadd.s32 %v1343, %v1341
    %v1345 = vand.u32 %v1277, 65535
    %v1346 = vshra.s32 %v1277, 16
    %v1347 = vcvt.s32.f32 %v1345
    %v1348 = vcvt.s32.f32 %v1346
    %1349 = vmax.xlane.f32.xlu0 %v1348
    %v1350 = vpop.xlane.xlu0 %1349
    %vm1351 = vcmp.eq.f32.partialorder %v1348, %v1350
    %v1352 = vsel %vm1351, %v1347, -inf
    %1353 = vmax.xlane.f32.xlu0 %v1352
    %v1354 = vpop.xlane.xlu0 %1353
    %v1355 = vcvt.f32.s32 %v1354
    %v1356 = vcvt.f32.s32 %v1350
    %v1357 = vshll.u32 %v1356, 16
    %v1358 = vadd.s32 %v1357, %v1355
    %v1359 = vand.u32 %v1278, 65535
    %v1360 = vshra.s32 %v1278, 16
    %v1361 = vcvt.s32.f32 %v1359
    %v1362 = vcvt.s32.f32 %v1360
    %1363 = vmax.xlane.f32.xlu0 %v1362
    %v1364 = vpop.xlane.xlu0 %1363
    %vm1365 = vcmp.eq.f32.partialorder %v1362, %v1364
    %v1366 = vsel %vm1365, %v1361, -inf
    %1367 = vmax.xlane.f32.xlu0 %v1366
    %v1368 = vpop.xlane.xlu0 %1367
    %v1369 = vcvt.f32.s32 %v1368
    %v1370 = vcvt.f32.s32 %v1364
    %v1371 = vshll.u32 %v1370, 16
    %v1372 = vadd.s32 %v1371, %v1369
    %v1373 = vand.u32 %v1279, 65535
    %v1374 = vshra.s32 %v1279, 16
    %v1375 = vcvt.s32.f32 %v1373
    %v1376 = vcvt.s32.f32 %v1374
    %1377 = vmax.xlane.f32.xlu0 %v1376
    %v1378 = vpop.xlane.xlu0 %1377
    %vm1379 = vcmp.eq.f32.partialorder %v1376, %v1378
    %v1380 = vsel %vm1379, %v1375, -inf
    %1381 = vmax.xlane.f32.xlu0 %v1380
    %v1382 = vpop.xlane.xlu0 %1381
    %v1383 = vcvt.f32.s32 %v1382
    %v1384 = vcvt.f32.s32 %v1378
    %v1385 = vshll.u32 %v1384, 16
    %v1386 = vadd.s32 %v1385, %v1383
    %v1387 = vand.u32 %v1280, 65535
    %v1388 = vshra.s32 %v1280, 16
    %v1389 = vcvt.s32.f32 %v1387
    %v1390 = vcvt.s32.f32 %v1388
    %1391 = vmax.xlane.f32.xlu0 %v1390
    %v1392 = vpop.xlane.xlu0 %1391
    %vm1393 = vcmp.eq.f32.partialorder %v1390, %v1392
    %v1394 = vsel %vm1393, %v1389, -inf
    %1395 = vmax.xlane.f32.xlu0 %v1394
    %v1396 = vpop.xlane.xlu0 %1395
    %v1397 = vcvt.f32.s32 %v1396
    %v1398 = vcvt.f32.s32 %v1392
    %v1399 = vshll.u32 %v1398, 16
    %v1400 = vadd.s32 %v1399, %v1397
    %v1401 = vand.u32 %v1281, 65535
    %v1402 = vshra.s32 %v1281, 16
    %v1403 = vcvt.s32.f32 %v1401
    %v1404 = vcvt.s32.f32 %v1402
    %1405 = vmax.xlane.f32.xlu0 %v1404
    %v1406 = vpop.xlane.xlu0 %1405
    %vm1407 = vcmp.eq.f32.partialorder %v1404, %v1406
    %v1408 = vsel %vm1407, %v1403, -inf
    %1409 = vmax.xlane.f32.xlu0 %v1408
    %v1410 = vpop.xlane.xlu0 %1409
    %v1411 = vcvt.f32.s32 %v1410
    %v1412 = vcvt.f32.s32 %v1406
    %v1413 = vshll.u32 %v1412, 16
    %v1414 = vadd.s32 %v1413, %v1411
    %v1415 = vand.u32 %v1282, 65535
    %v1416 = vshra.s32 %v1282, 16
    %v1417 = vcvt.s32.f32 %v1415
    %v1418 = vcvt.s32.f32 %v1416
    %1419 = vmax.xlane.f32.xlu0 %v1418
    %v1420 = vpop.xlane.xlu0 %1419
    %vm1421 = vcmp.eq.f32.partialorder %v1418, %v1420
    %v1422 = vsel %vm1421, %v1417, -inf
    %1423 = vmax.xlane.f32.xlu0 %v1422
    %v1424 = vpop.xlane.xlu0 %1423
    %v1425 = vcvt.f32.s32 %v1424
    %v1426 = vcvt.f32.s32 %v1420
    %v1427 = vshll.u32 %v1426, 16
    %v1428 = vadd.s32 %v1427, %v1425
    %v1429 = vand.u32 %v1283, 65535
    %v1430 = vshra.s32 %v1283, 16
    %v1431 = vcvt.s32.f32 %v1429
    %v1432 = vcvt.s32.f32 %v1430
    %1433 = vmax.xlane.f32.xlu0 %v1432
    %v1434 = vpop.xlane.xlu0 %1433
    %vm1435 = vcmp.eq.f32.partialorder %v1432, %v1434
    %v1436 = vsel %vm1435, %v1431, -inf
    %1437 = vmax.xlane.f32.xlu0 %v1436
    %v1438 = vpop.xlane.xlu0 %1437
    %v1439 = vcvt.f32.s32 %v1438
    %v1440 = vcvt.f32.s32 %v1434
    %v1441 = vshll.u32 %v1440, 16
    %v1442 = vadd.s32 %v1441, %v1439
    %v1443 = vand.u32 %v1284, 65535
    %v1444 = vshra.s32 %v1284, 16
    %v1445 = vcvt.s32.f32 %v1443
    %v1446 = vcvt.s32.f32 %v1444
    %1447 = vmax.xlane.f32.xlu0 %v1446
    %v1448 = vpop.xlane.xlu0 %1447
    %vm1449 = vcmp.eq.f32.partialorder %v1446, %v1448
    %v1450 = vsel %vm1449, %v1445, -inf
    %1451 = vmax.xlane.f32.xlu0 %v1450
    %v1452 = vpop.xlane.xlu0 %1451
    %v1453 = vcvt.f32.s32 %v1452
    %v1454 = vcvt.f32.s32 %v1448
    %v1455 = vshll.u32 %v1454, 16
    %v1456 = vadd.s32 %v1455, %v1453
    %v1457 = vand.u32 %v1285, 65535
    %v1458 = vshra.s32 %v1285, 16
    %v1459 = vcvt.s32.f32 %v1457
    %v1460 = vcvt.s32.f32 %v1458
    %1461 = vmax.xlane.f32.xlu0 %v1460
    %v1462 = vpop.xlane.xlu0 %1461
    %vm1463 = vcmp.eq.f32.partialorder %v1460, %v1462
    %v1464 = vsel %vm1463, %v1459, -inf
    %1465 = vmax.xlane.f32.xlu0 %v1464
    %v1466 = vpop.xlane.xlu0 %1465
    %v1467 = vcvt.f32.s32 %v1466
    %v1468 = vcvt.f32.s32 %v1462
    %v1469 = vshll.u32 %v1468, 16
    %v1470 = vadd.s32 %v1469, %v1467
    %v1471 = vand.u32 %v1286, 65535
    %v1472 = vshra.s32 %v1286, 16
    %v1473 = vcvt.s32.f32 %v1471
    %v1474 = vcvt.s32.f32 %v1472
    %1475 = vmax.xlane.f32.xlu0 %v1474
    %v1476 = vpop.xlane.xlu0 %1475
    %vm1477 = vcmp.eq.f32.partialorder %v1474, %v1476
    %v1478 = vsel %vm1477, %v1473, -inf
    %1479 = vmax.xlane.f32.xlu0 %v1478
    %v1480 = vpop.xlane.xlu0 %1479
    %v1481 = vcvt.f32.s32 %v1480
    %v1482 = vcvt.f32.s32 %v1476
    %v1483 = vshll.u32 %v1482, 16
    %v1484 = vadd.s32 %v1483, %v1481
    %v1485 = vand.u32 %v1287, 65535
    %v1486 = vshra.s32 %v1287, 16
    %v1487 = vcvt.s32.f32 %v1485
    %v1488 = vcvt.s32.f32 %v1486
    %1489 = vmax.xlane.f32.xlu0 %v1488
    %v1490 = vpop.xlane.xlu0 %1489
    %vm1491 = vcmp.eq.f32.partialorder %v1488, %v1490
    %v1492 = vsel %vm1491, %v1487, -inf
    %1493 = vmax.xlane.f32.xlu0 %v1492
    %v1494 = vpop.xlane.xlu0 %1493
    %v1495 = vcvt.f32.s32 %v1494
    %v1496 = vcvt.f32.s32 %v1490
    %v1497 = vshll.u32 %v1496, 16
    %v1498 = vadd.s32 %v1497, %v1495
    %v1499 = vand.u32 %v1288, 65535
    %v1500 = vshra.s32 %v1288, 16
    %v1501 = vcvt.s32.f32 %v1499
    %v1502 = vcvt.s32.f32 %v1500
    %1503 = vmax.xlane.f32.xlu0 %v1502
    %v1504 = vpop.xlane.xlu0 %1503
    %vm1505 = vcmp.eq.f32.partialorder %v1502, %v1504
    %v1506 = vsel %vm1505, %v1501, -inf
    %1507 = vmax.xlane.f32.xlu0 %v1506
    %v1508 = vpop.xlane.xlu0 %1507
    %v1509 = vcvt.f32.s32 %v1508
    %v1510 = vcvt.f32.s32 %v1504
    %v1511 = vshll.u32 %v1510, 16
    %v1512 = vadd.s32 %v1511, %v1509
    %v1513 = vand.u32 %v1302, 127
    %v1514 = vand.u32 %v1316, 127
    %v1515 = vand.u32 %v1330, 127
    %v1516 = vand.u32 %v1344, 127
    %v1517 = vand.u32 %v1358, 127
    %v1518 = vand.u32 %v1372, 127
    %v1519 = vand.u32 %v1386, 127
    %v1520 = vand.u32 %v1400, 127
    %v1521 = vand.u32 %v1414, 127
    %v1522 = vand.u32 %v1428, 127
    %v1523 = vand.u32 %v1442, 127
    %v1524 = vand.u32 %v1456, 127
    %v1525 = vand.u32 %v1470, 127
    %v1526 = vand.u32 %v1484, 127
    %v1527 = vand.u32 %v1498, 127
    %v1528 = vand.u32 %v1512, 127
    %v1529 = vsub.s32 127, %v1513
    %v1530 = vsub.s32 127, %v1514
    %v1531 = vsub.s32 127, %v1515
    %v1532 = vsub.s32 127, %v1516
    %v1533 = vsub.s32 127, %v1517
    %v1534 = vsub.s32 127, %v1518
    %v1535 = vsub.s32 127, %v1519
    %v1536 = vsub.s32 127, %v1520
    %v1537 = vsub.s32 127, %v1521
    %v1538 = vsub.s32 127, %v1522
    %v1539 = vsub.s32 127, %v1523
    %v1540 = vsub.s32 127, %v1524
    %v1541 = vsub.s32 127, %v1525
    %v1542 = vsub.s32 127, %v1526
    %v1543 = vsub.s32 127, %v1527
    %v1544 = vsub.s32 127, %v1528
    %v1545 = vand.u32 %v1302, 4294967168
    %v1546 = vand.u32 %v1316, 4294967168
    %v1547 = vand.u32 %v1330, 4294967168
    %v1548 = vand.u32 %v1344, 4294967168
    %v1549 = vand.u32 %v1358, 4294967168
    %v1550 = vand.u32 %v1372, 4294967168
    %v1551 = vand.u32 %v1386, 4294967168
    %v1552 = vand.u32 %v1400, 4294967168
    %v1553 = vand.u32 %v1414, 4294967168
    %v1554 = vand.u32 %v1428, 4294967168
    %v1555 = vand.u32 %v1442, 4294967168
    %v1556 = vand.u32 %v1456, 4294967168
    %v1557 = vand.u32 %v1470, 4294967168
    %v1558 = vand.u32 %v1484, 4294967168
    %v1559 = vand.u32 %v1498, 4294967168
    %v1560 = vand.u32 %v1512, 4294967168
    %vm1561 = vcmp.lt.s32.totalorder %v1545, 0
    %vm1562 = vcmp.lt.s32.totalorder %v1546, 0
    %vm1563 = vcmp.lt.s32.totalorder %v1547, 0
    %vm1564 = vcmp.lt.s32.totalorder %v1548, 0
    %vm1565 = vcmp.lt.s32.totalorder %v1549, 0
    %vm1566 = vcmp.lt.s32.totalorder %v1550, 0
    %vm1567 = vcmp.lt.s32.totalorder %v1551, 0
    %vm1568 = vcmp.lt.s32.totalorder %v1552, 0
    %vm1569 = vcmp.lt.s32.totalorder %v1553, 0
    %vm1570 = vcmp.lt.s32.totalorder %v1554, 0
    %vm1571 = vcmp.lt.s32.totalorder %v1555, 0
    %vm1572 = vcmp.lt.s32.totalorder %v1556, 0
    %vm1573 = vcmp.lt.s32.totalorder %v1557, 0
    %vm1574 = vcmp.lt.s32.totalorder %v1558, 0
    %vm1575 = vcmp.lt.s32.totalorder %v1559, 0
    %vm1576 = vcmp.lt.s32.totalorder %v1560, 0
    %v1577 = vsub.s32 2147483648, %v1545
    %v1578 = vsub.s32 2147483648, %v1546
    %v1579 = vsub.s32 2147483648, %v1547
    %v1580 = vsub.s32 2147483648, %v1548
    %v1581 = vsub.s32 2147483648, %v1549
    %v1582 = vsub.s32 2147483648, %v1550
    %v1583 = vsub.s32 2147483648, %v1551
    %v1584 = vsub.s32 2147483648, %v1552
    %v1585 = vsub.s32 2147483648, %v1553
    %v1586 = vsub.s32 2147483648, %v1554
    %v1587 = vsub.s32 2147483648, %v1555
    %v1588 = vsub.s32 2147483648, %v1556
    %v1589 = vsub.s32 2147483648, %v1557
    %v1590 = vsub.s32 2147483648, %v1558
    %v1591 = vsub.s32 2147483648, %v1559
    %v1592 = vsub.s32 2147483648, %v1560
    %v1593 = vsel %vm1561, %v1577, %v1545
    %v1594 = vsel %vm1562, %v1578, %v1546
    %v1595 = vsel %vm1563, %v1579, %v1547
    %v1596 = vsel %vm1564, %v1580, %v1548
    %v1597 = vsel %vm1565, %v1581, %v1549
    %v1598 = vsel %vm1566, %v1582, %v1550
    %v1599 = vsel %vm1567, %v1583, %v1551
    %v1600 = vsel %vm1568, %v1584, %v1552
    %v1601 = vsel %vm1569, %v1585, %v1553
    %v1602 = vsel %vm1570, %v1586, %v1554
    %v1603 = vsel %vm1571, %v1587, %v1555
    %v1604 = vsel %vm1572, %v1588, %v1556
    %v1605 = vsel %vm1573, %v1589, %v1557
    %v1606 = vsel %vm1574, %v1590, %v1558
    %v1607 = vsel %vm1575, %v1591, %v1559
    %v1608 = vsel %vm1576, %v1592, %v1560
    %vm1625 = vcmp.eq.s32.totalorder %v372, 2
    %v1626 = vsel %vm1625, %v1593, %v1225
    %v1627 = vsel %vm1625, %v1594, %v1226
    %v1628 = vsel %vm1625, %v1595, %v1227
    %v1629 = vsel %vm1625, %v1596, %v1228
    %v1630 = vsel %vm1625, %v1597, %v1229
    %v1631 = vsel %vm1625, %v1598, %v1230
    %v1632 = vsel %vm1625, %v1599, %v1231
    %v1633 = vsel %vm1625, %v1600, %v1232
    %v1634 = vsel %vm1625, %v1601, %v1233
    %v1635 = vsel %vm1625, %v1602, %v1234
    %v1636 = vsel %vm1625, %v1603, %v1235
    %v1637 = vsel %vm1625, %v1604, %v1236
    %v1638 = vsel %vm1625, %v1605, %v1237
    %v1639 = vsel %vm1625, %v1606, %v1238
    %v1640 = vsel %vm1625, %v1607, %v1239
    %v1641 = vsel %vm1625, %v1608, %v1240
    %v1642 = vsel %vm1625, %v1529, %v1241
    %v1643 = vsel %vm1625, %v1530, %v1242
    %v1644 = vsel %vm1625, %v1531, %v1243
    %v1645 = vsel %vm1625, %v1532, %v1244
    %v1646 = vsel %vm1625, %v1533, %v1245
    %v1647 = vsel %vm1625, %v1534, %v1246
    %v1648 = vsel %vm1625, %v1535, %v1247
    %v1649 = vsel %vm1625, %v1536, %v1248
    %v1650 = vsel %vm1625, %v1537, %v1249
    %v1651 = vsel %vm1625, %v1538, %v1250
    %v1652 = vsel %vm1625, %v1539, %v1251
    %v1653 = vsel %vm1625, %v1540, %v1252
    %v1654 = vsel %vm1625, %v1541, %v1253
    %v1655 = vsel %vm1625, %v1542, %v1254
    %v1656 = vsel %vm1625, %v1543, %v1255
    %v1657 = vsel %vm1625, %v1544, %v1256
    %vm1658 = vcmp.eq.s32.totalorder %v372, %v1529
    %vm1659 = vcmp.eq.s32.totalorder %v372, %v1530
    %vm1660 = vcmp.eq.s32.totalorder %v372, %v1531
    %vm1661 = vcmp.eq.s32.totalorder %v372, %v1532
    %vm1662 = vcmp.eq.s32.totalorder %v372, %v1533
    %vm1663 = vcmp.eq.s32.totalorder %v372, %v1534
    %vm1664 = vcmp.eq.s32.totalorder %v372, %v1535
    %vm1665 = vcmp.eq.s32.totalorder %v372, %v1536
    %vm1666 = vcmp.eq.s32.totalorder %v372, %v1537
    %vm1667 = vcmp.eq.s32.totalorder %v372, %v1538
    %vm1668 = vcmp.eq.s32.totalorder %v372, %v1539
    %vm1669 = vcmp.eq.s32.totalorder %v372, %v1540
    %vm1670 = vcmp.eq.s32.totalorder %v372, %v1541
    %vm1671 = vcmp.eq.s32.totalorder %v372, %v1542
    %vm1672 = vcmp.eq.s32.totalorder %v372, %v1543
    %vm1673 = vcmp.eq.s32.totalorder %v372, %v1544
    %v1674 = vsel %vm1658, 2147483648, %v1273
    %v1675 = vsel %vm1659, 2147483648, %v1274
    %v1676 = vsel %vm1660, 2147483648, %v1275
    %v1677 = vsel %vm1661, 2147483648, %v1276
    %v1678 = vsel %vm1662, 2147483648, %v1277
    %v1679 = vsel %vm1663, 2147483648, %v1278
    %v1680 = vsel %vm1664, 2147483648, %v1279
    %v1681 = vsel %vm1665, 2147483648, %v1280
    %v1682 = vsel %vm1666, 2147483648, %v1281
    %v1683 = vsel %vm1667, 2147483648, %v1282
    %v1684 = vsel %vm1668, 2147483648, %v1283
    %v1685 = vsel %vm1669, 2147483648, %v1284
    %v1686 = vsel %vm1670, 2147483648, %v1285
    %v1687 = vsel %vm1671, 2147483648, %v1286
    %v1688 = vsel %vm1672, 2147483648, %v1287
    %v1689 = vsel %vm1673, 2147483648, %v1288
    %v1690 = vand.u32 %v1674, 65535
    %v1691 = vshra.s32 %v1674, 16
    %v1692 = vcvt.s32.f32 %v1690
    %v1693 = vcvt.s32.f32 %v1691
    %1694 = vmax.xlane.f32.xlu0 %v1693
    %v1695 = vpop.xlane.xlu0 %1694
    %vm1696 = vcmp.eq.f32.partialorder %v1693, %v1695
    %v1697 = vsel %vm1696, %v1692, -inf
    %1698 = vmax.xlane.f32.xlu0 %v1697
    %v1699 = vpop.xlane.xlu0 %1698
    %v1700 = vcvt.f32.s32 %v1699
    %v1701 = vcvt.f32.s32 %v1695
    %v1702 = vshll.u32 %v1701, 16
    %v1703 = vadd.s32 %v1702, %v1700
    %v1704 = vand.u32 %v1675, 65535
    %v1705 = vshra.s32 %v1675, 16
    %v1706 = vcvt.s32.f32 %v1704
    %v1707 = vcvt.s32.f32 %v1705
    %1708 = vmax.xlane.f32.xlu0 %v1707
    %v1709 = vpop.xlane.xlu0 %1708
    %vm1710 = vcmp.eq.f32.partialorder %v1707, %v1709
    %v1711 = vsel %vm1710, %v1706, -inf
    %1712 = vmax.xlane.f32.xlu0 %v1711
    %v1713 = vpop.xlane.xlu0 %1712
    %v1714 = vcvt.f32.s32 %v1713
    %v1715 = vcvt.f32.s32 %v1709
    %v1716 = vshll.u32 %v1715, 16
    %v1717 = vadd.s32 %v1716, %v1714
    %v1718 = vand.u32 %v1676, 65535
    %v1719 = vshra.s32 %v1676, 16
    %v1720 = vcvt.s32.f32 %v1718
    %v1721 = vcvt.s32.f32 %v1719
    %1722 = vmax.xlane.f32.xlu0 %v1721
    %v1723 = vpop.xlane.xlu0 %1722
    %vm1724 = vcmp.eq.f32.partialorder %v1721, %v1723
    %v1725 = vsel %vm1724, %v1720, -inf
    %1726 = vmax.xlane.f32.xlu0 %v1725
    %v1727 = vpop.xlane.xlu0 %1726
    %v1728 = vcvt.f32.s32 %v1727
    %v1729 = vcvt.f32.s32 %v1723
    %v1730 = vshll.u32 %v1729, 16
    %v1731 = vadd.s32 %v1730, %v1728
    %v1732 = vand.u32 %v1677, 65535
    %v1733 = vshra.s32 %v1677, 16
    %v1734 = vcvt.s32.f32 %v1732
    %v1735 = vcvt.s32.f32 %v1733
    %1736 = vmax.xlane.f32.xlu0 %v1735
    %v1737 = vpop.xlane.xlu0 %1736
    %vm1738 = vcmp.eq.f32.partialorder %v1735, %v1737
    %v1739 = vsel %vm1738, %v1734, -inf
    %1740 = vmax.xlane.f32.xlu0 %v1739
    %v1741 = vpop.xlane.xlu0 %1740
    %v1742 = vcvt.f32.s32 %v1741
    %v1743 = vcvt.f32.s32 %v1737
    %v1744 = vshll.u32 %v1743, 16
    %v1745 = vadd.s32 %v1744, %v1742
    %v1746 = vand.u32 %v1678, 65535
    %v1747 = vshra.s32 %v1678, 16
    %v1748 = vcvt.s32.f32 %v1746
    %v1749 = vcvt.s32.f32 %v1747
    %1750 = vmax.xlane.f32.xlu0 %v1749
    %v1751 = vpop.xlane.xlu0 %1750
    %vm1752 = vcmp.eq.f32.partialorder %v1749, %v1751
    %v1753 = vsel %vm1752, %v1748, -inf
    %1754 = vmax.xlane.f32.xlu0 %v1753
    %v1755 = vpop.xlane.xlu0 %1754
    %v1756 = vcvt.f32.s32 %v1755
    %v1757 = vcvt.f32.s32 %v1751
    %v1758 = vshll.u32 %v1757, 16
    %v1759 = vadd.s32 %v1758, %v1756
    %v1760 = vand.u32 %v1679, 65535
    %v1761 = vshra.s32 %v1679, 16
    %v1762 = vcvt.s32.f32 %v1760
    %v1763 = vcvt.s32.f32 %v1761
    %1764 = vmax.xlane.f32.xlu0 %v1763
    %v1765 = vpop.xlane.xlu0 %1764
    %vm1766 = vcmp.eq.f32.partialorder %v1763, %v1765
    %v1767 = vsel %vm1766, %v1762, -inf
    %1768 = vmax.xlane.f32.xlu0 %v1767
    %v1769 = vpop.xlane.xlu0 %1768
    %v1770 = vcvt.f32.s32 %v1769
    %v1771 = vcvt.f32.s32 %v1765
    %v1772 = vshll.u32 %v1771, 16
    %v1773 = vadd.s32 %v1772, %v1770
    %v1774 = vand.u32 %v1680, 65535
    %v1775 = vshra.s32 %v1680, 16
    %v1776 = vcvt.s32.f32 %v1774
    %v1777 = vcvt.s32.f32 %v1775
    %1778 = vmax.xlane.f32.xlu0 %v1777
    %v1779 = vpop.xlane.xlu0 %1778
    %vm1780 = vcmp.eq.f32.partialorder %v1777, %v1779
    %v1781 = vsel %vm1780, %v1776, -inf
    %1782 = vmax.xlane.f32.xlu0 %v1781
    %v1783 = vpop.xlane.xlu0 %1782
    %v1784 = vcvt.f32.s32 %v1783
    %v1785 = vcvt.f32.s32 %v1779
    %v1786 = vshll.u32 %v1785, 16
    %v1787 = vadd.s32 %v1786, %v1784
    %v1788 = vand.u32 %v1681, 65535
    %v1789 = vshra.s32 %v1681, 16
    %v1790 = vcvt.s32.f32 %v1788
    %v1791 = vcvt.s32.f32 %v1789
    %1792 = vmax.xlane.f32.xlu0 %v1791
    %v1793 = vpop.xlane.xlu0 %1792
    %vm1794 = vcmp.eq.f32.partialorder %v1791, %v1793
    %v1795 = vsel %vm1794, %v1790, -inf
    %1796 = vmax.xlane.f32.xlu0 %v1795
    %v1797 = vpop.xlane.xlu0 %1796
    %v1798 = vcvt.f32.s32 %v1797
    %v1799 = vcvt.f32.s32 %v1793
    %v1800 = vshll.u32 %v1799, 16
    %v1801 = vadd.s32 %v1800, %v1798
    %v1802 = vand.u32 %v1682, 65535
    %v1803 = vshra.s32 %v1682, 16
    %v1804 = vcvt.s32.f32 %v1802
    %v1805 = vcvt.s32.f32 %v1803
    %1806 = vmax.xlane.f32.xlu0 %v1805
    %v1807 = vpop.xlane.xlu0 %1806
    %vm1808 = vcmp.eq.f32.partialorder %v1805, %v1807
    %v1809 = vsel %vm1808, %v1804, -inf
    %1810 = vmax.xlane.f32.xlu0 %v1809
    %v1811 = vpop.xlane.xlu0 %1810
    %v1812 = vcvt.f32.s32 %v1811
    %v1813 = vcvt.f32.s32 %v1807
    %v1814 = vshll.u32 %v1813, 16
    %v1815 = vadd.s32 %v1814, %v1812
    %v1816 = vand.u32 %v1683, 65535
    %v1817 = vshra.s32 %v1683, 16
    %v1818 = vcvt.s32.f32 %v1816
    %v1819 = vcvt.s32.f32 %v1817
    %1820 = vmax.xlane.f32.xlu0 %v1819
    %v1821 = vpop.xlane.xlu0 %1820
    %vm1822 = vcmp.eq.f32.partialorder %v1819, %v1821
    %v1823 = vsel %vm1822, %v1818, -inf
    %1824 = vmax.xlane.f32.xlu0 %v1823
    %v1825 = vpop.xlane.xlu0 %1824
    %v1826 = vcvt.f32.s32 %v1825
    %v1827 = vcvt.f32.s32 %v1821
    %v1828 = vshll.u32 %v1827, 16
    %v1829 = vadd.s32 %v1828, %v1826
    %v1830 = vand.u32 %v1684, 65535
    %v1831 = vshra.s32 %v1684, 16
    %v1832 = vcvt.s32.f32 %v1830
    %v1833 = vcvt.s32.f32 %v1831
    %1834 = vmax.xlane.f32.xlu0 %v1833
    %v1835 = vpop.xlane.xlu0 %1834
    %vm1836 = vcmp.eq.f32.partialorder %v1833, %v1835
    %v1837 = vsel %vm1836, %v1832, -inf
    %1838 = vmax.xlane.f32.xlu0 %v1837
    %v1839 = vpop.xlane.xlu0 %1838
    %v1840 = vcvt.f32.s32 %v1839
    %v1841 = vcvt.f32.s32 %v1835
    %v1842 = vshll.u32 %v1841, 16
    %v1843 = vadd.s32 %v1842, %v1840
    %v1844 = vand.u32 %v1685, 65535
    %v1845 = vshra.s32 %v1685, 16
    %v1846 = vcvt.s32.f32 %v1844
    %v1847 = vcvt.s32.f32 %v1845
    %1848 = vmax.xlane.f32.xlu0 %v1847
    %v1849 = vpop.xlane.xlu0 %1848
    %vm1850 = vcmp.eq.f32.partialorder %v1847, %v1849
    %v1851 = vsel %vm1850, %v1846, -inf
    %1852 = vmax.xlane.f32.xlu0 %v1851
    %v1853 = vpop.xlane.xlu0 %1852
    %v1854 = vcvt.f32.s32 %v1853
    %v1855 = vcvt.f32.s32 %v1849
    %v1856 = vshll.u32 %v1855, 16
    %v1857 = vadd.s32 %v1856, %v1854
    %v1858 = vand.u32 %v1686, 65535
    %v1859 = vshra.s32 %v1686, 16
    %v1860 = vcvt.s32.f32 %v1858
    %v1861 = vcvt.s32.f32 %v1859
    %1862 = vmax.xlane.f32.xlu0 %v1861
    %v1863 = vpop.xlane.xlu0 %1862
    %vm1864 = vcmp.eq.f32.partialorder %v1861, %v1863
    %v1865 = vsel %vm1864, %v1860, -inf
    %1866 = vmax.xlane.f32.xlu0 %v1865
    %v1867 = vpop.xlane.xlu0 %1866
    %v1868 = vcvt.f32.s32 %v1867
    %v1869 = vcvt.f32.s32 %v1863
    %v1870 = vshll.u32 %v1869, 16
    %v1871 = vadd.s32 %v1870, %v1868
    %v1872 = vand.u32 %v1687, 65535
    %v1873 = vshra.s32 %v1687, 16
    %v1874 = vcvt.s32.f32 %v1872
    %v1875 = vcvt.s32.f32 %v1873
    %1876 = vmax.xlane.f32.xlu0 %v1875
    %v1877 = vpop.xlane.xlu0 %1876
    %vm1878 = vcmp.eq.f32.partialorder %v1875, %v1877
    %v1879 = vsel %vm1878, %v1874, -inf
    %1880 = vmax.xlane.f32.xlu0 %v1879
    %v1881 = vpop.xlane.xlu0 %1880
    %v1882 = vcvt.f32.s32 %v1881
    %v1883 = vcvt.f32.s32 %v1877
    %v1884 = vshll.u32 %v1883, 16
    %v1885 = vadd.s32 %v1884, %v1882
    %v1886 = vand.u32 %v1688, 65535
    %v1887 = vshra.s32 %v1688, 16
    %v1888 = vcvt.s32.f32 %v1886
    %v1889 = vcvt.s32.f32 %v1887
    %1890 = vmax.xlane.f32.xlu0 %v1889
    %v1891 = vpop.xlane.xlu0 %1890
    %vm1892 = vcmp.eq.f32.partialorder %v1889, %v1891
    %v1893 = vsel %vm1892, %v1888, -inf
    %1894 = vmax.xlane.f32.xlu0 %v1893
    %v1895 = vpop.xlane.xlu0 %1894
    %v1896 = vcvt.f32.s32 %v1895
    %v1897 = vcvt.f32.s32 %v1891
    %v1898 = vshll.u32 %v1897, 16
    %v1899 = vadd.s32 %v1898, %v1896
    %v1900 = vand.u32 %v1689, 65535
    %v1901 = vshra.s32 %v1689, 16
    %v1902 = vcvt.s32.f32 %v1900
    %v1903 = vcvt.s32.f32 %v1901
    %1904 = vmax.xlane.f32.xlu0 %v1903
    %v1905 = vpop.xlane.xlu0 %1904
    %vm1906 = vcmp.eq.f32.partialorder %v1903, %v1905
    %v1907 = vsel %vm1906, %v1902, -inf
    %1908 = vmax.xlane.f32.xlu0 %v1907
    %v1909 = vpop.xlane.xlu0 %1908
    %v1910 = vcvt.f32.s32 %v1909
    %v1911 = vcvt.f32.s32 %v1905
    %v1912 = vshll.u32 %v1911, 16
    %v1913 = vadd.s32 %v1912, %v1910
    %v1914 = vand.u32 %v1703, 127
    %v1915 = vand.u32 %v1717, 127
    %v1916 = vand.u32 %v1731, 127
    %v1917 = vand.u32 %v1745, 127
    %v1918 = vand.u32 %v1759, 127
    %v1919 = vand.u32 %v1773, 127
    %v1920 = vand.u32 %v1787, 127
    %v1921 = vand.u32 %v1801, 127
    %v1922 = vand.u32 %v1815, 127
    %v1923 = vand.u32 %v1829, 127
    %v1924 = vand.u32 %v1843, 127
    %v1925 = vand.u32 %v1857, 127
    %v1926 = vand.u32 %v1871, 127
    %v1927 = vand.u32 %v1885, 127
    %v1928 = vand.u32 %v1899, 127
    %v1929 = vand.u32 %v1913, 127
    %v1930 = vsub.s32 127, %v1914
    %v1931 = vsub.s32 127, %v1915
    %v1932 = vsub.s32 127, %v1916
    %v1933 = vsub.s32 127, %v1917
    %v1934 = vsub.s32 127, %v1918
    %v1935 = vsub.s32 127, %v1919
    %v1936 = vsub.s32 127, %v1920
    %v1937 = vsub.s32 127, %v1921
    %v1938 = vsub.s32 127, %v1922
    %v1939 = vsub.s32 127, %v1923
    %v1940 = vsub.s32 127, %v1924
    %v1941 = vsub.s32 127, %v1925
    %v1942 = vsub.s32 127, %v1926
    %v1943 = vsub.s32 127, %v1927
    %v1944 = vsub.s32 127, %v1928
    %v1945 = vsub.s32 127, %v1929
    %v1946 = vand.u32 %v1703, 4294967168
    %v1947 = vand.u32 %v1717, 4294967168
    %v1948 = vand.u32 %v1731, 4294967168
    %v1949 = vand.u32 %v1745, 4294967168
    %v1950 = vand.u32 %v1759, 4294967168
    %v1951 = vand.u32 %v1773, 4294967168
    %v1952 = vand.u32 %v1787, 4294967168
    %v1953 = vand.u32 %v1801, 4294967168
    %v1954 = vand.u32 %v1815, 4294967168
    %v1955 = vand.u32 %v1829, 4294967168
    %v1956 = vand.u32 %v1843, 4294967168
    %v1957 = vand.u32 %v1857, 4294967168
    %v1958 = vand.u32 %v1871, 4294967168
    %v1959 = vand.u32 %v1885, 4294967168
    %v1960 = vand.u32 %v1899, 4294967168
    %v1961 = vand.u32 %v1913, 4294967168
    %vm1962 = vcmp.lt.s32.totalorder %v1946, 0
    %vm1963 = vcmp.lt.s32.totalorder %v1947, 0
    %vm1964 = vcmp.lt.s32.totalorder %v1948, 0
    %vm1965 = vcmp.lt.s32.totalorder %v1949, 0
    %vm1966 = vcmp.lt.s32.totalorder %v1950, 0
    %vm1967 = vcmp.lt.s32.totalorder %v1951, 0
    %vm1968 = vcmp.lt.s32.totalorder %v1952, 0
    %vm1969 = vcmp.lt.s32.totalorder %v1953, 0
    %vm1970 = vcmp.lt.s32.totalorder %v1954, 0
    %vm1971 = vcmp.lt.s32.totalorder %v1955, 0
    %vm1972 = vcmp.lt.s32.totalorder %v1956, 0
    %vm1973 = vcmp.lt.s32.totalorder %v1957, 0
    %vm1974 = vcmp.lt.s32.totalorder %v1958, 0
    %vm1975 = vcmp.lt.s32.totalorder %v1959, 0
    %vm1976 = vcmp.lt.s32.totalorder %v1960, 0
    %vm1977 = vcmp.lt.s32.totalorder %v1961, 0
    %v1978 = vsub.s32 2147483648, %v1946
    %v1979 = vsub.s32 2147483648, %v1947
    %v1980 = vsub.s32 2147483648, %v1948
    %v1981 = vsub.s32 2147483648, %v1949
    %v1982 = vsub.s32 2147483648, %v1950
    %v1983 = vsub.s32 2147483648, %v1951
    %v1984 = vsub.s32 2147483648, %v1952
    %v1985 = vsub.s32 2147483648, %v1953
    %v1986 = vsub.s32 2147483648, %v1954
    %v1987 = vsub.s32 2147483648, %v1955
    %v1988 = vsub.s32 2147483648, %v1956
    %v1989 = vsub.s32 2147483648, %v1957
    %v1990 = vsub.s32 2147483648, %v1958
    %v1991 = vsub.s32 2147483648, %v1959
    %v1992 = vsub.s32 2147483648, %v1960
    %v1993 = vsub.s32 2147483648, %v1961
    %v1994 = vsel %vm1962, %v1978, %v1946
    %v1995 = vsel %vm1963, %v1979, %v1947
    %v1996 = vsel %vm1964, %v1980, %v1948
    %v1997 = vsel %vm1965, %v1981, %v1949
    %v1998 = vsel %vm1966, %v1982, %v1950
    %v1999 = vsel %vm1967, %v1983, %v1951
    %v2000 = vsel %vm1968, %v1984, %v1952
    %v2001 = vsel %vm1969, %v1985, %v1953
    %v2002 = vsel %vm1970, %v1986, %v1954
    %v2003 = vsel %vm1971, %v1987, %v1955
    %v2004 = vsel %vm1972, %v1988, %v1956
    %v2005 = vsel %vm1973, %v1989, %v1957
    %v2006 = vsel %vm1974, %v1990, %v1958
    %v2007 = vsel %vm1975, %v1991, %v1959
    %v2008 = vsel %vm1976, %v1992, %v1960
    %v2009 = vsel %vm1977, %v1993, %v1961
    %vm2026 = vcmp.eq.s32.totalorder %v372, 3
    %v2027 = vsel %vm2026, %v1994, %v1626
    %v2028 = vsel %vm2026, %v1995, %v1627
    %v2029 = vsel %vm2026, %v1996, %v1628
    %v2030 = vsel %vm2026, %v1997, %v1629
    %v2031 = vsel %vm2026, %v1998, %v1630
    %v2032 = vsel %vm2026, %v1999, %v1631
    %v2033 = vsel %vm2026, %v2000, %v1632
    %v2034 = vsel %vm2026, %v2001, %v1633
    %v2035 = vsel %vm2026, %v2002, %v1634
    %v2036 = vsel %vm2026, %v2003, %v1635
    %v2037 = vsel %vm2026, %v2004, %v1636
    %v2038 = vsel %vm2026, %v2005, %v1637
    %v2039 = vsel %vm2026, %v2006, %v1638
    %v2040 = vsel %vm2026, %v2007, %v1639
    %v2041 = vsel %vm2026, %v2008, %v1640
    %v2042 = vsel %vm2026, %v2009, %v1641
    %v2043 = vsel %vm2026, %v1930, %v1642
    %v2044 = vsel %vm2026, %v1931, %v1643
    %v2045 = vsel %vm2026, %v1932, %v1644
    %v2046 = vsel %vm2026, %v1933, %v1645
    %v2047 = vsel %vm2026, %v1934, %v1646
    %v2048 = vsel %vm2026, %v1935, %v1647
    %v2049 = vsel %vm2026, %v1936, %v1648
    %v2050 = vsel %vm2026, %v1937, %v1649
    %v2051 = vsel %vm2026, %v1938, %v1650
    %v2052 = vsel %vm2026, %v1939, %v1651
    %v2053 = vsel %vm2026, %v1940, %v1652
    %v2054 = vsel %vm2026, %v1941, %v1653
    %v2055 = vsel %vm2026, %v1942, %v1654
    %v2056 = vsel %vm2026, %v1943, %v1655
    %v2057 = vsel %vm2026, %v1944, %v1656
    %v2058 = vsel %vm2026, %v1945, %v1657
    %vm2059 = vcmp.eq.s32.totalorder %v372, %v1930
    %vm2060 = vcmp.eq.s32.totalorder %v372, %v1931
    %vm2061 = vcmp.eq.s32.totalorder %v372, %v1932
    %vm2062 = vcmp.eq.s32.totalorder %v372, %v1933
    %vm2063 = vcmp.eq.s32.totalorder %v372, %v1934
    %vm2064 = vcmp.eq.s32.totalorder %v372, %v1935
    %vm2065 = vcmp.eq.s32.totalorder %v372, %v1936
    %vm2066 = vcmp.eq.s32.totalorder %v372, %v1937
    %vm2067 = vcmp.eq.s32.totalorder %v372, %v1938
    %vm2068 = vcmp.eq.s32.totalorder %v372, %v1939
    %vm2069 = vcmp.eq.s32.totalorder %v372, %v1940
    %vm2070 = vcmp.eq.s32.totalorder %v372, %v1941
    %vm2071 = vcmp.eq.s32.totalorder %v372, %v1942
    %vm2072 = vcmp.eq.s32.totalorder %v372, %v1943
    %vm2073 = vcmp.eq.s32.totalorder %v372, %v1944
    %vm2074 = vcmp.eq.s32.totalorder %v372, %v1945
    %v2075 = vsel %vm2059, 2147483648, %v1674
    %v2076 = vsel %vm2060, 2147483648, %v1675
    %v2077 = vsel %vm2061, 2147483648, %v1676
    %v2078 = vsel %vm2062, 2147483648, %v1677
    %v2079 = vsel %vm2063, 2147483648, %v1678
    %v2080 = vsel %vm2064, 2147483648, %v1679
    %v2081 = vsel %vm2065, 2147483648, %v1680
    %v2082 = vsel %vm2066, 2147483648, %v1681
    %v2083 = vsel %vm2067, 2147483648, %v1682
    %v2084 = vsel %vm2068, 2147483648, %v1683
    %v2085 = vsel %vm2069, 2147483648, %v1684
    %v2086 = vsel %vm2070, 2147483648, %v1685
    %v2087 = vsel %vm2071, 2147483648, %v1686
    %v2088 = vsel %vm2072, 2147483648, %v1687
    %v2089 = vsel %vm2073, 2147483648, %v1688
    %v2090 = vsel %vm2074, 2147483648, %v1689
    %v2091 = vand.u32 %v2075, 65535
    %v2092 = vshra.s32 %v2075, 16
    %v2093 = vcvt.s32.f32 %v2091
    %v2094 = vcvt.s32.f32 %v2092
    %2095 = vmax.xlane.f32.xlu0 %v2094
    %v2096 = vpop.xlane.xlu0 %2095
    %vm2097 = vcmp.eq.f32.partialorder %v2094, %v2096
    %v2098 = vsel %vm2097, %v2093, -inf
    %2099 = vmax.xlane.f32.xlu0 %v2098
    %v2100 = vpop.xlane.xlu0 %2099
    %v2101 = vcvt.f32.s32 %v2100
    %v2102 = vcvt.f32.s32 %v2096
    %v2103 = vshll.u32 %v2102, 16
    %v2104 = vadd.s32 %v2103, %v2101
    %v2105 = vand.u32 %v2076, 65535
    %v2106 = vshra.s32 %v2076, 16
    %v2107 = vcvt.s32.f32 %v2105
    %v2108 = vcvt.s32.f32 %v2106
    %2109 = vmax.xlane.f32.xlu0 %v2108
    %v2110 = vpop.xlane.xlu0 %2109
    %vm2111 = vcmp.eq.f32.partialorder %v2108, %v2110
    %v2112 = vsel %vm2111, %v2107, -inf
    %2113 = vmax.xlane.f32.xlu0 %v2112
    %v2114 = vpop.xlane.xlu0 %2113
    %v2115 = vcvt.f32.s32 %v2114
    %v2116 = vcvt.f32.s32 %v2110
    %v2117 = vshll.u32 %v2116, 16
    %v2118 = vadd.s32 %v2117, %v2115
    %v2119 = vand.u32 %v2077, 65535
    %v2120 = vshra.s32 %v2077, 16
    %v2121 = vcvt.s32.f32 %v2119
    %v2122 = vcvt.s32.f32 %v2120
    %2123 = vmax.xlane.f32.xlu0 %v2122
    %v2124 = vpop.xlane.xlu0 %2123
    %vm2125 = vcmp.eq.f32.partialorder %v2122, %v2124
    %v2126 = vsel %vm2125, %v2121, -inf
    %2127 = vmax.xlane.f32.xlu0 %v2126
    %v2128 = vpop.xlane.xlu0 %2127
    %v2129 = vcvt.f32.s32 %v2128
    %v2130 = vcvt.f32.s32 %v2124
    %v2131 = vshll.u32 %v2130, 16
    %v2132 = vadd.s32 %v2131, %v2129
    %v2133 = vand.u32 %v2078, 65535
    %v2134 = vshra.s32 %v2078, 16
    %v2135 = vcvt.s32.f32 %v2133
    %v2136 = vcvt.s32.f32 %v2134
    %2137 = vmax.xlane.f32.xlu0 %v2136
    %v2138 = vpop.xlane.xlu0 %2137
    %vm2139 = vcmp.eq.f32.partialorder %v2136, %v2138
    %v2140 = vsel %vm2139, %v2135, -inf
    %2141 = vmax.xlane.f32.xlu0 %v2140
    %v2142 = vpop.xlane.xlu0 %2141
    %v2143 = vcvt.f32.s32 %v2142
    %v2144 = vcvt.f32.s32 %v2138
    %v2145 = vshll.u32 %v2144, 16
    %v2146 = vadd.s32 %v2145, %v2143
    %v2147 = vand.u32 %v2079, 65535
    %v2148 = vshra.s32 %v2079, 16
    %v2149 = vcvt.s32.f32 %v2147
    %v2150 = vcvt.s32.f32 %v2148
    %2151 = vmax.xlane.f32.xlu0 %v2150
    %v2152 = vpop.xlane.xlu0 %2151
    %vm2153 = vcmp.eq.f32.partialorder %v2150, %v2152
    %v2154 = vsel %vm2153, %v2149, -inf
    %2155 = vmax.xlane.f32.xlu0 %v2154
    %v2156 = vpop.xlane.xlu0 %2155
    %v2157 = vcvt.f32.s32 %v2156
    %v2158 = vcvt.f32.s32 %v2152
    %v2159 = vshll.u32 %v2158, 16
    %v2160 = vadd.s32 %v2159, %v2157
    %v2161 = vand.u32 %v2080, 65535
    %v2162 = vshra.s32 %v2080, 16
    %v2163 = vcvt.s32.f32 %v2161
    %v2164 = vcvt.s32.f32 %v2162
    %2165 = vmax.xlane.f32.xlu0 %v2164
    %v2166 = vpop.xlane.xlu0 %2165
    %vm2167 = vcmp.eq.f32.partialorder %v2164, %v2166
    %v2168 = vsel %vm2167, %v2163, -inf
    %2169 = vmax.xlane.f32.xlu0 %v2168
    %v2170 = vpop.xlane.xlu0 %2169
    %v2171 = vcvt.f32.s32 %v2170
    %v2172 = vcvt.f32.s32 %v2166
    %v2173 = vshll.u32 %v2172, 16
    %v2174 = vadd.s32 %v2173, %v2171
    %v2175 = vand.u32 %v2081, 65535
    %v2176 = vshra.s32 %v2081, 16
    %v2177 = vcvt.s32.f32 %v2175
    %v2178 = vcvt.s32.f32 %v2176
    %2179 = vmax.xlane.f32.xlu0 %v2178
    %v2180 = vpop.xlane.xlu0 %2179
    %vm2181 = vcmp.eq.f32.partialorder %v2178, %v2180
    %v2182 = vsel %vm2181, %v2177, -inf
    %2183 = vmax.xlane.f32.xlu0 %v2182
    %v2184 = vpop.xlane.xlu0 %2183
    %v2185 = vcvt.f32.s32 %v2184
    %v2186 = vcvt.f32.s32 %v2180
    %v2187 = vshll.u32 %v2186, 16
    %v2188 = vadd.s32 %v2187, %v2185
    %v2189 = vand.u32 %v2082, 65535
    %v2190 = vshra.s32 %v2082, 16
    %v2191 = vcvt.s32.f32 %v2189
    %v2192 = vcvt.s32.f32 %v2190
    %2193 = vmax.xlane.f32.xlu0 %v2192
    %v2194 = vpop.xlane.xlu0 %2193
    %vm2195 = vcmp.eq.f32.partialorder %v2192, %v2194
    %v2196 = vsel %vm2195, %v2191, -inf
    %2197 = vmax.xlane.f32.xlu0 %v2196
    %v2198 = vpop.xlane.xlu0 %2197
    %v2199 = vcvt.f32.s32 %v2198
    %v2200 = vcvt.f32.s32 %v2194
    %v2201 = vshll.u32 %v2200, 16
    %v2202 = vadd.s32 %v2201, %v2199
    %v2203 = vand.u32 %v2083, 65535
    %v2204 = vshra.s32 %v2083, 16
    %v2205 = vcvt.s32.f32 %v2203
    %v2206 = vcvt.s32.f32 %v2204
    %2207 = vmax.xlane.f32.xlu0 %v2206
    %v2208 = vpop.xlane.xlu0 %2207
    %vm2209 = vcmp.eq.f32.partialorder %v2206, %v2208
    %v2210 = vsel %vm2209, %v2205, -inf
    %2211 = vmax.xlane.f32.xlu0 %v2210
    %v2212 = vpop.xlane.xlu0 %2211
    %v2213 = vcvt.f32.s32 %v2212
    %v2214 = vcvt.f32.s32 %v2208
    %v2215 = vshll.u32 %v2214, 16
    %v2216 = vadd.s32 %v2215, %v2213
    %v2217 = vand.u32 %v2084, 65535
    %v2218 = vshra.s32 %v2084, 16
    %v2219 = vcvt.s32.f32 %v2217
    %v2220 = vcvt.s32.f32 %v2218
    %2221 = vmax.xlane.f32.xlu0 %v2220
    %v2222 = vpop.xlane.xlu0 %2221
    %vm2223 = vcmp.eq.f32.partialorder %v2220, %v2222
    %v2224 = vsel %vm2223, %v2219, -inf
    %2225 = vmax.xlane.f32.xlu0 %v2224
    %v2226 = vpop.xlane.xlu0 %2225
    %v2227 = vcvt.f32.s32 %v2226
    %v2228 = vcvt.f32.s32 %v2222
    %v2229 = vshll.u32 %v2228, 16
    %v2230 = vadd.s32 %v2229, %v2227
    %v2231 = vand.u32 %v2085, 65535
    %v2232 = vshra.s32 %v2085, 16
    %v2233 = vcvt.s32.f32 %v2231
    %v2234 = vcvt.s32.f32 %v2232
    %2235 = vmax.xlane.f32.xlu0 %v2234
    %v2236 = vpop.xlane.xlu0 %2235
    %vm2237 = vcmp.eq.f32.partialorder %v2234, %v2236
    %v2238 = vsel %vm2237, %v2233, -inf
    %2239 = vmax.xlane.f32.xlu0 %v2238
    %v2240 = vpop.xlane.xlu0 %2239
    %v2241 = vcvt.f32.s32 %v2240
    %v2242 = vcvt.f32.s32 %v2236
    %v2243 = vshll.u32 %v2242, 16
    %v2244 = vadd.s32 %v2243, %v2241
    %v2245 = vand.u32 %v2086, 65535
    %v2246 = vshra.s32 %v2086, 16
    %v2247 = vcvt.s32.f32 %v2245
    %v2248 = vcvt.s32.f32 %v2246
    %2249 = vmax.xlane.f32.xlu0 %v2248
    %v2250 = vpop.xlane.xlu0 %2249
    %vm2251 = vcmp.eq.f32.partialorder %v2248, %v2250
    %v2252 = vsel %vm2251, %v2247, -inf
    %2253 = vmax.xlane.f32.xlu0 %v2252
    %v2254 = vpop.xlane.xlu0 %2253
    %v2255 = vcvt.f32.s32 %v2254
    %v2256 = vcvt.f32.s32 %v2250
    %v2257 = vshll.u32 %v2256, 16
    %v2258 = vadd.s32 %v2257, %v2255
    %v2259 = vand.u32 %v2087, 65535
    %v2260 = vshra.s32 %v2087, 16
    %v2261 = vcvt.s32.f32 %v2259
    %v2262 = vcvt.s32.f32 %v2260
    %2263 = vmax.xlane.f32.xlu0 %v2262
    %v2264 = vpop.xlane.xlu0 %2263
    %vm2265 = vcmp.eq.f32.partialorder %v2262, %v2264
    %v2266 = vsel %vm2265, %v2261, -inf
    %2267 = vmax.xlane.f32.xlu0 %v2266
    %v2268 = vpop.xlane.xlu0 %2267
    %v2269 = vcvt.f32.s32 %v2268
    %v2270 = vcvt.f32.s32 %v2264
    %v2271 = vshll.u32 %v2270, 16
    %v2272 = vadd.s32 %v2271, %v2269
    %v2273 = vand.u32 %v2088, 65535
    %v2274 = vshra.s32 %v2088, 16
    %v2275 = vcvt.s32.f32 %v2273
    %v2276 = vcvt.s32.f32 %v2274
    %2277 = vmax.xlane.f32.xlu0 %v2276
    %v2278 = vpop.xlane.xlu0 %2277
    %vm2279 = vcmp.eq.f32.partialorder %v2276, %v2278
    %v2280 = vsel %vm2279, %v2275, -inf
    %2281 = vmax.xlane.f32.xlu0 %v2280
    %v2282 = vpop.xlane.xlu0 %2281
    %v2283 = vcvt.f32.s32 %v2282
    %v2284 = vcvt.f32.s32 %v2278
    %v2285 = vshll.u32 %v2284, 16
    %v2286 = vadd.s32 %v2285, %v2283
    %v2287 = vand.u32 %v2089, 65535
    %v2288 = vshra.s32 %v2089, 16
    %v2289 = vcvt.s32.f32 %v2287
    %v2290 = vcvt.s32.f32 %v2288
    %2291 = vmax.xlane.f32.xlu0 %v2290
    %v2292 = vpop.xlane.xlu0 %2291
    %vm2293 = vcmp.eq.f32.partialorder %v2290, %v2292
    %v2294 = vsel %vm2293, %v2289, -inf
    %2295 = vmax.xlane.f32.xlu0 %v2294
    %v2296 = vpop.xlane.xlu0 %2295
    %v2297 = vcvt.f32.s32 %v2296
    %v2298 = vcvt.f32.s32 %v2292
    %v2299 = vshll.u32 %v2298, 16
    %v2300 = vadd.s32 %v2299, %v2297
    %v2301 = vand.u32 %v2090, 65535
    %v2302 = vshra.s32 %v2090, 16
    %v2303 = vcvt.s32.f32 %v2301
    %v2304 = vcvt.s32.f32 %v2302
    %2305 = vmax.xlane.f32.xlu0 %v2304
    %v2306 = vpop.xlane.xlu0 %2305
    %vm2307 = vcmp.eq.f32.partialorder %v2304, %v2306
    %v2308 = vsel %vm2307, %v2303, -inf
    %2309 = vmax.xlane.f32.xlu0 %v2308
    %v2310 = vpop.xlane.xlu0 %2309
    %v2311 = vcvt.f32.s32 %v2310
    %v2312 = vcvt.f32.s32 %v2306
    %v2313 = vshll.u32 %v2312, 16
    %v2314 = vadd.s32 %v2313, %v2311
    %v2315 = vand.u32 %v2104, 127
    %v2316 = vand.u32 %v2118, 127
    %v2317 = vand.u32 %v2132, 127
    %v2318 = vand.u32 %v2146, 127
    %v2319 = vand.u32 %v2160, 127
    %v2320 = vand.u32 %v2174, 127
    %v2321 = vand.u32 %v2188, 127
    %v2322 = vand.u32 %v2202, 127
    %v2323 = vand.u32 %v2216, 127
    %v2324 = vand.u32 %v2230, 127
    %v2325 = vand.u32 %v2244, 127
    %v2326 = vand.u32 %v2258, 127
    %v2327 = vand.u32 %v2272, 127
    %v2328 = vand.u32 %v2286, 127
    %v2329 = vand.u32 %v2300, 127
    %v2330 = vand.u32 %v2314, 127
    %v2331 = vsub.s32 127, %v2315
    %v2332 = vsub.s32 127, %v2316
    %v2333 = vsub.s32 127, %v2317
    %v2334 = vsub.s32 127, %v2318
    %v2335 = vsub.s32 127, %v2319
    %v2336 = vsub.s32 127, %v2320
    %v2337 = vsub.s32 127, %v2321
    %v2338 = vsub.s32 127, %v2322
    %v2339 = vsub.s32 127, %v2323
    %v2340 = vsub.s32 127, %v2324
    %v2341 = vsub.s32 127, %v2325
    %v2342 = vsub.s32 127, %v2326
    %v2343 = vsub.s32 127, %v2327
    %v2344 = vsub.s32 127, %v2328
    %v2345 = vsub.s32 127, %v2329
    %v2346 = vsub.s32 127, %v2330
    %v2347 = vand.u32 %v2104, 4294967168
    %v2348 = vand.u32 %v2118, 4294967168
    %v2349 = vand.u32 %v2132, 4294967168
    %v2350 = vand.u32 %v2146, 4294967168
    %v2351 = vand.u32 %v2160, 4294967168
    %v2352 = vand.u32 %v2174, 4294967168
    %v2353 = vand.u32 %v2188, 4294967168
    %v2354 = vand.u32 %v2202, 4294967168
    %v2355 = vand.u32 %v2216, 4294967168
    %v2356 = vand.u32 %v2230, 4294967168
    %v2357 = vand.u32 %v2244, 4294967168
    %v2358 = vand.u32 %v2258, 4294967168
    %v2359 = vand.u32 %v2272, 4294967168
    %v2360 = vand.u32 %v2286, 4294967168
    %v2361 = vand.u32 %v2300, 4294967168
    %v2362 = vand.u32 %v2314, 4294967168
    %vm2363 = vcmp.lt.s32.totalorder %v2347, 0
    %vm2364 = vcmp.lt.s32.totalorder %v2348, 0
    %vm2365 = vcmp.lt.s32.totalorder %v2349, 0
    %vm2366 = vcmp.lt.s32.totalorder %v2350, 0
    %vm2367 = vcmp.lt.s32.totalorder %v2351, 0
    %vm2368 = vcmp.lt.s32.totalorder %v2352, 0
    %vm2369 = vcmp.lt.s32.totalorder %v2353, 0
    %vm2370 = vcmp.lt.s32.totalorder %v2354, 0
    %vm2371 = vcmp.lt.s32.totalorder %v2355, 0
    %vm2372 = vcmp.lt.s32.totalorder %v2356, 0
    %vm2373 = vcmp.lt.s32.totalorder %v2357, 0
    %vm2374 = vcmp.lt.s32.totalorder %v2358, 0
    %vm2375 = vcmp.lt.s32.totalorder %v2359, 0
    %vm2376 = vcmp.lt.s32.totalorder %v2360, 0
    %vm2377 = vcmp.lt.s32.totalorder %v2361, 0
    %vm2378 = vcmp.lt.s32.totalorder %v2362, 0
    %v2379 = vsub.s32 2147483648, %v2347
    %v2380 = vsub.s32 2147483648, %v2348
    %v2381 = vsub.s32 2147483648, %v2349
    %v2382 = vsub.s32 2147483648, %v2350
    %v2383 = vsub.s32 2147483648, %v2351
    %v2384 = vsub.s32 2147483648, %v2352
    %v2385 = vsub.s32 2147483648, %v2353
    %v2386 = vsub.s32 2147483648, %v2354
    %v2387 = vsub.s32 2147483648, %v2355
    %v2388 = vsub.s32 2147483648, %v2356
    %v2389 = vsub.s32 2147483648, %v2357
    %v2390 = vsub.s32 2147483648, %v2358
    %v2391 = vsub.s32 2147483648, %v2359
    %v2392 = vsub.s32 2147483648, %v2360
    %v2393 = vsub.s32 2147483648, %v2361
    %v2394 = vsub.s32 2147483648, %v2362
    %v2395 = vsel %vm2363, %v2379, %v2347
    %v2396 = vsel %vm2364, %v2380, %v2348
    %v2397 = vsel %vm2365, %v2381, %v2349
    %v2398 = vsel %vm2366, %v2382, %v2350
    %v2399 = vsel %vm2367, %v2383, %v2351
    %v2400 = vsel %vm2368, %v2384, %v2352
    %v2401 = vsel %vm2369, %v2385, %v2353
    %v2402 = vsel %vm2370, %v2386, %v2354
    %v2403 = vsel %vm2371, %v2387, %v2355
    %v2404 = vsel %vm2372, %v2388, %v2356
    %v2405 = vsel %vm2373, %v2389, %v2357
    %v2406 = vsel %vm2374, %v2390, %v2358
    %v2407 = vsel %vm2375, %v2391, %v2359
    %v2408 = vsel %vm2376, %v2392, %v2360
    %v2409 = vsel %vm2377, %v2393, %v2361
    %v2410 = vsel %vm2378, %v2394, %v2362
    %vm2427 = vcmp.eq.s32.totalorder %v372, 4
    %v2428 = vsel %vm2427, %v2395, %v2027
    %v2429 = vsel %vm2427, %v2396, %v2028
    %v2430 = vsel %vm2427, %v2397, %v2029
    %v2431 = vsel %vm2427, %v2398, %v2030
    %v2432 = vsel %vm2427, %v2399, %v2031
    %v2433 = vsel %vm2427, %v2400, %v2032
    %v2434 = vsel %vm2427, %v2401, %v2033
    %v2435 = vsel %vm2427, %v2402, %v2034
    %v2436 = vsel %vm2427, %v2403, %v2035
    %v2437 = vsel %vm2427, %v2404, %v2036
    %v2438 = vsel %vm2427, %v2405, %v2037
    %v2439 = vsel %vm2427, %v2406, %v2038
    %v2440 = vsel %vm2427, %v2407, %v2039
    %v2441 = vsel %vm2427, %v2408, %v2040
    %v2442 = vsel %vm2427, %v2409, %v2041
    %v2443 = vsel %vm2427, %v2410, %v2042
    %v2444 = vsel %vm2427, %v2331, %v2043
    %v2445 = vsel %vm2427, %v2332, %v2044
    %v2446 = vsel %vm2427, %v2333, %v2045
    %v2447 = vsel %vm2427, %v2334, %v2046
    %v2448 = vsel %vm2427, %v2335, %v2047
    %v2449 = vsel %vm2427, %v2336, %v2048
    %v2450 = vsel %vm2427, %v2337, %v2049
    %v2451 = vsel %vm2427, %v2338, %v2050
    %v2452 = vsel %vm2427, %v2339, %v2051
    %v2453 = vsel %vm2427, %v2340, %v2052
    %v2454 = vsel %vm2427, %v2341, %v2053
    %v2455 = vsel %vm2427, %v2342, %v2054
    %v2456 = vsel %vm2427, %v2343, %v2055
    %v2457 = vsel %vm2427, %v2344, %v2056
    %v2458 = vsel %vm2427, %v2345, %v2057
    %v2459 = vsel %vm2427, %v2346, %v2058
    %vm2460 = vcmp.eq.s32.totalorder %v372, %v2331
    %vm2461 = vcmp.eq.s32.totalorder %v372, %v2332
    %vm2462 = vcmp.eq.s32.totalorder %v372, %v2333
    %vm2463 = vcmp.eq.s32.totalorder %v372, %v2334
    %vm2464 = vcmp.eq.s32.totalorder %v372, %v2335
    %vm2465 = vcmp.eq.s32.totalorder %v372, %v2336
    %vm2466 = vcmp.eq.s32.totalorder %v372, %v2337
    %vm2467 = vcmp.eq.s32.totalorder %v372, %v2338
    %vm2468 = vcmp.eq.s32.totalorder %v372, %v2339
    %vm2469 = vcmp.eq.s32.totalorder %v372, %v2340
    %vm2470 = vcmp.eq.s32.totalorder %v372, %v2341
    %vm2471 = vcmp.eq.s32.totalorder %v372, %v2342
    %vm2472 = vcmp.eq.s32.totalorder %v372, %v2343
    %vm2473 = vcmp.eq.s32.totalorder %v372, %v2344
    %vm2474 = vcmp.eq.s32.totalorder %v372, %v2345
    %vm2475 = vcmp.eq.s32.totalorder %v372, %v2346
    %v2476 = vsel %vm2460, 2147483648, %v2075
    %v2477 = vsel %vm2461, 2147483648, %v2076
    %v2478 = vsel %vm2462, 2147483648, %v2077
    %v2479 = vsel %vm2463, 2147483648, %v2078
    %v2480 = vsel %vm2464, 2147483648, %v2079
    %v2481 = vsel %vm2465, 2147483648, %v2080
    %v2482 = vsel %vm2466, 2147483648, %v2081
    %v2483 = vsel %vm2467, 2147483648, %v2082
    %v2484 = vsel %vm2468, 2147483648, %v2083
    %v2485 = vsel %vm2469, 2147483648, %v2084
    %v2486 = vsel %vm2470, 2147483648, %v2085
    %v2487 = vsel %vm2471, 2147483648, %v2086
    %v2488 = vsel %vm2472, 2147483648, %v2087
    %v2489 = vsel %vm2473, 2147483648, %v2088
    %v2490 = vsel %vm2474, 2147483648, %v2089
    %v2491 = vsel %vm2475, 2147483648, %v2090
    %v2492 = vand.u32 %v2476, 65535
    %v2493 = vshra.s32 %v2476, 16
    %v2494 = vcvt.s32.f32 %v2492
    %v2495 = vcvt.s32.f32 %v2493
    %2496 = vmax.xlane.f32.xlu0 %v2495
    %v2497 = vpop.xlane.xlu0 %2496
    %vm2498 = vcmp.eq.f32.partialorder %v2495, %v2497
    %v2499 = vsel %vm2498, %v2494, -inf
    %2500 = vmax.xlane.f32.xlu0 %v2499
    %v2501 = vpop.xlane.xlu0 %2500
    %v2502 = vcvt.f32.s32 %v2501
    %v2503 = vcvt.f32.s32 %v2497
    %v2504 = vshll.u32 %v2503, 16
    %v2505 = vadd.s32 %v2504, %v2502
    %v2506 = vand.u32 %v2477, 65535
    %v2507 = vshra.s32 %v2477, 16
    %v2508 = vcvt.s32.f32 %v2506
    %v2509 = vcvt.s32.f32 %v2507
    %2510 = vmax.xlane.f32.xlu0 %v2509
    %v2511 = vpop.xlane.xlu0 %2510
    %vm2512 = vcmp.eq.f32.partialorder %v2509, %v2511
    %v2513 = vsel %vm2512, %v2508, -inf
    %2514 = vmax.xlane.f32.xlu0 %v2513
    %v2515 = vpop.xlane.xlu0 %2514
    %v2516 = vcvt.f32.s32 %v2515
    %v2517 = vcvt.f32.s32 %v2511
    %v2518 = vshll.u32 %v2517, 16
    %v2519 = vadd.s32 %v2518, %v2516
    %v2520 = vand.u32 %v2478, 65535
    %v2521 = vshra.s32 %v2478, 16
    %v2522 = vcvt.s32.f32 %v2520
    %v2523 = vcvt.s32.f32 %v2521
    %2524 = vmax.xlane.f32.xlu0 %v2523
    %v2525 = vpop.xlane.xlu0 %2524
    %vm2526 = vcmp.eq.f32.partialorder %v2523, %v2525
    %v2527 = vsel %vm2526, %v2522, -inf
    %2528 = vmax.xlane.f32.xlu0 %v2527
    %v2529 = vpop.xlane.xlu0 %2528
    %v2530 = vcvt.f32.s32 %v2529
    %v2531 = vcvt.f32.s32 %v2525
    %v2532 = vshll.u32 %v2531, 16
    %v2533 = vadd.s32 %v2532, %v2530
    %v2534 = vand.u32 %v2479, 65535
    %v2535 = vshra.s32 %v2479, 16
    %v2536 = vcvt.s32.f32 %v2534
    %v2537 = vcvt.s32.f32 %v2535
    %2538 = vmax.xlane.f32.xlu0 %v2537
    %v2539 = vpop.xlane.xlu0 %2538
    %vm2540 = vcmp.eq.f32.partialorder %v2537, %v2539
    %v2541 = vsel %vm2540, %v2536, -inf
    %2542 = vmax.xlane.f32.xlu0 %v2541
    %v2543 = vpop.xlane.xlu0 %2542
    %v2544 = vcvt.f32.s32 %v2543
    %v2545 = vcvt.f32.s32 %v2539
    %v2546 = vshll.u32 %v2545, 16
    %v2547 = vadd.s32 %v2546, %v2544
    %v2548 = vand.u32 %v2480, 65535
    %v2549 = vshra.s32 %v2480, 16
    %v2550 = vcvt.s32.f32 %v2548
    %v2551 = vcvt.s32.f32 %v2549
    %2552 = vmax.xlane.f32.xlu0 %v2551
    %v2553 = vpop.xlane.xlu0 %2552
    %vm2554 = vcmp.eq.f32.partialorder %v2551, %v2553
    %v2555 = vsel %vm2554, %v2550, -inf
    %2556 = vmax.xlane.f32.xlu0 %v2555
    %v2557 = vpop.xlane.xlu0 %2556
    %v2558 = vcvt.f32.s32 %v2557
    %v2559 = vcvt.f32.s32 %v2553
    %v2560 = vshll.u32 %v2559, 16
    %v2561 = vadd.s32 %v2560, %v2558
    %v2562 = vand.u32 %v2481, 65535
    %v2563 = vshra.s32 %v2481, 16
    %v2564 = vcvt.s32.f32 %v2562
    %v2565 = vcvt.s32.f32 %v2563
    %2566 = vmax.xlane.f32.xlu0 %v2565
    %v2567 = vpop.xlane.xlu0 %2566
    %vm2568 = vcmp.eq.f32.partialorder %v2565, %v2567
    %v2569 = vsel %vm2568, %v2564, -inf
    %2570 = vmax.xlane.f32.xlu0 %v2569
    %v2571 = vpop.xlane.xlu0 %2570
    %v2572 = vcvt.f32.s32 %v2571
    %v2573 = vcvt.f32.s32 %v2567
    %v2574 = vshll.u32 %v2573, 16
    %v2575 = vadd.s32 %v2574, %v2572
    %v2576 = vand.u32 %v2482, 65535
    %v2577 = vshra.s32 %v2482, 16
    %v2578 = vcvt.s32.f32 %v2576
    %v2579 = vcvt.s32.f32 %v2577
    %2580 = vmax.xlane.f32.xlu0 %v2579
    %v2581 = vpop.xlane.xlu0 %2580
    %vm2582 = vcmp.eq.f32.partialorder %v2579, %v2581
    %v2583 = vsel %vm2582, %v2578, -inf
    %2584 = vmax.xlane.f32.xlu0 %v2583
    %v2585 = vpop.xlane.xlu0 %2584
    %v2586 = vcvt.f32.s32 %v2585
    %v2587 = vcvt.f32.s32 %v2581
    %v2588 = vshll.u32 %v2587, 16
    %v2589 = vadd.s32 %v2588, %v2586
    %v2590 = vand.u32 %v2483, 65535
    %v2591 = vshra.s32 %v2483, 16
    %v2592 = vcvt.s32.f32 %v2590
    %v2593 = vcvt.s32.f32 %v2591
    %2594 = vmax.xlane.f32.xlu0 %v2593
    %v2595 = vpop.xlane.xlu0 %2594
    %vm2596 = vcmp.eq.f32.partialorder %v2593, %v2595
    %v2597 = vsel %vm2596, %v2592, -inf
    %2598 = vmax.xlane.f32.xlu0 %v2597
    %v2599 = vpop.xlane.xlu0 %2598
    %v2600 = vcvt.f32.s32 %v2599
    %v2601 = vcvt.f32.s32 %v2595
    %v2602 = vshll.u32 %v2601, 16
    %v2603 = vadd.s32 %v2602, %v2600
    %v2604 = vand.u32 %v2484, 65535
    %v2605 = vshra.s32 %v2484, 16
    %v2606 = vcvt.s32.f32 %v2604
    %v2607 = vcvt.s32.f32 %v2605
    %2608 = vmax.xlane.f32.xlu0 %v2607
    %v2609 = vpop.xlane.xlu0 %2608
    %vm2610 = vcmp.eq.f32.partialorder %v2607, %v2609
    %v2611 = vsel %vm2610, %v2606, -inf
    %2612 = vmax.xlane.f32.xlu0 %v2611
    %v2613 = vpop.xlane.xlu0 %2612
    %v2614 = vcvt.f32.s32 %v2613
    %v2615 = vcvt.f32.s32 %v2609
    %v2616 = vshll.u32 %v2615, 16
    %v2617 = vadd.s32 %v2616, %v2614
    %v2618 = vand.u32 %v2485, 65535
    %v2619 = vshra.s32 %v2485, 16
    %v2620 = vcvt.s32.f32 %v2618
    %v2621 = vcvt.s32.f32 %v2619
    %2622 = vmax.xlane.f32.xlu0 %v2621
    %v2623 = vpop.xlane.xlu0 %2622
    %vm2624 = vcmp.eq.f32.partialorder %v2621, %v2623
    %v2625 = vsel %vm2624, %v2620, -inf
    %2626 = vmax.xlane.f32.xlu0 %v2625
    %v2627 = vpop.xlane.xlu0 %2626
    %v2628 = vcvt.f32.s32 %v2627
    %v2629 = vcvt.f32.s32 %v2623
    %v2630 = vshll.u32 %v2629, 16
    %v2631 = vadd.s32 %v2630, %v2628
    %v2632 = vand.u32 %v2486, 65535
    %v2633 = vshra.s32 %v2486, 16
    %v2634 = vcvt.s32.f32 %v2632
    %v2635 = vcvt.s32.f32 %v2633
    %2636 = vmax.xlane.f32.xlu0 %v2635
    %v2637 = vpop.xlane.xlu0 %2636
    %vm2638 = vcmp.eq.f32.partialorder %v2635, %v2637
    %v2639 = vsel %vm2638, %v2634, -inf
    %2640 = vmax.xlane.f32.xlu0 %v2639
    %v2641 = vpop.xlane.xlu0 %2640
    %v2642 = vcvt.f32.s32 %v2641
    %v2643 = vcvt.f32.s32 %v2637
    %v2644 = vshll.u32 %v2643, 16
    %v2645 = vadd.s32 %v2644, %v2642
    %v2646 = vand.u32 %v2487, 65535
    %v2647 = vshra.s32 %v2487, 16
    %v2648 = vcvt.s32.f32 %v2646
    %v2649 = vcvt.s32.f32 %v2647
    %2650 = vmax.xlane.f32.xlu0 %v2649
    %v2651 = vpop.xlane.xlu0 %2650
    %vm2652 = vcmp.eq.f32.partialorder %v2649, %v2651
    %v2653 = vsel %vm2652, %v2648, -inf
    %2654 = vmax.xlane.f32.xlu0 %v2653
    %v2655 = vpop.xlane.xlu0 %2654
    %v2656 = vcvt.f32.s32 %v2655
    %v2657 = vcvt.f32.s32 %v2651
    %v2658 = vshll.u32 %v2657, 16
    %v2659 = vadd.s32 %v2658, %v2656
    %v2660 = vand.u32 %v2488, 65535
    %v2661 = vshra.s32 %v2488, 16
    %v2662 = vcvt.s32.f32 %v2660
    %v2663 = vcvt.s32.f32 %v2661
    %2664 = vmax.xlane.f32.xlu0 %v2663
    %v2665 = vpop.xlane.xlu0 %2664
    %vm2666 = vcmp.eq.f32.partialorder %v2663, %v2665
    %v2667 = vsel %vm2666, %v2662, -inf
    %2668 = vmax.xlane.f32.xlu0 %v2667
    %v2669 = vpop.xlane.xlu0 %2668
    %v2670 = vcvt.f32.s32 %v2669
    %v2671 = vcvt.f32.s32 %v2665
    %v2672 = vshll.u32 %v2671, 16
    %v2673 = vadd.s32 %v2672, %v2670
    %v2674 = vand.u32 %v2489, 65535
    %v2675 = vshra.s32 %v2489, 16
    %v2676 = vcvt.s32.f32 %v2674
    %v2677 = vcvt.s32.f32 %v2675
    %2678 = vmax.xlane.f32.xlu0 %v2677
    %v2679 = vpop.xlane.xlu0 %2678
    %vm2680 = vcmp.eq.f32.partialorder %v2677, %v2679
    %v2681 = vsel %vm2680, %v2676, -inf
    %2682 = vmax.xlane.f32.xlu0 %v2681
    %v2683 = vpop.xlane.xlu0 %2682
    %v2684 = vcvt.f32.s32 %v2683
    %v2685 = vcvt.f32.s32 %v2679
    %v2686 = vshll.u32 %v2685, 16
    %v2687 = vadd.s32 %v2686, %v2684
    %v2688 = vand.u32 %v2490, 65535
    %v2689 = vshra.s32 %v2490, 16
    %v2690 = vcvt.s32.f32 %v2688
    %v2691 = vcvt.s32.f32 %v2689
    %2692 = vmax.xlane.f32.xlu0 %v2691
    %v2693 = vpop.xlane.xlu0 %2692
    %vm2694 = vcmp.eq.f32.partialorder %v2691, %v2693
    %v2695 = vsel %vm2694, %v2690, -inf
    %2696 = vmax.xlane.f32.xlu0 %v2695
    %v2697 = vpop.xlane.xlu0 %2696
    %v2698 = vcvt.f32.s32 %v2697
    %v2699 = vcvt.f32.s32 %v2693
    %v2700 = vshll.u32 %v2699, 16
    %v2701 = vadd.s32 %v2700, %v2698
    %v2702 = vand.u32 %v2491, 65535
    %v2703 = vshra.s32 %v2491, 16
    %v2704 = vcvt.s32.f32 %v2702
    %v2705 = vcvt.s32.f32 %v2703
    %2706 = vmax.xlane.f32.xlu0 %v2705
    %v2707 = vpop.xlane.xlu0 %2706
    %vm2708 = vcmp.eq.f32.partialorder %v2705, %v2707
    %v2709 = vsel %vm2708, %v2704, -inf
    %2710 = vmax.xlane.f32.xlu0 %v2709
    %v2711 = vpop.xlane.xlu0 %2710
    %v2712 = vcvt.f32.s32 %v2711
    %v2713 = vcvt.f32.s32 %v2707
    %v2714 = vshll.u32 %v2713, 16
    %v2715 = vadd.s32 %v2714, %v2712
    %v2716 = vand.u32 %v2505, 127
    %v2717 = vand.u32 %v2519, 127
    %v2718 = vand.u32 %v2533, 127
    %v2719 = vand.u32 %v2547, 127
    %v2720 = vand.u32 %v2561, 127
    %v2721 = vand.u32 %v2575, 127
    %v2722 = vand.u32 %v2589, 127
    %v2723 = vand.u32 %v2603, 127
    %v2724 = vand.u32 %v2617, 127
    %v2725 = vand.u32 %v2631, 127
    %v2726 = vand.u32 %v2645, 127
    %v2727 = vand.u32 %v2659, 127
    %v2728 = vand.u32 %v2673, 127
    %v2729 = vand.u32 %v2687, 127
    %v2730 = vand.u32 %v2701, 127
    %v2731 = vand.u32 %v2715, 127
    %v2732 = vsub.s32 127, %v2716
    %v2733 = vsub.s32 127, %v2717
    %v2734 = vsub.s32 127, %v2718
    %v2735 = vsub.s32 127, %v2719
    %v2736 = vsub.s32 127, %v2720
    %v2737 = vsub.s32 127, %v2721
    %v2738 = vsub.s32 127, %v2722
    %v2739 = vsub.s32 127, %v2723
    %v2740 = vsub.s32 127, %v2724
    %v2741 = vsub.s32 127, %v2725
    %v2742 = vsub.s32 127, %v2726
    %v2743 = vsub.s32 127, %v2727
    %v2744 = vsub.s32 127, %v2728
    %v2745 = vsub.s32 127, %v2729
    %v2746 = vsub.s32 127, %v2730
    %v2747 = vsub.s32 127, %v2731
    %v2748 = vand.u32 %v2505, 4294967168
    %v2749 = vand.u32 %v2519, 4294967168
    %v2750 = vand.u32 %v2533, 4294967168
    %v2751 = vand.u32 %v2547, 4294967168
    %v2752 = vand.u32 %v2561, 4294967168
    %v2753 = vand.u32 %v2575, 4294967168
    %v2754 = vand.u32 %v2589, 4294967168
    %v2755 = vand.u32 %v2603, 4294967168
    %v2756 = vand.u32 %v2617, 4294967168
    %v2757 = vand.u32 %v2631, 4294967168
    %v2758 = vand.u32 %v2645, 4294967168
    %v2759 = vand.u32 %v2659, 4294967168
    %v2760 = vand.u32 %v2673, 4294967168
    %v2761 = vand.u32 %v2687, 4294967168
    %v2762 = vand.u32 %v2701, 4294967168
    %v2763 = vand.u32 %v2715, 4294967168
    %vm2764 = vcmp.lt.s32.totalorder %v2748, 0
    %vm2765 = vcmp.lt.s32.totalorder %v2749, 0
    %vm2766 = vcmp.lt.s32.totalorder %v2750, 0
    %vm2767 = vcmp.lt.s32.totalorder %v2751, 0
    %vm2768 = vcmp.lt.s32.totalorder %v2752, 0
    %vm2769 = vcmp.lt.s32.totalorder %v2753, 0
    %vm2770 = vcmp.lt.s32.totalorder %v2754, 0
    %vm2771 = vcmp.lt.s32.totalorder %v2755, 0
    %vm2772 = vcmp.lt.s32.totalorder %v2756, 0
    %vm2773 = vcmp.lt.s32.totalorder %v2757, 0
    %vm2774 = vcmp.lt.s32.totalorder %v2758, 0
    %vm2775 = vcmp.lt.s32.totalorder %v2759, 0
    %vm2776 = vcmp.lt.s32.totalorder %v2760, 0
    %vm2777 = vcmp.lt.s32.totalorder %v2761, 0
    %vm2778 = vcmp.lt.s32.totalorder %v2762, 0
    %vm2779 = vcmp.lt.s32.totalorder %v2763, 0
    %v2780 = vsub.s32 2147483648, %v2748
    %v2781 = vsub.s32 2147483648, %v2749
    %v2782 = vsub.s32 2147483648, %v2750
    %v2783 = vsub.s32 2147483648, %v2751
    %v2784 = vsub.s32 2147483648, %v2752
    %v2785 = vsub.s32 2147483648, %v2753
    %v2786 = vsub.s32 2147483648, %v2754
    %v2787 = vsub.s32 2147483648, %v2755
    %v2788 = vsub.s32 2147483648, %v2756
    %v2789 = vsub.s32 2147483648, %v2757
    %v2790 = vsub.s32 2147483648, %v2758
    %v2791 = vsub.s32 2147483648, %v2759
    %v2792 = vsub.s32 2147483648, %v2760
    %v2793 = vsub.s32 2147483648, %v2761
    %v2794 = vsub.s32 2147483648, %v2762
    %v2795 = vsub.s32 2147483648, %v2763
    %v2796 = vsel %vm2764, %v2780, %v2748
    %v2797 = vsel %vm2765, %v2781, %v2749
    %v2798 = vsel %vm2766, %v2782, %v2750
    %v2799 = vsel %vm2767, %v2783, %v2751
    %v2800 = vsel %vm2768, %v2784, %v2752
    %v2801 = vsel %vm2769, %v2785, %v2753
    %v2802 = vsel %vm2770, %v2786, %v2754
    %v2803 = vsel %vm2771, %v2787, %v2755
    %v2804 = vsel %vm2772, %v2788, %v2756
    %v2805 = vsel %vm2773, %v2789, %v2757
    %v2806 = vsel %vm2774, %v2790, %v2758
    %v2807 = vsel %vm2775, %v2791, %v2759
    %v2808 = vsel %vm2776, %v2792, %v2760
    %v2809 = vsel %vm2777, %v2793, %v2761
    %v2810 = vsel %vm2778, %v2794, %v2762
    %v2811 = vsel %vm2779, %v2795, %v2763
    %vm2828 = vcmp.eq.s32.totalorder %v372, 5
    %v2829 = vsel %vm2828, %v2796, %v2428
    %v2830 = vsel %vm2828, %v2797, %v2429
    %v2831 = vsel %vm2828, %v2798, %v2430
    %v2832 = vsel %vm2828, %v2799, %v2431
    %v2833 = vsel %vm2828, %v2800, %v2432
    %v2834 = vsel %vm2828, %v2801, %v2433
    %v2835 = vsel %vm2828, %v2802, %v2434
    %v2836 = vsel %vm2828, %v2803, %v2435
    %v2837 = vsel %vm2828, %v2804, %v2436
    %v2838 = vsel %vm2828, %v2805, %v2437
    %v2839 = vsel %vm2828, %v2806, %v2438
    %v2840 = vsel %vm2828, %v2807, %v2439
    %v2841 = vsel %vm2828, %v2808, %v2440
    %v2842 = vsel %vm2828, %v2809, %v2441
    %v2843 = vsel %vm2828, %v2810, %v2442
    %v2844 = vsel %vm2828, %v2811, %v2443
    %v2845 = vsel %vm2828, %v2732, %v2444
    %v2846 = vsel %vm2828, %v2733, %v2445
    %v2847 = vsel %vm2828, %v2734, %v2446
    %v2848 = vsel %vm2828, %v2735, %v2447
    %v2849 = vsel %vm2828, %v2736, %v2448
    %v2850 = vsel %vm2828, %v2737, %v2449
    %v2851 = vsel %vm2828, %v2738, %v2450
    %v2852 = vsel %vm2828, %v2739, %v2451
    %v2853 = vsel %vm2828, %v2740, %v2452
    %v2854 = vsel %vm2828, %v2741, %v2453
    %v2855 = vsel %vm2828, %v2742, %v2454
    %v2856 = vsel %vm2828, %v2743, %v2455
    %v2857 = vsel %vm2828, %v2744, %v2456
    %v2858 = vsel %vm2828, %v2745, %v2457
    %v2859 = vsel %vm2828, %v2746, %v2458
    %v2860 = vsel %vm2828, %v2747, %v2459
    %vm2861 = vcmp.eq.s32.totalorder %v372, %v2732
    %vm2862 = vcmp.eq.s32.totalorder %v372, %v2733
    %vm2863 = vcmp.eq.s32.totalorder %v372, %v2734
    %vm2864 = vcmp.eq.s32.totalorder %v372, %v2735
    %vm2865 = vcmp.eq.s32.totalorder %v372, %v2736
    %vm2866 = vcmp.eq.s32.totalorder %v372, %v2737
    %vm2867 = vcmp.eq.s32.totalorder %v372, %v2738
    %vm2868 = vcmp.eq.s32.totalorder %v372, %v2739
    %vm2869 = vcmp.eq.s32.totalorder %v372, %v2740
    %vm2870 = vcmp.eq.s32.totalorder %v372, %v2741
    %vm2871 = vcmp.eq.s32.totalorder %v372, %v2742
    %vm2872 = vcmp.eq.s32.totalorder %v372, %v2743
    %vm2873 = vcmp.eq.s32.totalorder %v372, %v2744
    %vm2874 = vcmp.eq.s32.totalorder %v372, %v2745
    %vm2875 = vcmp.eq.s32.totalorder %v372, %v2746
    %vm2876 = vcmp.eq.s32.totalorder %v372, %v2747
    %v2877 = vsel %vm2861, 2147483648, %v2476
    %v2878 = vsel %vm2862, 2147483648, %v2477
    %v2879 = vsel %vm2863, 2147483648, %v2478
    %v2880 = vsel %vm2864, 2147483648, %v2479
    %v2881 = vsel %vm2865, 2147483648, %v2480
    %v2882 = vsel %vm2866, 2147483648, %v2481
    %v2883 = vsel %vm2867, 2147483648, %v2482
    %v2884 = vsel %vm2868, 2147483648, %v2483
    %v2885 = vsel %vm2869, 2147483648, %v2484
    %v2886 = vsel %vm2870, 2147483648, %v2485
    %v2887 = vsel %vm2871, 2147483648, %v2486
    %v2888 = vsel %vm2872, 2147483648, %v2487
    %v2889 = vsel %vm2873, 2147483648, %v2488
    %v2890 = vsel %vm2874, 2147483648, %v2489
    %v2891 = vsel %vm2875, 2147483648, %v2490
    %v2892 = vsel %vm2876, 2147483648, %v2491
    %v2893 = vand.u32 %v2877, 65535
    %v2894 = vshra.s32 %v2877, 16
    %v2895 = vcvt.s32.f32 %v2893
    %v2896 = vcvt.s32.f32 %v2894
    %2897 = vmax.xlane.f32.xlu0 %v2896
    %v2898 = vpop.xlane.xlu0 %2897
    %vm2899 = vcmp.eq.f32.partialorder %v2896, %v2898
    %v2900 = vsel %vm2899, %v2895, -inf
    %2901 = vmax.xlane.f32.xlu0 %v2900
    %v2902 = vpop.xlane.xlu0 %2901
    %v2903 = vcvt.f32.s32 %v2902
    %v2904 = vcvt.f32.s32 %v2898
    %v2905 = vshll.u32 %v2904, 16
    %v2906 = vadd.s32 %v2905, %v2903
    %v2907 = vand.u32 %v2878, 65535
    %v2908 = vshra.s32 %v2878, 16
    %v2909 = vcvt.s32.f32 %v2907
    %v2910 = vcvt.s32.f32 %v2908
    %2911 = vmax.xlane.f32.xlu0 %v2910
    %v2912 = vpop.xlane.xlu0 %2911
    %vm2913 = vcmp.eq.f32.partialorder %v2910, %v2912
    %v2914 = vsel %vm2913, %v2909, -inf
    %2915 = vmax.xlane.f32.xlu0 %v2914
    %v2916 = vpop.xlane.xlu0 %2915
    %v2917 = vcvt.f32.s32 %v2916
    %v2918 = vcvt.f32.s32 %v2912
    %v2919 = vshll.u32 %v2918, 16
    %v2920 = vadd.s32 %v2919, %v2917
    %v2921 = vand.u32 %v2879, 65535
    %v2922 = vshra.s32 %v2879, 16
    %v2923 = vcvt.s32.f32 %v2921
    %v2924 = vcvt.s32.f32 %v2922
    %2925 = vmax.xlane.f32.xlu0 %v2924
    %v2926 = vpop.xlane.xlu0 %2925
    %vm2927 = vcmp.eq.f32.partialorder %v2924, %v2926
    %v2928 = vsel %vm2927, %v2923, -inf
    %2929 = vmax.xlane.f32.xlu0 %v2928
    %v2930 = vpop.xlane.xlu0 %2929
    %v2931 = vcvt.f32.s32 %v2930
    %v2932 = vcvt.f32.s32 %v2926
    %v2933 = vshll.u32 %v2932, 16
    %v2934 = vadd.s32 %v2933, %v2931
    %v2935 = vand.u32 %v2880, 65535
    %v2936 = vshra.s32 %v2880, 16
    %v2937 = vcvt.s32.f32 %v2935
    %v2938 = vcvt.s32.f32 %v2936
    %2939 = vmax.xlane.f32.xlu0 %v2938
    %v2940 = vpop.xlane.xlu0 %2939
    %vm2941 = vcmp.eq.f32.partialorder %v2938, %v2940
    %v2942 = vsel %vm2941, %v2937, -inf
    %2943 = vmax.xlane.f32.xlu0 %v2942
    %v2944 = vpop.xlane.xlu0 %2943
    %v2945 = vcvt.f32.s32 %v2944
    %v2946 = vcvt.f32.s32 %v2940
    %v2947 = vshll.u32 %v2946, 16
    %v2948 = vadd.s32 %v2947, %v2945
    %v2949 = vand.u32 %v2881, 65535
    %v2950 = vshra.s32 %v2881, 16
    %v2951 = vcvt.s32.f32 %v2949
    %v2952 = vcvt.s32.f32 %v2950
    %2953 = vmax.xlane.f32.xlu0 %v2952
    %v2954 = vpop.xlane.xlu0 %2953
    %vm2955 = vcmp.eq.f32.partialorder %v2952, %v2954
    %v2956 = vsel %vm2955, %v2951, -inf
    %2957 = vmax.xlane.f32.xlu0 %v2956
    %v2958 = vpop.xlane.xlu0 %2957
    %v2959 = vcvt.f32.s32 %v2958
    %v2960 = vcvt.f32.s32 %v2954
    %v2961 = vshll.u32 %v2960, 16
    %v2962 = vadd.s32 %v2961, %v2959
    %v2963 = vand.u32 %v2882, 65535
    %v2964 = vshra.s32 %v2882, 16
    %v2965 = vcvt.s32.f32 %v2963
    %v2966 = vcvt.s32.f32 %v2964
    %2967 = vmax.xlane.f32.xlu0 %v2966
    %v2968 = vpop.xlane.xlu0 %2967
    %vm2969 = vcmp.eq.f32.partialorder %v2966, %v2968
    %v2970 = vsel %vm2969, %v2965, -inf
    %2971 = vmax.xlane.f32.xlu0 %v2970
    %v2972 = vpop.xlane.xlu0 %2971
    %v2973 = vcvt.f32.s32 %v2972
    %v2974 = vcvt.f32.s32 %v2968
    %v2975 = vshll.u32 %v2974, 16
    %v2976 = vadd.s32 %v2975, %v2973
    %v2977 = vand.u32 %v2883, 65535
    %v2978 = vshra.s32 %v2883, 16
    %v2979 = vcvt.s32.f32 %v2977
    %v2980 = vcvt.s32.f32 %v2978
    %2981 = vmax.xlane.f32.xlu0 %v2980
    %v2982 = vpop.xlane.xlu0 %2981
    %vm2983 = vcmp.eq.f32.partialorder %v2980, %v2982
    %v2984 = vsel %vm2983, %v2979, -inf
    %2985 = vmax.xlane.f32.xlu0 %v2984
    %v2986 = vpop.xlane.xlu0 %2985
    %v2987 = vcvt.f32.s32 %v2986
    %v2988 = vcvt.f32.s32 %v2982
    %v2989 = vshll.u32 %v2988, 16
    %v2990 = vadd.s32 %v2989, %v2987
    %v2991 = vand.u32 %v2884, 65535
    %v2992 = vshra.s32 %v2884, 16
    %v2993 = vcvt.s32.f32 %v2991
    %v2994 = vcvt.s32.f32 %v2992
    %2995 = vmax.xlane.f32.xlu0 %v2994
    %v2996 = vpop.xlane.xlu0 %2995
    %vm2997 = vcmp.eq.f32.partialorder %v2994, %v2996
    %v2998 = vsel %vm2997, %v2993, -inf
    %2999 = vmax.xlane.f32.xlu0 %v2998
    %v3000 = vpop.xlane.xlu0 %2999
    %v3001 = vcvt.f32.s32 %v3000
    %v3002 = vcvt.f32.s32 %v2996
    %v3003 = vshll.u32 %v3002, 16
    %v3004 = vadd.s32 %v3003, %v3001
    %v3005 = vand.u32 %v2885, 65535
    %v3006 = vshra.s32 %v2885, 16
    %v3007 = vcvt.s32.f32 %v3005
    %v3008 = vcvt.s32.f32 %v3006
    %3009 = vmax.xlane.f32.xlu0 %v3008
    %v3010 = vpop.xlane.xlu0 %3009
    %vm3011 = vcmp.eq.f32.partialorder %v3008, %v3010
    %v3012 = vsel %vm3011, %v3007, -inf
    %3013 = vmax.xlane.f32.xlu0 %v3012
    %v3014 = vpop.xlane.xlu0 %3013
    %v3015 = vcvt.f32.s32 %v3014
    %v3016 = vcvt.f32.s32 %v3010
    %v3017 = vshll.u32 %v3016, 16
    %v3018 = vadd.s32 %v3017, %v3015
    %v3019 = vand.u32 %v2886, 65535
    %v3020 = vshra.s32 %v2886, 16
    %v3021 = vcvt.s32.f32 %v3019
    %v3022 = vcvt.s32.f32 %v3020
    %3023 = vmax.xlane.f32.xlu0 %v3022
    %v3024 = vpop.xlane.xlu0 %3023
    %vm3025 = vcmp.eq.f32.partialorder %v3022, %v3024
    %v3026 = vsel %vm3025, %v3021, -inf
    %3027 = vmax.xlane.f32.xlu0 %v3026
    %v3028 = vpop.xlane.xlu0 %3027
    %v3029 = vcvt.f32.s32 %v3028
    %v3030 = vcvt.f32.s32 %v3024
    %v3031 = vshll.u32 %v3030, 16
    %v3032 = vadd.s32 %v3031, %v3029
    %v3033 = vand.u32 %v2887, 65535
    %v3034 = vshra.s32 %v2887, 16
    %v3035 = vcvt.s32.f32 %v3033
    %v3036 = vcvt.s32.f32 %v3034
    %3037 = vmax.xlane.f32.xlu0 %v3036
    %v3038 = vpop.xlane.xlu0 %3037
    %vm3039 = vcmp.eq.f32.partialorder %v3036, %v3038
    %v3040 = vsel %vm3039, %v3035, -inf
    %3041 = vmax.xlane.f32.xlu0 %v3040
    %v3042 = vpop.xlane.xlu0 %3041
    %v3043 = vcvt.f32.s32 %v3042
    %v3044 = vcvt.f32.s32 %v3038
    %v3045 = vshll.u32 %v3044, 16
    %v3046 = vadd.s32 %v3045, %v3043
    %v3047 = vand.u32 %v2888, 65535
    %v3048 = vshra.s32 %v2888, 16
    %v3049 = vcvt.s32.f32 %v3047
    %v3050 = vcvt.s32.f32 %v3048
    %3051 = vmax.xlane.f32.xlu0 %v3050
    %v3052 = vpop.xlane.xlu0 %3051
    %vm3053 = vcmp.eq.f32.partialorder %v3050, %v3052
    %v3054 = vsel %vm3053, %v3049, -inf
    %3055 = vmax.xlane.f32.xlu0 %v3054
    %v3056 = vpop.xlane.xlu0 %3055
    %v3057 = vcvt.f32.s32 %v3056
    %v3058 = vcvt.f32.s32 %v3052
    %v3059 = vshll.u32 %v3058, 16
    %v3060 = vadd.s32 %v3059, %v3057
    %v3061 = vand.u32 %v2889, 65535
    %v3062 = vshra.s32 %v2889, 16
    %v3063 = vcvt.s32.f32 %v3061
    %v3064 = vcvt.s32.f32 %v3062
    %3065 = vmax.xlane.f32.xlu0 %v3064
    %v3066 = vpop.xlane.xlu0 %3065
    %vm3067 = vcmp.eq.f32.partialorder %v3064, %v3066
    %v3068 = vsel %vm3067, %v3063, -inf
    %3069 = vmax.xlane.f32.xlu0 %v3068
    %v3070 = vpop.xlane.xlu0 %3069
    %v3071 = vcvt.f32.s32 %v3070
    %v3072 = vcvt.f32.s32 %v3066
    %v3073 = vshll.u32 %v3072, 16
    %v3074 = vadd.s32 %v3073, %v3071
    %v3075 = vand.u32 %v2890, 65535
    %v3076 = vshra.s32 %v2890, 16
    %v3077 = vcvt.s32.f32 %v3075
    %v3078 = vcvt.s32.f32 %v3076
    %3079 = vmax.xlane.f32.xlu0 %v3078
    %v3080 = vpop.xlane.xlu0 %3079
    %vm3081 = vcmp.eq.f32.partialorder %v3078, %v3080
    %v3082 = vsel %vm3081, %v3077, -inf
    %3083 = vmax.xlane.f32.xlu0 %v3082
    %v3084 = vpop.xlane.xlu0 %3083
    %v3085 = vcvt.f32.s32 %v3084
    %v3086 = vcvt.f32.s32 %v3080
    %v3087 = vshll.u32 %v3086, 16
    %v3088 = vadd.s32 %v3087, %v3085
    %v3089 = vand.u32 %v2891, 65535
    %v3090 = vshra.s32 %v2891, 16
    %v3091 = vcvt.s32.f32 %v3089
    %v3092 = vcvt.s32.f32 %v3090
    %3093 = vmax.xlane.f32.xlu0 %v3092
    %v3094 = vpop.xlane.xlu0 %3093
    %vm3095 = vcmp.eq.f32.partialorder %v3092, %v3094
    %v3096 = vsel %vm3095, %v3091, -inf
    %3097 = vmax.xlane.f32.xlu0 %v3096
    %v3098 = vpop.xlane.xlu0 %3097
    %v3099 = vcvt.f32.s32 %v3098
    %v3100 = vcvt.f32.s32 %v3094
    %v3101 = vshll.u32 %v3100, 16
    %v3102 = vadd.s32 %v3101, %v3099
    %v3103 = vand.u32 %v2892, 65535
    %v3104 = vshra.s32 %v2892, 16
    %v3105 = vcvt.s32.f32 %v3103
    %v3106 = vcvt.s32.f32 %v3104
    %3107 = vmax.xlane.f32.xlu0 %v3106
    %v3108 = vpop.xlane.xlu0 %3107
    %vm3109 = vcmp.eq.f32.partialorder %v3106, %v3108
    %v3110 = vsel %vm3109, %v3105, -inf
    %3111 = vmax.xlane.f32.xlu0 %v3110
    %v3112 = vpop.xlane.xlu0 %3111
    %v3113 = vcvt.f32.s32 %v3112
    %v3114 = vcvt.f32.s32 %v3108
    %v3115 = vshll.u32 %v3114, 16
    %v3116 = vadd.s32 %v3115, %v3113
    %v3117 = vand.u32 %v2906, 127
    %v3118 = vand.u32 %v2920, 127
    %v3119 = vand.u32 %v2934, 127
    %v3120 = vand.u32 %v2948, 127
    %v3121 = vand.u32 %v2962, 127
    %v3122 = vand.u32 %v2976, 127
    %v3123 = vand.u32 %v2990, 127
    %v3124 = vand.u32 %v3004, 127
    %v3125 = vand.u32 %v3018, 127
    %v3126 = vand.u32 %v3032, 127
    %v3127 = vand.u32 %v3046, 127
    %v3128 = vand.u32 %v3060, 127
    %v3129 = vand.u32 %v3074, 127
    %v3130 = vand.u32 %v3088, 127
    %v3131 = vand.u32 %v3102, 127
    %v3132 = vand.u32 %v3116, 127
    %v3133 = vsub.s32 127, %v3117
    %v3134 = vsub.s32 127, %v3118
    %v3135 = vsub.s32 127, %v3119
    %v3136 = vsub.s32 127, %v3120
    %v3137 = vsub.s32 127, %v3121
    %v3138 = vsub.s32 127, %v3122
    %v3139 = vsub.s32 127, %v3123
    %v3140 = vsub.s32 127, %v3124
    %v3141 = vsub.s32 127, %v3125
    %v3142 = vsub.s32 127, %v3126
    %v3143 = vsub.s32 127, %v3127
    %v3144 = vsub.s32 127, %v3128
    %v3145 = vsub.s32 127, %v3129
    %v3146 = vsub.s32 127, %v3130
    %v3147 = vsub.s32 127, %v3131
    %v3148 = vsub.s32 127, %v3132
    %v3149 = vand.u32 %v2906, 4294967168
    %v3150 = vand.u32 %v2920, 4294967168
    %v3151 = vand.u32 %v2934, 4294967168
    %v3152 = vand.u32 %v2948, 4294967168
    %v3153 = vand.u32 %v2962, 4294967168
    %v3154 = vand.u32 %v2976, 4294967168
    %v3155 = vand.u32 %v2990, 4294967168
    %v3156 = vand.u32 %v3004, 4294967168
    %v3157 = vand.u32 %v3018, 4294967168
    %v3158 = vand.u32 %v3032, 4294967168
    %v3159 = vand.u32 %v3046, 4294967168
    %v3160 = vand.u32 %v3060, 4294967168
    %v3161 = vand.u32 %v3074, 4294967168
    %v3162 = vand.u32 %v3088, 4294967168
    %v3163 = vand.u32 %v3102, 4294967168
    %v3164 = vand.u32 %v3116, 4294967168
    %vm3165 = vcmp.lt.s32.totalorder %v3149, 0
    %vm3166 = vcmp.lt.s32.totalorder %v3150, 0
    %vm3167 = vcmp.lt.s32.totalorder %v3151, 0
    %vm3168 = vcmp.lt.s32.totalorder %v3152, 0
    %vm3169 = vcmp.lt.s32.totalorder %v3153, 0
    %vm3170 = vcmp.lt.s32.totalorder %v3154, 0
    %vm3171 = vcmp.lt.s32.totalorder %v3155, 0
    %vm3172 = vcmp.lt.s32.totalorder %v3156, 0
    %vm3173 = vcmp.lt.s32.totalorder %v3157, 0
    %vm3174 = vcmp.lt.s32.totalorder %v3158, 0
    %vm3175 = vcmp.lt.s32.totalorder %v3159, 0
    %vm3176 = vcmp.lt.s32.totalorder %v3160, 0
    %vm3177 = vcmp.lt.s32.totalorder %v3161, 0
    %vm3178 = vcmp.lt.s32.totalorder %v3162, 0
    %vm3179 = vcmp.lt.s32.totalorder %v3163, 0
    %vm3180 = vcmp.lt.s32.totalorder %v3164, 0
    %v3181 = vsub.s32 2147483648, %v3149
    %v3182 = vsub.s32 2147483648, %v3150
    %v3183 = vsub.s32 2147483648, %v3151
    %v3184 = vsub.s32 2147483648, %v3152
    %v3185 = vsub.s32 2147483648, %v3153
    %v3186 = vsub.s32 2147483648, %v3154
    %v3187 = vsub.s32 2147483648, %v3155
    %v3188 = vsub.s32 2147483648, %v3156
    %v3189 = vsub.s32 2147483648, %v3157
    %v3190 = vsub.s32 2147483648, %v3158
    %v3191 = vsub.s32 2147483648, %v3159
    %v3192 = vsub.s32 2147483648, %v3160
    %v3193 = vsub.s32 2147483648, %v3161
    %v3194 = vsub.s32 2147483648, %v3162
    %v3195 = vsub.s32 2147483648, %v3163
    %v3196 = vsub.s32 2147483648, %v3164
    %v3197 = vsel %vm3165, %v3181, %v3149
    %v3198 = vsel %vm3166, %v3182, %v3150
    %v3199 = vsel %vm3167, %v3183, %v3151
    %v3200 = vsel %vm3168, %v3184, %v3152
    %v3201 = vsel %vm3169, %v3185, %v3153
    %v3202 = vsel %vm3170, %v3186, %v3154
    %v3203 = vsel %vm3171, %v3187, %v3155
    %v3204 = vsel %vm3172, %v3188, %v3156
    %v3205 = vsel %vm3173, %v3189, %v3157
    %v3206 = vsel %vm3174, %v3190, %v3158
    %v3207 = vsel %vm3175, %v3191, %v3159
    %v3208 = vsel %vm3176, %v3192, %v3160
    %v3209 = vsel %vm3177, %v3193, %v3161
    %v3210 = vsel %vm3178, %v3194, %v3162
    %v3211 = vsel %vm3179, %v3195, %v3163
    %v3212 = vsel %vm3180, %v3196, %v3164
    %vm3229 = vcmp.eq.s32.totalorder %v372, 6
    %v3230 = vsel %vm3229, %v3197, %v2829
    %v3231 = vsel %vm3229, %v3198, %v2830
    %v3232 = vsel %vm3229, %v3199, %v2831
    %v3233 = vsel %vm3229, %v3200, %v2832
    %v3234 = vsel %vm3229, %v3201, %v2833
    %v3235 = vsel %vm3229, %v3202, %v2834
    %v3236 = vsel %vm3229, %v3203, %v2835
    %v3237 = vsel %vm3229, %v3204, %v2836
    %v3238 = vsel %vm3229, %v3205, %v2837
    %v3239 = vsel %vm3229, %v3206, %v2838
    %v3240 = vsel %vm3229, %v3207, %v2839
    %v3241 = vsel %vm3229, %v3208, %v2840
    %v3242 = vsel %vm3229, %v3209, %v2841
    %v3243 = vsel %vm3229, %v3210, %v2842
    %v3244 = vsel %vm3229, %v3211, %v2843
    %v3245 = vsel %vm3229, %v3212, %v2844
    %v3246 = vsel %vm3229, %v3133, %v2845
    %v3247 = vsel %vm3229, %v3134, %v2846
    %v3248 = vsel %vm3229, %v3135, %v2847
    %v3249 = vsel %vm3229, %v3136, %v2848
    %v3250 = vsel %vm3229, %v3137, %v2849
    %v3251 = vsel %vm3229, %v3138, %v2850
    %v3252 = vsel %vm3229, %v3139, %v2851
    %v3253 = vsel %vm3229, %v3140, %v2852
    %v3254 = vsel %vm3229, %v3141, %v2853
    %v3255 = vsel %vm3229, %v3142, %v2854
    %v3256 = vsel %vm3229, %v3143, %v2855
    %v3257 = vsel %vm3229, %v3144, %v2856
    %v3258 = vsel %vm3229, %v3145, %v2857
    %v3259 = vsel %vm3229, %v3146, %v2858
    %v3260 = vsel %vm3229, %v3147, %v2859
    %v3261 = vsel %vm3229, %v3148, %v2860
    %vm3262 = vcmp.eq.s32.totalorder %v372, %v3133
    %vm3263 = vcmp.eq.s32.totalorder %v372, %v3134
    %vm3264 = vcmp.eq.s32.totalorder %v372, %v3135
    %vm3265 = vcmp.eq.s32.totalorder %v372, %v3136
    %vm3266 = vcmp.eq.s32.totalorder %v372, %v3137
    %vm3267 = vcmp.eq.s32.totalorder %v372, %v3138
    %vm3268 = vcmp.eq.s32.totalorder %v372, %v3139
    %vm3269 = vcmp.eq.s32.totalorder %v372, %v3140
    %vm3270 = vcmp.eq.s32.totalorder %v372, %v3141
    %vm3271 = vcmp.eq.s32.totalorder %v372, %v3142
    %vm3272 = vcmp.eq.s32.totalorder %v372, %v3143
    %vm3273 = vcmp.eq.s32.totalorder %v372, %v3144
    %vm3274 = vcmp.eq.s32.totalorder %v372, %v3145
    %vm3275 = vcmp.eq.s32.totalorder %v372, %v3146
    %vm3276 = vcmp.eq.s32.totalorder %v372, %v3147
    %vm3277 = vcmp.eq.s32.totalorder %v372, %v3148
    %v3278 = vsel %vm3262, 2147483648, %v2877
    %v3279 = vsel %vm3263, 2147483648, %v2878
    %v3280 = vsel %vm3264, 2147483648, %v2879
    %v3281 = vsel %vm3265, 2147483648, %v2880
    %v3282 = vsel %vm3266, 2147483648, %v2881
    %v3283 = vsel %vm3267, 2147483648, %v2882
    %v3284 = vsel %vm3268, 2147483648, %v2883
    %v3285 = vsel %vm3269, 2147483648, %v2884
    %v3286 = vsel %vm3270, 2147483648, %v2885
    %v3287 = vsel %vm3271, 2147483648, %v2886
    %v3288 = vsel %vm3272, 2147483648, %v2887
    %v3289 = vsel %vm3273, 2147483648, %v2888
    %v3290 = vsel %vm3274, 2147483648, %v2889
    %v3291 = vsel %vm3275, 2147483648, %v2890
    %v3292 = vsel %vm3276, 2147483648, %v2891
    %v3293 = vsel %vm3277, 2147483648, %v2892
    %v3294 = vand.u32 %v3278, 65535
    %v3295 = vshra.s32 %v3278, 16
    %v3296 = vcvt.s32.f32 %v3294
    %v3297 = vcvt.s32.f32 %v3295
    %3298 = vmax.xlane.f32.xlu0 %v3297
    %v3299 = vpop.xlane.xlu0 %3298
    %vm3300 = vcmp.eq.f32.partialorder %v3297, %v3299
    %v3301 = vsel %vm3300, %v3296, -inf
    %3302 = vmax.xlane.f32.xlu0 %v3301
    %v3303 = vpop.xlane.xlu0 %3302
    %v3304 = vcvt.f32.s32 %v3303
    %v3305 = vcvt.f32.s32 %v3299
    %v3306 = vshll.u32 %v3305, 16
    %v3307 = vadd.s32 %v3306, %v3304
    %v3308 = vand.u32 %v3279, 65535
    %v3309 = vshra.s32 %v3279, 16
    %v3310 = vcvt.s32.f32 %v3308
    %v3311 = vcvt.s32.f32 %v3309
    %3312 = vmax.xlane.f32.xlu0 %v3311
    %v3313 = vpop.xlane.xlu0 %3312
    %vm3314 = vcmp.eq.f32.partialorder %v3311, %v3313
    %v3315 = vsel %vm3314, %v3310, -inf
    %3316 = vmax.xlane.f32.xlu0 %v3315
    %v3317 = vpop.xlane.xlu0 %3316
    %v3318 = vcvt.f32.s32 %v3317
    %v3319 = vcvt.f32.s32 %v3313
    %v3320 = vshll.u32 %v3319, 16
    %v3321 = vadd.s32 %v3320, %v3318
    %v3322 = vand.u32 %v3280, 65535
    %v3323 = vshra.s32 %v3280, 16
    %v3324 = vcvt.s32.f32 %v3322
    %v3325 = vcvt.s32.f32 %v3323
    %3326 = vmax.xlane.f32.xlu0 %v3325
    %v3327 = vpop.xlane.xlu0 %3326
    %vm3328 = vcmp.eq.f32.partialorder %v3325, %v3327
    %v3329 = vsel %vm3328, %v3324, -inf
    %3330 = vmax.xlane.f32.xlu0 %v3329
    %v3331 = vpop.xlane.xlu0 %3330
    %v3332 = vcvt.f32.s32 %v3331
    %v3333 = vcvt.f32.s32 %v3327
    %v3334 = vshll.u32 %v3333, 16
    %v3335 = vadd.s32 %v3334, %v3332
    %v3336 = vand.u32 %v3281, 65535
    %v3337 = vshra.s32 %v3281, 16
    %v3338 = vcvt.s32.f32 %v3336
    %v3339 = vcvt.s32.f32 %v3337
    %3340 = vmax.xlane.f32.xlu0 %v3339
    %v3341 = vpop.xlane.xlu0 %3340
    %vm3342 = vcmp.eq.f32.partialorder %v3339, %v3341
    %v3343 = vsel %vm3342, %v3338, -inf
    %3344 = vmax.xlane.f32.xlu0 %v3343
    %v3345 = vpop.xlane.xlu0 %3344
    %v3346 = vcvt.f32.s32 %v3345
    %v3347 = vcvt.f32.s32 %v3341
    %v3348 = vshll.u32 %v3347, 16
    %v3349 = vadd.s32 %v3348, %v3346
    %v3350 = vand.u32 %v3282, 65535
    %v3351 = vshra.s32 %v3282, 16
    %v3352 = vcvt.s32.f32 %v3350
    %v3353 = vcvt.s32.f32 %v3351
    %3354 = vmax.xlane.f32.xlu0 %v3353
    %v3355 = vpop.xlane.xlu0 %3354
    %vm3356 = vcmp.eq.f32.partialorder %v3353, %v3355
    %v3357 = vsel %vm3356, %v3352, -inf
    %3358 = vmax.xlane.f32.xlu0 %v3357
    %v3359 = vpop.xlane.xlu0 %3358
    %v3360 = vcvt.f32.s32 %v3359
    %v3361 = vcvt.f32.s32 %v3355
    %v3362 = vshll.u32 %v3361, 16
    %v3363 = vadd.s32 %v3362, %v3360
    %v3364 = vand.u32 %v3283, 65535
    %v3365 = vshra.s32 %v3283, 16
    %v3366 = vcvt.s32.f32 %v3364
    %v3367 = vcvt.s32.f32 %v3365
    %3368 = vmax.xlane.f32.xlu0 %v3367
    %v3369 = vpop.xlane.xlu0 %3368
    %vm3370 = vcmp.eq.f32.partialorder %v3367, %v3369
    %v3371 = vsel %vm3370, %v3366, -inf
    %3372 = vmax.xlane.f32.xlu0 %v3371
    %v3373 = vpop.xlane.xlu0 %3372
    %v3374 = vcvt.f32.s32 %v3373
    %v3375 = vcvt.f32.s32 %v3369
    %v3376 = vshll.u32 %v3375, 16
    %v3377 = vadd.s32 %v3376, %v3374
    %v3378 = vand.u32 %v3284, 65535
    %v3379 = vshra.s32 %v3284, 16
    %v3380 = vcvt.s32.f32 %v3378
    %v3381 = vcvt.s32.f32 %v3379
    %3382 = vmax.xlane.f32.xlu0 %v3381
    %v3383 = vpop.xlane.xlu0 %3382
    %vm3384 = vcmp.eq.f32.partialorder %v3381, %v3383
    %v3385 = vsel %vm3384, %v3380, -inf
    %3386 = vmax.xlane.f32.xlu0 %v3385
    %v3387 = vpop.xlane.xlu0 %3386
    %v3388 = vcvt.f32.s32 %v3387
    %v3389 = vcvt.f32.s32 %v3383
    %v3390 = vshll.u32 %v3389, 16
    %v3391 = vadd.s32 %v3390, %v3388
    %v3392 = vand.u32 %v3285, 65535
    %v3393 = vshra.s32 %v3285, 16
    %v3394 = vcvt.s32.f32 %v3392
    %v3395 = vcvt.s32.f32 %v3393
    %3396 = vmax.xlane.f32.xlu0 %v3395
    %v3397 = vpop.xlane.xlu0 %3396
    %vm3398 = vcmp.eq.f32.partialorder %v3395, %v3397
    %v3399 = vsel %vm3398, %v3394, -inf
    %3400 = vmax.xlane.f32.xlu0 %v3399
    %v3401 = vpop.xlane.xlu0 %3400
    %v3402 = vcvt.f32.s32 %v3401
    %v3403 = vcvt.f32.s32 %v3397
    %v3404 = vshll.u32 %v3403, 16
    %v3405 = vadd.s32 %v3404, %v3402
    %v3406 = vand.u32 %v3286, 65535
    %v3407 = vshra.s32 %v3286, 16
    %v3408 = vcvt.s32.f32 %v3406
    %v3409 = vcvt.s32.f32 %v3407
    %3410 = vmax.xlane.f32.xlu0 %v3409
    %v3411 = vpop.xlane.xlu0 %3410
    %vm3412 = vcmp.eq.f32.partialorder %v3409, %v3411
    %v3413 = vsel %vm3412, %v3408, -inf
    %3414 = vmax.xlane.f32.xlu0 %v3413
    %v3415 = vpop.xlane.xlu0 %3414
    %v3416 = vcvt.f32.s32 %v3415
    %v3417 = vcvt.f32.s32 %v3411
    %v3418 = vshll.u32 %v3417, 16
    %v3419 = vadd.s32 %v3418, %v3416
    %v3420 = vand.u32 %v3287, 65535
    %v3421 = vshra.s32 %v3287, 16
    %v3422 = vcvt.s32.f32 %v3420
    %v3423 = vcvt.s32.f32 %v3421
    %3424 = vmax.xlane.f32.xlu0 %v3423
    %v3425 = vpop.xlane.xlu0 %3424
    %vm3426 = vcmp.eq.f32.partialorder %v3423, %v3425
    %v3427 = vsel %vm3426, %v3422, -inf
    %3428 = vmax.xlane.f32.xlu0 %v3427
    %v3429 = vpop.xlane.xlu0 %3428
    %v3430 = vcvt.f32.s32 %v3429
    %v3431 = vcvt.f32.s32 %v3425
    %v3432 = vshll.u32 %v3431, 16
    %v3433 = vadd.s32 %v3432, %v3430
    %v3434 = vand.u32 %v3288, 65535
    %v3435 = vshra.s32 %v3288, 16
    %v3436 = vcvt.s32.f32 %v3434
    %v3437 = vcvt.s32.f32 %v3435
    %3438 = vmax.xlane.f32.xlu0 %v3437
    %v3439 = vpop.xlane.xlu0 %3438
    %vm3440 = vcmp.eq.f32.partialorder %v3437, %v3439
    %v3441 = vsel %vm3440, %v3436, -inf
    %3442 = vmax.xlane.f32.xlu0 %v3441
    %v3443 = vpop.xlane.xlu0 %3442
    %v3444 = vcvt.f32.s32 %v3443
    %v3445 = vcvt.f32.s32 %v3439
    %v3446 = vshll.u32 %v3445, 16
    %v3447 = vadd.s32 %v3446, %v3444
    %v3448 = vand.u32 %v3289, 65535
    %v3449 = vshra.s32 %v3289, 16
    %v3450 = vcvt.s32.f32 %v3448
    %v3451 = vcvt.s32.f32 %v3449
    %3452 = vmax.xlane.f32.xlu0 %v3451
    %v3453 = vpop.xlane.xlu0 %3452
    %vm3454 = vcmp.eq.f32.partialorder %v3451, %v3453
    %v3455 = vsel %vm3454, %v3450, -inf
    %3456 = vmax.xlane.f32.xlu0 %v3455
    %v3457 = vpop.xlane.xlu0 %3456
    %v3458 = vcvt.f32.s32 %v3457
    %v3459 = vcvt.f32.s32 %v3453
    %v3460 = vshll.u32 %v3459, 16
    %v3461 = vadd.s32 %v3460, %v3458
    %v3462 = vand.u32 %v3290, 65535
    %v3463 = vshra.s32 %v3290, 16
    %v3464 = vcvt.s32.f32 %v3462
    %v3465 = vcvt.s32.f32 %v3463
    %3466 = vmax.xlane.f32.xlu0 %v3465
    %v3467 = vpop.xlane.xlu0 %3466
    %vm3468 = vcmp.eq.f32.partialorder %v3465, %v3467
    %v3469 = vsel %vm3468, %v3464, -inf
    %3470 = vmax.xlane.f32.xlu0 %v3469
    %v3471 = vpop.xlane.xlu0 %3470
    %v3472 = vcvt.f32.s32 %v3471
    %v3473 = vcvt.f32.s32 %v3467
    %v3474 = vshll.u32 %v3473, 16
    %v3475 = vadd.s32 %v3474, %v3472
    %v3476 = vand.u32 %v3291, 65535
    %v3477 = vshra.s32 %v3291, 16
    %v3478 = vcvt.s32.f32 %v3476
    %v3479 = vcvt.s32.f32 %v3477
    %3480 = vmax.xlane.f32.xlu0 %v3479
    %v3481 = vpop.xlane.xlu0 %3480
    %vm3482 = vcmp.eq.f32.partialorder %v3479, %v3481
    %v3483 = vsel %vm3482, %v3478, -inf
    %3484 = vmax.xlane.f32.xlu0 %v3483
    %v3485 = vpop.xlane.xlu0 %3484
    %v3486 = vcvt.f32.s32 %v3485
    %v3487 = vcvt.f32.s32 %v3481
    %v3488 = vshll.u32 %v3487, 16
    %v3489 = vadd.s32 %v3488, %v3486
    %v3490 = vand.u32 %v3292, 65535
    %v3491 = vshra.s32 %v3292, 16
    %v3492 = vcvt.s32.f32 %v3490
    %v3493 = vcvt.s32.f32 %v3491
    %3494 = vmax.xlane.f32.xlu0 %v3493
    %v3495 = vpop.xlane.xlu0 %3494
    %vm3496 = vcmp.eq.f32.partialorder %v3493, %v3495
    %v3497 = vsel %vm3496, %v3492, -inf
    %3498 = vmax.xlane.f32.xlu0 %v3497
    %v3499 = vpop.xlane.xlu0 %3498
    %v3500 = vcvt.f32.s32 %v3499
    %v3501 = vcvt.f32.s32 %v3495
    %v3502 = vshll.u32 %v3501, 16
    %v3503 = vadd.s32 %v3502, %v3500
    %v3504 = vand.u32 %v3293, 65535
    %v3505 = vshra.s32 %v3293, 16
    %v3506 = vcvt.s32.f32 %v3504
    %v3507 = vcvt.s32.f32 %v3505
    %3508 = vmax.xlane.f32.xlu0 %v3507
    %v3509 = vpop.xlane.xlu0 %3508
    %vm3510 = vcmp.eq.f32.partialorder %v3507, %v3509
    %v3511 = vsel %vm3510, %v3506, -inf
    %3512 = vmax.xlane.f32.xlu0 %v3511
    %v3513 = vpop.xlane.xlu0 %3512
    %v3514 = vcvt.f32.s32 %v3513
    %v3515 = vcvt.f32.s32 %v3509
    %v3516 = vshll.u32 %v3515, 16
    %v3517 = vadd.s32 %v3516, %v3514
    %v3518 = vand.u32 %v3307, 127
    %v3519 = vand.u32 %v3321, 127
    %v3520 = vand.u32 %v3335, 127
    %v3521 = vand.u32 %v3349, 127
    %v3522 = vand.u32 %v3363, 127
    %v3523 = vand.u32 %v3377, 127
    %v3524 = vand.u32 %v3391, 127
    %v3525 = vand.u32 %v3405, 127
    %v3526 = vand.u32 %v3419, 127
    %v3527 = vand.u32 %v3433, 127
    %v3528 = vand.u32 %v3447, 127
    %v3529 = vand.u32 %v3461, 127
    %v3530 = vand.u32 %v3475, 127
    %v3531 = vand.u32 %v3489, 127
    %v3532 = vand.u32 %v3503, 127
    %v3533 = vand.u32 %v3517, 127
    %v3534 = vsub.s32 127, %v3518
    %v3535 = vsub.s32 127, %v3519
    %v3536 = vsub.s32 127, %v3520
    %v3537 = vsub.s32 127, %v3521
    %v3538 = vsub.s32 127, %v3522
    %v3539 = vsub.s32 127, %v3523
    %v3540 = vsub.s32 127, %v3524
    %v3541 = vsub.s32 127, %v3525
    %v3542 = vsub.s32 127, %v3526
    %v3543 = vsub.s32 127, %v3527
    %v3544 = vsub.s32 127, %v3528
    %v3545 = vsub.s32 127, %v3529
    %v3546 = vsub.s32 127, %v3530
    %v3547 = vsub.s32 127, %v3531
    %v3548 = vsub.s32 127, %v3532
    %v3549 = vsub.s32 127, %v3533
    %v3550 = vand.u32 %v3307, 4294967168
    %v3551 = vand.u32 %v3321, 4294967168
    %v3552 = vand.u32 %v3335, 4294967168
    %v3553 = vand.u32 %v3349, 4294967168
    %v3554 = vand.u32 %v3363, 4294967168
    %v3555 = vand.u32 %v3377, 4294967168
    %v3556 = vand.u32 %v3391, 4294967168
    %v3557 = vand.u32 %v3405, 4294967168
    %v3558 = vand.u32 %v3419, 4294967168
    %v3559 = vand.u32 %v3433, 4294967168
    %v3560 = vand.u32 %v3447, 4294967168
    %v3561 = vand.u32 %v3461, 4294967168
    %v3562 = vand.u32 %v3475, 4294967168
    %v3563 = vand.u32 %v3489, 4294967168
    %v3564 = vand.u32 %v3503, 4294967168
    %v3565 = vand.u32 %v3517, 4294967168
    %vm3566 = vcmp.lt.s32.totalorder %v3550, 0
    %vm3567 = vcmp.lt.s32.totalorder %v3551, 0
    %vm3568 = vcmp.lt.s32.totalorder %v3552, 0
    %vm3569 = vcmp.lt.s32.totalorder %v3553, 0
    %vm3570 = vcmp.lt.s32.totalorder %v3554, 0
    %vm3571 = vcmp.lt.s32.totalorder %v3555, 0
    %vm3572 = vcmp.lt.s32.totalorder %v3556, 0
    %vm3573 = vcmp.lt.s32.totalorder %v3557, 0
    %vm3574 = vcmp.lt.s32.totalorder %v3558, 0
    %vm3575 = vcmp.lt.s32.totalorder %v3559, 0
    %vm3576 = vcmp.lt.s32.totalorder %v3560, 0
    %vm3577 = vcmp.lt.s32.totalorder %v3561, 0
    %vm3578 = vcmp.lt.s32.totalorder %v3562, 0
    %vm3579 = vcmp.lt.s32.totalorder %v3563, 0
    %vm3580 = vcmp.lt.s32.totalorder %v3564, 0
    %vm3581 = vcmp.lt.s32.totalorder %v3565, 0
    %v3582 = vsub.s32 2147483648, %v3550
    %v3583 = vsub.s32 2147483648, %v3551
    %v3584 = vsub.s32 2147483648, %v3552
    %v3585 = vsub.s32 2147483648, %v3553
    %v3586 = vsub.s32 2147483648, %v3554
    %v3587 = vsub.s32 2147483648, %v3555
    %v3588 = vsub.s32 2147483648, %v3556
    %v3589 = vsub.s32 2147483648, %v3557
    %v3590 = vsub.s32 2147483648, %v3558
    %v3591 = vsub.s32 2147483648, %v3559
    %v3592 = vsub.s32 2147483648, %v3560
    %v3593 = vsub.s32 2147483648, %v3561
    %v3594 = vsub.s32 2147483648, %v3562
    %v3595 = vsub.s32 2147483648, %v3563
    %v3596 = vsub.s32 2147483648, %v3564
    %v3597 = vsub.s32 2147483648, %v3565
    %v3598 = vsel %vm3566, %v3582, %v3550
    %v3599 = vsel %vm3567, %v3583, %v3551
    %v3600 = vsel %vm3568, %v3584, %v3552
    %v3601 = vsel %vm3569, %v3585, %v3553
    %v3602 = vsel %vm3570, %v3586, %v3554
    %v3603 = vsel %vm3571, %v3587, %v3555
    %v3604 = vsel %vm3572, %v3588, %v3556
    %v3605 = vsel %vm3573, %v3589, %v3557
    %v3606 = vsel %vm3574, %v3590, %v3558
    %v3607 = vsel %vm3575, %v3591, %v3559
    %v3608 = vsel %vm3576, %v3592, %v3560
    %v3609 = vsel %vm3577, %v3593, %v3561
    %v3610 = vsel %vm3578, %v3594, %v3562
    %v3611 = vsel %vm3579, %v3595, %v3563
    %v3612 = vsel %vm3580, %v3596, %v3564
    %v3613 = vsel %vm3581, %v3597, %v3565
    %vm3630 = vcmp.eq.s32.totalorder %v372, 7
    %v3631 = vsel %vm3630, %v3598, %v3230
    %v3632 = vsel %vm3630, %v3599, %v3231
    %v3633 = vsel %vm3630, %v3600, %v3232
    %v3634 = vsel %vm3630, %v3601, %v3233
    %v3635 = vsel %vm3630, %v3602, %v3234
    %v3636 = vsel %vm3630, %v3603, %v3235
    %v3637 = vsel %vm3630, %v3604, %v3236
    %v3638 = vsel %vm3630, %v3605, %v3237
    %v3639 = vsel %vm3630, %v3606, %v3238
    %v3640 = vsel %vm3630, %v3607, %v3239
    %v3641 = vsel %vm3630, %v3608, %v3240
    %v3642 = vsel %vm3630, %v3609, %v3241
    %v3643 = vsel %vm3630, %v3610, %v3242
    %v3644 = vsel %vm3630, %v3611, %v3243
    %v3645 = vsel %vm3630, %v3612, %v3244
    %v3646 = vsel %vm3630, %v3613, %v3245
    %v3647 = vsel %vm3630, %v3534, %v3246
    %v3648 = vsel %vm3630, %v3535, %v3247
    %v3649 = vsel %vm3630, %v3536, %v3248
    %v3650 = vsel %vm3630, %v3537, %v3249
    %v3651 = vsel %vm3630, %v3538, %v3250
    %v3652 = vsel %vm3630, %v3539, %v3251
    %v3653 = vsel %vm3630, %v3540, %v3252
    %v3654 = vsel %vm3630, %v3541, %v3253
    %v3655 = vsel %vm3630, %v3542, %v3254
    %v3656 = vsel %vm3630, %v3543, %v3255
    %v3657 = vsel %vm3630, %v3544, %v3256
    %v3658 = vsel %vm3630, %v3545, %v3257
    %v3659 = vsel %vm3630, %v3546, %v3258
    %v3660 = vsel %vm3630, %v3547, %v3259
    %v3661 = vsel %vm3630, %v3548, %v3260
    %v3662 = vsel %vm3630, %v3549, %v3261
    %vm3663 = vcmp.eq.s32.totalorder %v372, 8
    %v3664 = vsel %vm3663, %v180, %v3631
    %v3665 = vsel %vm3663, %v183, %v3632
    %v3666 = vsel %vm3663, %v186, %v3633
    %v3667 = vsel %vm3663, %v189, %v3634
    %v3668 = vsel %vm3663, %v192, %v3635
    %v3669 = vsel %vm3663, %v195, %v3636
    %v3670 = vsel %vm3663, %v198, %v3637
    %v3671 = vsel %vm3663, %v201, %v3638
    %v3672 = vsel %vm3663, %v204, %v3639
    %v3673 = vsel %vm3663, %v207, %v3640
    %v3674 = vsel %vm3663, %v210, %v3641
    %v3675 = vsel %vm3663, %v213, %v3642
    %v3676 = vsel %vm3663, %v216, %v3643
    %v3677 = vsel %vm3663, %v219, %v3644
    %v3678 = vsel %vm3663, %v222, %v3645
    %v3679 = vsel %vm3663, %v225, %v3646
    %3680 = vst [vmem:[#allocation2] sm:$0xff] %v3664
    %3681 = vst [vmem:[#allocation2 + $0x8] sm:$0xff] %v3665
    %3682 = vst [vmem:[#allocation2 + $0x10] sm:$0xff] %v3666
    %3683 = vst [vmem:[#allocation2 + $0x18] sm:$0xff] %v3667
    %3684 = vst [vmem:[#allocation2 + $0x20] sm:$0xff] %v3668
    %3685 = vst [vmem:[#allocation2 + $0x28] sm:$0xff] %v3669
    %3686 = vst [vmem:[#allocation2 + $0x30] sm:$0xff] %v3670
    %3687 = vst [vmem:[#allocation2 + $0x38] sm:$0xff] %v3671
    %3688 = vst [vmem:[#allocation2 + $0x40] sm:$0xff] %v3672
    %3689 = vst [vmem:[#allocation2 + $0x48] sm:$0xff] %v3673
    %3690 = vst [vmem:[#allocation2 + $0x50] sm:$0xff] %v3674
    %3691 = vst [vmem:[#allocation2 + $0x58] sm:$0xff] %v3675
    %3692 = vst [vmem:[#allocation2 + $0x60] sm:$0xff] %v3676
    %3693 = vst [vmem:[#allocation2 + $0x68] sm:$0xff] %v3677
    %3694 = vst [vmem:[#allocation2 + $0x70] sm:$0xff] %v3678
    %3695 = vst [vmem:[#allocation2 + $0x78] sm:$0xff] %v3679
    %3696 = vst [vmem:[#allocation4] sm:$0xff] %v3647
    %3697 = vst [vmem:[#allocation4 + $0x8] sm:$0xff] %v3648
    %3698 = vst [vmem:[#allocation4 + $0x10] sm:$0xff] %v3649
    %3699 = vst [vmem:[#allocation4 + $0x18] sm:$0xff] %v3650
    %3700 = vst [vmem:[#allocation4 + $0x20] sm:$0xff] %v3651
    %3701 = vst [vmem:[#allocation4 + $0x28] sm:$0xff] %v3652
    %3702 = vst [vmem:[#allocation4 + $0x30] sm:$0xff] %v3653
    %3703 = vst [vmem:[#allocation4 + $0x38] sm:$0xff] %v3654
    %3704 = vst [vmem:[#allocation4 + $0x40] sm:$0xff] %v3655
    %3705 = vst [vmem:[#allocation4 + $0x48] sm:$0xff] %v3656
    %3706 = vst [vmem:[#allocation4 + $0x50] sm:$0xff] %v3657
    %3707 = vst [vmem:[#allocation4 + $0x58] sm:$0xff] %v3658
    %3708 = vst [vmem:[#allocation4 + $0x60] sm:$0xff] %v3659
    %3709 = vst [vmem:[#allocation4 + $0x68] sm:$0xff] %v3660
    %3710 = vst [vmem:[#allocation4 + $0x70] sm:$0xff] %v3661
    %3711 = vst [vmem:[#allocation4 + $0x78] sm:$0xff] %v3662
    // Predicated region
    $region10: #{tpu_custom_call.1} parent=1 // pred_check
      _
    $region11: #{tpu_custom_call.1} parent=1 // pred_check_branch
      %3713 = sbr.rel (0) target = $region13
    $region12: #{tpu_custom_call.1} parent=1 // pred_region
      _
    $region13: #{tpu_custom_call.1} parent=1 // pred_fallthru
      _
    // Predicated region
    $region14: #{tpu_custom_call.1} parent=1 // pred_check
      _
    $region15: #{tpu_custom_call.1} parent=1 // pred_check_branch
      %3715 = sbr.rel (0) target = $region17
    $region16: #{tpu_custom_call.1} parent=1 // pred_region
      %s3717 = ssub.s32 2048, 2048
      %3718 = vsyncadd [#allocation3], %s3717
      %s3719 = sshll.u32 [#allocation2], 4
      %s3720 = int_to_ptr.vmem [resolvable:$true] %s3719
      %3725 = dma.vmem_to_hbm [thread:$0]  %s3720, 2048, %s3, [#allocation3], 128, 128, 8
    $region17: #{tpu_custom_call.1} parent=1 // pred_fallthru
      _
    // Predicated region
    $region18: #{tpu_custom_call.1} parent=1 // pred_check
      _
    $region19: #{tpu_custom_call.1} parent=1 // pred_check_branch
      %3727 = sbr.rel (0) target = $region21
    $region20: #{tpu_custom_call.1} parent=1 // pred_region
      %s3729 = ssub.s32 2048, 2048
      %3730 = vsyncadd [#allocation5], %s3729
      %s3731 = sshll.u32 [#allocation4], 4
      %s3732 = int_to_ptr.vmem [resolvable:$true] %s3731
      %3737 = dma.vmem_to_hbm [thread:$0]  %s3732, 2048, %s4, [#allocation5], 128, 128, 8
    $region21: #{tpu_custom_call.1} parent=1 // pred_fallthru
      _
    // Predicated region
    $region22: #{tpu_custom_call.1} parent=1 // pred_check
      _
    $region23: #{tpu_custom_call.1} parent=1 // pred_check_branch
      %3739 = sbr.rel (0) target = $region25
    $region24: #{tpu_custom_call.1} parent=1 // pred_region
      _
    $region25: #{tpu_custom_call.1} parent=1 // pred_fallthru
      _
    // Predicated region
    $region26: #{tpu_custom_call.1} parent=1 // pred_check
      _
    $region27: #{tpu_custom_call.1} parent=1 // pred_check_branch
      %3741 = sbr.rel (0) target = $region29
    $region28: #{tpu_custom_call.1} parent=1 // pred_region
      %3742 = dma.done [#allocation3], 2048
    $region29: #{tpu_custom_call.1} parent=1 // pred_fallthru
      _
    // Predicated region
    $region30: #{tpu_custom_call.1} parent=1 // pred_check
      _
    $region31: #{tpu_custom_call.1} parent=1 // pred_check_branch
      %3744 = sbr.rel (0) target = $region33
    $region32: #{tpu_custom_call.1} parent=1 // pred_region
      %3745 = dma.done [#allocation5], 2048
    $region33: #{tpu_custom_call.1} parent=1 // pred_fallthru
      _
    %3746 = vsyncpa [#allocation3], 1
    %3747 = vsyncpa [#allocation5], 1

</llo_original>
